<compile_context>
chip_gen: v7x
topology: tpu7x:2x2x1
jax: 0.10.0
libtpu: 0.0.40
codegen_flags: <defaults>
</compile_context>

<pallas_src>
import math
import functools

import jax
import jax.numpy as jnp
from jax.experimental import pallas as pl
from jax.experimental.pallas import tpu as pltpu


def _mha_kernel(x_ref, wqkv_ref, bqkv_ref, wo_ref, bo_ref, out_ref,
                *, num_heads, d_k, bt, seq):
    D = num_heads * d_k

    # (Bt*S, D) activation slab; cast once for the MXU (no-op if already bf16).
    x = x_ref[...]
    if x.dtype != jnp.bfloat16:
        x = x.astype(jnp.bfloat16)

    # Fused Q/K/V projection: one MXU call with lane-dense N = 3D. Weights are
    # already [in, out] and the softmax scale is folded into the Q columns, so
    # there is no transpose and no scores scaling below.
    qkv = jnp.dot(x, wqkv_ref[...], preferred_element_type=jnp.float32)
    # Single bf16 cast of the whole slab; the head slices below need no casts.
    qkv = (qkv + bqkv_ref[...]).astype(jnp.bfloat16)        # (Bt*S, 3D)

    q = qkv[:, 0 * D:1 * D].reshape(bt, seq, D)             # lane slices at
    k = qkv[:, 1 * D:2 * D].reshape(bt, seq, D)             # 128-multiples
    v = qkv[:, 2 * D:3 * D].reshape(bt, seq, D)

    head_ctx = []
    for h in range(num_heads):                              # static, tiny (2)
        lo = h * d_k
        qh = q[:, :, lo:lo + d_k]                           # (Bt, S, d_k) bf16
        kh = k[:, :, lo:lo + d_k]
        vh = v[:, :, lo:lo + d_k]

        # Batched over Bt; contracts on the last dim of both -> no kh.T.
        scores = jnp.einsum('bqd,bkd->bqk', qh, kh,
                            preferred_element_type=jnp.float32)  # (Bt, S, S)

        # TODO(synk): attention mask (masked_fill(mask==0, -1e9)) not wired in;
        # BERT4NILM always passes mask=None.
        scores = scores - jnp.max(scores, axis=-1, keepdims=True)
        p = jnp.exp(scores)
        p = p * pl.reciprocal(jnp.sum(p, axis=-1, keepdims=True), approx=True)
        # TODO(synk): nn.Dropout on attention probs is identity in eval mode.

        head_ctx.append(
            jnp.einsum('bqk,bkd->bqd', p.astype(jnp.bfloat16), vh,
                       preferred_element_type=jnp.float32))      # (Bt, S, d_k)

    # Lane-aligned concat (d_k multiples of 128) -> (Bt*S, D).
    ctx = jnp.concatenate(head_ctx, axis=-1).reshape(bt * seq, D)
    ctx = ctx.astype(jnp.bfloat16)

    out = jnp.dot(ctx, wo_ref[...], preferred_element_type=jnp.float32)
    out = out + bo_ref[...]
    out_ref[...] = out.astype(out_ref.dtype)


def _vmem_limit_bytes():
    """Generation-aware scoped-VMEM budget (~3/4 of capacity, capped)."""
    try:
        cap = pltpu.get_tpu_info().vmem_capacity_bytes
        return int(min(cap * 3 // 4, 96 * 1024 * 1024))
    except Exception:
        return 32 * 1024 * 1024        # v7x-safe default


def _select_block_batch(B, S, D, x_itemsize, vmem_limit, requested=None):
    """Pick rows-per-step: grid of 1 unless a 2-way split has enough work."""
    if requested is not None:
        assert B % requested == 0
        if requested != B:
            assert (requested * S) % 8 == 0, \
                "block sublane dim (Bt*S) must be a multiple of 8"
        return requested

    def step_flops(bt):
        m = bt * S
        return 2.0 * m * D * (4 * D + 2 * S)     # QKV + scores + PV + out proj

    def step_vmem(bt):
        m = bt * S
        io = 2 * m * D * x_itemsize * 2          # double-buffered x and out
        w = 2 * D * 3 * D + 2 * D * D            # bf16 resident weights
        tmp = m * 3 * D * (4 + 2)                # f32 + bf16 qkv slab
        tmp += 2 * bt * S * S * 4                # scores + probs (one head)
        tmp += m * D * 4                         # f32 context accumulator
        return io + w + tmp

    Bt = B
    # Split into exactly two parallel grid steps (so both v7x TensorCores get
    # work) only when each half-step's compute comfortably exceeds the
    # ~0.35 us per-step pipeline overhead; otherwise keep a single step, which
    # is also the right answer on single-TensorCore v5e/v6e.
    if B % 2 == 0 and ((B // 2) * S) % 8 == 0:
        est_us = step_flops(B // 2) / 2e8        # assume ~200 TFLOP/s bf16
        if est_us > 1.0:
            Bt = B // 2
    # Shrink further only if the per-step VMEM estimate overflows the budget,
    # keeping B % Bt == 0 and (Bt*S) % 8 == 0.
    while Bt > 1 and step_vmem(Bt) > 0.75 * vmem_limit:
        cand = None
        for d in range(Bt - 1, 0, -1):
            if B % d == 0 and (d * S) % 8 == 0:
                cand = d
                break
        if cand is None:
            break
        Bt = cand
    return Bt


def _build_call(kernel, B, Bt, S, D, out_dtype, vmem_limit, use_buffered):
    M = Bt * S

    def const_spec(shape):
        # Constant-index (resident) blocks: single-buffer them to save VMEM.
        if use_buffered:
            try:
                return pl.BlockSpec(shape, lambda i: (0, 0),
                                    pipeline_mode=pl.Buffered(1))
            except Exception:
                pass
        return pl.BlockSpec(shape, lambda i: (0, 0))

    return pl.pallas_call(
        kernel,
        out_shape=jax.ShapeDtypeStruct((B * S, D), out_dtype),
        grid_spec=pltpu.PrefetchScalarGridSpec(
            num_scalar_prefetch=0,
            grid=(B // Bt,),
            in_specs=[
                pl.BlockSpec((M, D), lambda i: (i, 0)),   # activations
                const_spec((D, 3 * D)),                   # fused QKV weight
                const_spec((1, 3 * D)),                   # fused QKV bias
                const_spec((D, D)),                       # output weight
                const_spec((1, D)),                       # output bias
            ],
            out_specs=pl.BlockSpec((M, D), lambda i: (i, 0)),
        ),
        compiler_params=pltpu.CompilerParams(
            dimension_semantics=("parallel",),
            vmem_limit_bytes=int(vmem_limit),
        ),
    )


def multi_headed_self_attention(x, params, *, num_heads, block_batch=None):
    """Self-attention (query = key = value = x), matching BERT4NILM's usage."""
    B, S, D = x.shape
    assert D % num_heads == 0
    d_k = D // num_heads

    wq, bq, wk, bk, wv, bv, wo, bo = params
    inv_sqrt_dk = 1.0 / math.sqrt(d_k)

    # Host-side layout plumbing (free): pre-transpose to [in, out], fuse QKV,
    # fold the softmax scale into the Q projection, cast weights to bf16.
    wqkv = jnp.concatenate([wq.T * inv_sqrt_dk, wk.T, wv.T], axis=1)  # (D, 3D)
    bqkv = jnp.concatenate([bq * inv_sqrt_dk, bk, bv]).reshape(1, 3 * D)
    wo_t = wo.T                                                       # (D, D)
    bo_r = bo.reshape(1, D)

    wqkv = wqkv.astype(jnp.bfloat16)
    wo_t = wo_t.astype(jnp.bfloat16)

    vmem_limit = _vmem_limit_bytes()
    x_itemsize = jnp.dtype(x.dtype).itemsize
    Bt = _select_block_batch(B, S, D, x_itemsize, vmem_limit,
                             requested=block_batch)
    M = Bt * S
    if Bt != B:
        assert M % 8 == 0, "block sublane dim (Bt*S) must be a multiple of 8"
    # NOTE: activations stay in x.dtype at the call boundary; only convert the
    # boundary to bf16 if the surrounding model already runs bf16 (a wrapper-
    # side cast would be a separate XLA op and nets zero).

    # Flatten (B, S) -> rows so every block is (8,128)-dense and stores are
    # unmasked (lane dim = D = 256).
    xf = x.reshape(B * S, D)

    kernel = functools.partial(_mha_kernel, num_heads=num_heads, d_k=d_k,
                               bt=Bt, seq=S)

    try:
        call = _build_call(kernel, B, Bt, S, D, x.dtype, vmem_limit, True)
        out = call(xf, wqkv, bqkv, wo_t, bo_r)
    except Exception:
        # Fall back to default double-buffering if Buffered(1) is unsupported.
        call = _build_call(kernel, B, Bt, S, D, x.dtype, vmem_limit, False)
        out = call(xf, wqkv, bqkv, wo_t, bo_r)

    return out.reshape(B, S, D)


def _reference(x, params, *, num_heads):
    """Pure-JAX f32 reference mirroring the PyTorch module (eval, mask=None)."""
    B, S, D = x.shape
    d_k = D // num_heads
    wq, bq, wk, bk, wv, bv, wo, bo = params

    def lin(t, w, b):
        return t @ w.T + b

    def to_heads(t):
        return t.reshape(B, S, num_heads, d_k).transpose(0, 2, 1, 3)

    q = to_heads(lin(x, wq, bq))
    k = to_heads(lin(x, wk, bk))
    v = to_heads(lin(x, wv, bv))

    scores = jnp.einsum("bhqd,bhkd->bhqk", q, k) / math.sqrt(d_k)
    p = jax.nn.softmax(scores, axis=-1)
    o = jnp.einsum("bhqk,bhkd->bhqd", p, v)
    o = o.transpose(0, 2, 1, 3).reshape(B, S, D)
    return lin(o, wo, bo)


if __name__ == "__main__":
    # BERT4NILM's attention config: hidden=256, heads=2 (d_k=128, lane-dense).
    # Small batch/seq keeps the example tiny; the Bt selector collapses this
    # to a single grid step (the work is far below the pipeline overhead).
    B, S, H, D_MODEL = 4, 16, 2, 256

    key0 = jax.random.PRNGKey(0)
    keys = jax.random.split(key0, 10)

    # PyTorch Linear shapes: W [out, in], b [out].
    def init_w(k):
        return (jax.random.normal(k, (D_MODEL, D_MODEL), jnp.float32)
                / math.sqrt(D_MODEL))

    def init_b(k):
        return jax.random.normal(k, (D_MODEL,), jnp.float32) * 0.01

    params = (init_w(keys[0]), init_b(keys[1]),   # query proj
              init_w(keys[2]), init_b(keys[3]),   # key proj
              init_w(keys[4]), init_b(keys[5]),   # value proj
              init_w(keys[6]), init_b(keys[7]))   # output proj

    x = jax.random.normal(keys[8], (B, S, D_MODEL), jnp.float32)

    out = multi_headed_self_attention(x, params, num_heads=H)
    out = jax.block_until_ready(out)

    ref = _reference(x, params, num_heads=H)
    assert out.shape == (B, S, D_MODEL)
    # bf16 MXU inputs + approx reciprocal => compare with a relative-L2 check.
    rel_err = jnp.linalg.norm(out - ref) / jnp.linalg.norm(ref)
    assert rel_err < 3e-2, f"relative L2 error too high: {rel_err}"

    print("KERNEL_OK")
</pallas_src>

<mosaic_0001>
module attributes {stable_mosaic.version = 11 : i64} {
  func.func @_mha_kernel(%arg0: i32, %arg1: memref<64x256xf32, #tpu.memory_space<vmem>>, %arg2: memref<256x768xbf16, #tpu.memory_space<vmem>>, %arg3: memref<1x768xf32, #tpu.memory_space<vmem>>, %arg4: memref<256x256xbf16, #tpu.memory_space<vmem>>, %arg5: memref<1x256xf32, #tpu.memory_space<vmem>>, %arg6: memref<64x256xf32, #tpu.memory_space<vmem>>) attributes {dimension_semantics = [#tpu.dimension_semantics<parallel>], iteration_bounds = array<i64: 1>, scalar_prefetch = 0 : i64, scratch_operands = 0 : i64, tpu.core_type = #tpu.core_type<tc>, window_params = [{transform_indices = @transform_0, window_bounds = array<i64: 64, 256>}, {pipeline_mode = #tpu.pipeline_mode<synchronous>, transform_indices = @transform_1, window_bounds = array<i64: 256, 768>}, {pipeline_mode = #tpu.pipeline_mode<synchronous>, transform_indices = @transform_2, window_bounds = array<i64: 1, 768>}, {pipeline_mode = #tpu.pipeline_mode<synchronous>, transform_indices = @transform_3, window_bounds = array<i64: 256, 256>}, {pipeline_mode = #tpu.pipeline_mode<synchronous>, transform_indices = @transform_4, window_bounds = array<i64: 1, 256>}, {transform_indices = @transform_5, window_bounds = array<i64: 64, 256>}]} {
    %c0 = arith.constant 0 : index
    %c0_0 = arith.constant 0 : index
    %0 = vector.load %arg1[%c0, %c0_0] : memref<64x256xf32, #tpu.memory_space<vmem>>, vector<64x256xf32>
    %1 = arith.truncf %0 : vector<64x256xf32> to vector<64x256xbf16>
    %c0_1 = arith.constant 0 : index
    %c0_2 = arith.constant 0 : index
    %2 = vector.load %arg2[%c0_1, %c0_2] : memref<256x768xbf16, #tpu.memory_space<vmem>>, vector<256x768xbf16>
    %cst = arith.constant dense<0.000000e+00> : vector<64x768xf32>
    %3 = tpu.matmul %1, %2, %cst {dimension_numbers = #tpu.dot_dimension_numbers<[1], [0], [0], [1], [0, 0, 1, 1], [], []>} : vector<64x256xbf16>, vector<256x768xbf16>, vector<64x768xf32> -> vector<64x768xf32>
    %c0_3 = arith.constant 0 : index
    %c0_4 = arith.constant 0 : index
    %4 = vector.load %arg3[%c0_3, %c0_4] : memref<1x768xf32, #tpu.memory_space<vmem>>, vector<1x768xf32>
    %5 = vector.broadcast %4 : vector<1x768xf32> to vector<64x768xf32>
    %6 = arith.addf %3, %5 : vector<64x768xf32>
    %7 = arith.truncf %6 : vector<64x768xf32> to vector<64x768xbf16>
    %8 = vector.extract_strided_slice %7 {offsets = [0, 0], sizes = [64, 256], strides = [1, 1]} : vector<64x768xbf16> to vector<64x256xbf16>
    %9 = vector.shape_cast %8 : vector<64x256xbf16> to vector<4x16x256xbf16>
    %10 = vector.extract_strided_slice %7 {offsets = [0, 256], sizes = [64, 256], strides = [1, 1]} : vector<64x768xbf16> to vector<64x256xbf16>
    %11 = vector.shape_cast %10 : vector<64x256xbf16> to vector<4x16x256xbf16>
    %12 = vector.extract_strided_slice %7 {offsets = [0, 512], sizes = [64, 256], strides = [1, 1]} : vector<64x768xbf16> to vector<64x256xbf16>
    %13 = vector.shape_cast %12 : vector<64x256xbf16> to vector<4x16x256xbf16>
    %14 = vector.extract_strided_slice %9 {offsets = [0, 0, 0], sizes = [4, 16, 128], strides = [1, 1, 1]} : vector<4x16x256xbf16> to vector<4x16x128xbf16>
    %15 = vector.extract_strided_slice %11 {offsets = [0, 0, 0], sizes = [4, 16, 128], strides = [1, 1, 1]} : vector<4x16x256xbf16> to vector<4x16x128xbf16>
    %16 = vector.extract_strided_slice %13 {offsets = [0, 0, 0], sizes = [4, 16, 128], strides = [1, 1, 1]} : vector<4x16x256xbf16> to vector<4x16x128xbf16>
    "tpu.trace_start"() <{level = 10 : i32, message = "bqd,bkd->bqk"}> : () -> ()
    %cst_5 = arith.constant dense<0.000000e+00> : vector<4x16x16xf32>
    %17 = tpu.matmul %14, %15, %cst_5 {dimension_numbers = #tpu.dot_dimension_numbers<[2], [2], [1], [1], [0, 0, 0, 1, 1, 1], [0], [0]>} : vector<4x16x128xbf16>, vector<4x16x128xbf16>, vector<4x16x16xf32> -> vector<4x16x16xf32>
    "tpu.trace_stop"() : () -> ()
    %cst_6 = arith.constant dense<0xFF800000> : vector<4x16xf32>
    %18 = vector.multi_reduction <maximumf>, %17, %cst_6 [2] : vector<4x16x16xf32> to vector<4x16xf32>
    %19 = vector.shape_cast %18 : vector<4x16xf32> to vector<4x16x1xf32>
    %20 = vector.broadcast %19 : vector<4x16x1xf32> to vector<4x16x16xf32>
    %21 = arith.subf %17, %20 : vector<4x16x16xf32>
    %22 = math.exp %21 : vector<4x16x16xf32>
    %cst_7 = arith.constant dense<0.000000e+00> : vector<4x16xf32>
    %23 = vector.multi_reduction <add>, %22, %cst_7 [2] : vector<4x16x16xf32> to vector<4x16xf32>
    %24 = vector.shape_cast %23 : vector<4x16xf32> to vector<4x16x1xf32>
    %25 = tpu.reciprocal %24 {approx = true} : vector<4x16x1xf32> -> vector<4x16x1xf32>
    %26 = vector.broadcast %25 : vector<4x16x1xf32> to vector<4x16x16xf32>
    %27 = arith.mulf %22, %26 : vector<4x16x16xf32>
    %28 = arith.truncf %27 : vector<4x16x16xf32> to vector<4x16x16xbf16>
    "tpu.trace_start"() <{level = 10 : i32, message = "bqk,bkd->bqd"}> : () -> ()
    %cst_8 = arith.constant dense<0.000000e+00> : vector<4x16x128xf32>
    %29 = tpu.matmul %28, %16, %cst_8 {dimension_numbers = #tpu.dot_dimension_numbers<[2], [1], [1], [2], [0, 0, 0, 1, 1, 2], [0], [0]>} : vector<4x16x16xbf16>, vector<4x16x128xbf16>, vector<4x16x128xf32> -> vector<4x16x128xf32>
    "tpu.trace_stop"() : () -> ()
    %30 = vector.extract_strided_slice %9 {offsets = [0, 0, 128], sizes = [4, 16, 128], strides = [1, 1, 1]} : vector<4x16x256xbf16> to vector<4x16x128xbf16>
    %31 = vector.extract_strided_slice %11 {offsets = [0, 0, 128], sizes = [4, 16, 128], strides = [1, 1, 1]} : vector<4x16x256xbf16> to vector<4x16x128xbf16>
    %32 = vector.extract_strided_slice %13 {offsets = [0, 0, 128], sizes = [4, 16, 128], strides = [1, 1, 1]} : vector<4x16x256xbf16> to vector<4x16x128xbf16>
    "tpu.trace_start"() <{level = 10 : i32, message = "bqd,bkd->bqk"}> : () -> ()
    %cst_9 = arith.constant dense<0.000000e+00> : vector<4x16x16xf32>
    %33 = tpu.matmul %30, %31, %cst_9 {dimension_numbers = #tpu.dot_dimension_numbers<[2], [2], [1], [1], [0, 0, 0, 1, 1, 1], [0], [0]>} : vector<4x16x128xbf16>, vector<4x16x128xbf16>, vector<4x16x16xf32> -> vector<4x16x16xf32>
    "tpu.trace_stop"() : () -> ()
    %cst_10 = arith.constant dense<0xFF800000> : vector<4x16xf32>
    %34 = vector.multi_reduction <maximumf>, %33, %cst_10 [2] : vector<4x16x16xf32> to vector<4x16xf32>
    %35 = vector.shape_cast %34 : vector<4x16xf32> to vector<4x16x1xf32>
    %36 = vector.broadcast %35 : vector<4x16x1xf32> to vector<4x16x16xf32>
    %37 = arith.subf %33, %36 : vector<4x16x16xf32>
    %38 = math.exp %37 : vector<4x16x16xf32>
    %cst_11 = arith.constant dense<0.000000e+00> : vector<4x16xf32>
    %39 = vector.multi_reduction <add>, %38, %cst_11 [2] : vector<4x16x16xf32> to vector<4x16xf32>
    %40 = vector.shape_cast %39 : vector<4x16xf32> to vector<4x16x1xf32>
    %41 = tpu.reciprocal %40 {approx = true} : vector<4x16x1xf32> -> vector<4x16x1xf32>
    %42 = vector.broadcast %41 : vector<4x16x1xf32> to vector<4x16x16xf32>
    %43 = arith.mulf %38, %42 : vector<4x16x16xf32>
    %44 = arith.truncf %43 : vector<4x16x16xf32> to vector<4x16x16xbf16>
    "tpu.trace_start"() <{level = 10 : i32, message = "bqk,bkd->bqd"}> : () -> ()
    %cst_12 = arith.constant dense<0.000000e+00> : vector<4x16x128xf32>
    %45 = tpu.matmul %44, %32, %cst_12 {dimension_numbers = #tpu.dot_dimension_numbers<[2], [1], [1], [2], [0, 0, 0, 1, 1, 2], [0], [0]>} : vector<4x16x16xbf16>, vector<4x16x128xbf16>, vector<4x16x128xf32> -> vector<4x16x128xf32>
    "tpu.trace_stop"() : () -> ()
    %46 = tpu.concatenate %29, %45 in 2 : vector<4x16x128xf32>, vector<4x16x128xf32> -> vector<4x16x256xf32>
    %47 = vector.shape_cast %46 : vector<4x16x256xf32> to vector<64x256xf32>
    %48 = arith.truncf %47 : vector<64x256xf32> to vector<64x256xbf16>
    %c0_13 = arith.constant 0 : index
    %c0_14 = arith.constant 0 : index
    %49 = vector.load %arg4[%c0_13, %c0_14] : memref<256x256xbf16, #tpu.memory_space<vmem>>, vector<256x256xbf16>
    %cst_15 = arith.constant dense<0.000000e+00> : vector<64x256xf32>
    %50 = tpu.matmul %48, %49, %cst_15 {dimension_numbers = #tpu.dot_dimension_numbers<[1], [0], [0], [1], [0, 0, 1, 1], [], []>} : vector<64x256xbf16>, vector<256x256xbf16>, vector<64x256xf32> -> vector<64x256xf32>
    %c0_16 = arith.constant 0 : index
    %c0_17 = arith.constant 0 : index
    %51 = vector.load %arg5[%c0_16, %c0_17] : memref<1x256xf32, #tpu.memory_space<vmem>>, vector<1x256xf32>
    %52 = vector.broadcast %51 : vector<1x256xf32> to vector<64x256xf32>
    %53 = arith.addf %50, %52 : vector<64x256xf32>
    %c0_18 = arith.constant 0 : index
    %c0_19 = arith.constant 0 : index
    %54 = vector.load %arg6[%c0_18, %c0_19] : memref<64x256xf32, #tpu.memory_space<vmem>>, vector<64x256xf32>
    tpu.vector_store %arg6[%c0_18, %c0_19], %53 {strides = array<i32>} : memref<64x256xf32, #tpu.memory_space<vmem>>, vector<64x256xf32>,
    return
  }
  func.func @transform_0(%arg0: i32) -> (i32, i32) {
    %c0_i32 = arith.constant 0 : i32
    %c0_i32_0 = arith.constant 0 : i32
    return %arg0, %c0_i32 : i32, i32
  }
  func.func @transform_1(%arg0: i32) -> (i32, i32) {
    %c0_i32 = arith.constant 0 : i32
    %c0_i32_0 = arith.constant 0 : i32
    %c0_i32_1 = arith.constant 0 : i32
    return %c0_i32, %c0_i32_0 : i32, i32
  }
  func.func @transform_2(%arg0: i32) -> (i32, i32) {
    %c0_i32 = arith.constant 0 : i32
    %c0_i32_0 = arith.constant 0 : i32
    %c0_i32_1 = arith.constant 0 : i32
    return %c0_i32, %c0_i32_0 : i32, i32
  }
  func.func @transform_3(%arg0: i32) -> (i32, i32) {
    %c0_i32 = arith.constant 0 : i32
    %c0_i32_0 = arith.constant 0 : i32
    %c0_i32_1 = arith.constant 0 : i32
    return %c0_i32, %c0_i32_0 : i32, i32
  }
  func.func @transform_4(%arg0: i32) -> (i32, i32) {
    %c0_i32 = arith.constant 0 : i32
    %c0_i32_0 = arith.constant 0 : i32
    %c0_i32_1 = arith.constant 0 : i32
    return %c0_i32, %c0_i32_0 : i32, i32
  }
  func.func @transform_5(%arg0: i32) -> (i32, i32) {
    %c0_i32 = arith.constant 0 : i32
    %c0_i32_0 = arith.constant 0 : i32
    return %arg0, %c0_i32 : i32, i32
  }
}

module attributes {stable_mosaic.version = 11 : i64} {
  func.func @_mha_kernel(%arg0: i32, %arg1: memref<64x256xf32, #tpu.memory_space<vmem>>, %arg2: memref<256x768xbf16, #tpu.memory_space<vmem>>, %arg3: memref<1x768xf32, #tpu.memory_space<vmem>>, %arg4: memref<256x256xbf16, #tpu.memory_space<vmem>>, %arg5: memref<1x256xf32, #tpu.memory_space<vmem>>, %arg6: memref<64x256xf32, #tpu.memory_space<vmem>>) attributes {dimension_semantics = [#tpu.dimension_semantics<parallel>], iteration_bounds = array<i64: 1>, scalar_prefetch = 0 : i64, scratch_operands = 0 : i64, tpu.core_type = #tpu.core_type<tc>, window_params = [{transform_indices = @transform_0, window_bounds = array<i64: 64, 256>}, {pipeline_mode = #tpu.pipeline_mode<synchronous>, transform_indices = @transform_1, window_bounds = array<i64: 256, 768>}, {pipeline_mode = #tpu.pipeline_mode<synchronous>, transform_indices = @transform_2, window_bounds = array<i64: 1, 768>}, {pipeline_mode = #tpu.pipeline_mode<synchronous>, transform_indices = @transform_3, window_bounds = array<i64: 256, 256>}, {pipeline_mode = #tpu.pipeline_mode<synchronous>, transform_indices = @transform_4, window_bounds = array<i64: 1, 256>}, {transform_indices = @transform_5, window_bounds = array<i64: 64, 256>}]} {
    %c0 = arith.constant 0 : index
    %c0_0 = arith.constant 0 : index
    %0 = vector.load %arg1[%c0, %c0_0] : memref<64x256xf32, #tpu.memory_space<vmem>>, vector<64x256xf32>
    %1 = arith.truncf %0 : vector<64x256xf32> to vector<64x256xbf16>
    %c0_1 = arith.constant 0 : index
    %c0_2 = arith.constant 0 : index
    %2 = vector.load %arg2[%c0_1, %c0_2] : memref<256x768xbf16, #tpu.memory_space<vmem>>, vector<256x768xbf16>
    %cst = arith.constant dense<0.000000e+00> : vector<64x768xf32>
    %3 = tpu.matmul %1, %2, %cst {dimension_numbers = #tpu.dot_dimension_numbers<[1], [0], [0], [1], [0, 0, 1, 1], [], []>} : vector<64x256xbf16>, vector<256x768xbf16>, vector<64x768xf32> -> vector<64x768xf32>
    %c0_3 = arith.constant 0 : index
    %c0_4 = arith.constant 0 : index
    %4 = vector.load %arg3[%c0_3, %c0_4] : memref<1x768xf32, #tpu.memory_space<vmem>>, vector<1x768xf32>
    %5 = vector.broadcast %4 : vector<1x768xf32> to vector<64x768xf32>
    %6 = arith.addf %3, %5 : vector<64x768xf32>
    %7 = arith.truncf %6 : vector<64x768xf32> to vector<64x768xbf16>
    %8 = vector.extract_strided_slice %7 {offsets = [0, 0], sizes = [64, 256], strides = [1, 1]} : vector<64x768xbf16> to vector<64x256xbf16>
    %9 = vector.shape_cast %8 : vector<64x256xbf16> to vector<4x16x256xbf16>
    %10 = vector.extract_strided_slice %7 {offsets = [0, 256], sizes = [64, 256], strides = [1, 1]} : vector<64x768xbf16> to vector<64x256xbf16>
    %11 = vector.shape_cast %10 : vector<64x256xbf16> to vector<4x16x256xbf16>
    %12 = vector.extract_strided_slice %7 {offsets = [0, 512], sizes = [64, 256], strides = [1, 1]} : vector<64x768xbf16> to vector<64x256xbf16>
    %13 = vector.shape_cast %12 : vector<64x256xbf16> to vector<4x16x256xbf16>
    %14 = vector.extract_strided_slice %9 {offsets = [0, 0, 0], sizes = [4, 16, 128], strides = [1, 1, 1]} : vector<4x16x256xbf16> to vector<4x16x128xbf16>
    %15 = vector.extract_strided_slice %11 {offsets = [0, 0, 0], sizes = [4, 16, 128], strides = [1, 1, 1]} : vector<4x16x256xbf16> to vector<4x16x128xbf16>
    %16 = vector.extract_strided_slice %13 {offsets = [0, 0, 0], sizes = [4, 16, 128], strides = [1, 1, 1]} : vector<4x16x256xbf16> to vector<4x16x128xbf16>
    "tpu.trace_start"() <{level = 10 : i32, message = "bqd,bkd->bqk"}> : () -> ()
    %cst_5 = arith.constant dense<0.000000e+00> : vector<4x16x16xf32>
    %17 = tpu.matmul %14, %15, %cst_5 {dimension_numbers = #tpu.dot_dimension_numbers<[2], [2], [1], [1], [0, 0, 0, 1, 1, 1], [0], [0]>} : vector<4x16x128xbf16>, vector<4x16x128xbf16>, vector<4x16x16xf32> -> vector<4x16x16xf32>
    "tpu.trace_stop"() : () -> ()
    %cst_6 = arith.constant dense<0xFF800000> : vector<4x16xf32>
    %18 = vector.multi_reduction <maximumf>, %17, %cst_6 [2] : vector<4x16x16xf32> to vector<4x16xf32>
    %19 = vector.shape_cast %18 : vector<4x16xf32> to vector<4x16x1xf32>
    %20 = vector.broadcast %19 : vector<4x16x1xf32> to vector<4x16x16xf32>
    %21 = arith.subf %17, %20 : vector<4x16x16xf32>
    %22 = math.exp %21 : vector<4x16x16xf32>
    %cst_7 = arith.constant dense<0.000000e+00> : vector<4x16xf32>
    %23 = vector.multi_reduction <add>, %22, %cst_7 [2] : vector<4x16x16xf32> to vector<4x16xf32>
    %24 = vector.shape_cast %23 : vector<4x16xf32> to vector<4x16x1xf32>
    %25 = tpu.reciprocal %24 {approx = true} : vector<4x16x1xf32> -> vector<4x16x1xf32>
    %26 = vector.broadcast %25 : vector<4x16x1xf32> to vector<4x16x16xf32>
    %27 = arith.mulf %22, %26 : vector<4x16x16xf32>
    %28 = arith.truncf %27 : vector<4x16x16xf32> to vector<4x16x16xbf16>
    "tpu.trace_start"() <{level = 10 : i32, message = "bqk,bkd->bqd"}> : () -> ()
    %cst_8 = arith.constant dense<0.000000e+00> : vector<4x16x128xf32>
    %29 = tpu.matmul %28, %16, %cst_8 {dimension_numbers = #tpu.dot_dimension_numbers<[2], [1], [1], [2], [0, 0, 0, 1, 1, 2], [0], [0]>} : vector<4x16x16xbf16>, vector<4x16x128xbf16>, vector<4x16x128xf32> -> vector<4x16x128xf32>
    "tpu.trace_stop"() : () -> ()
    %30 = vector.extract_strided_slice %9 {offsets = [0, 0, 128], sizes = [4, 16, 128], strides = [1, 1, 1]} : vector<4x16x256xbf16> to vector<4x16x128xbf16>
    %31 = vector.extract_strided_slice %11 {offsets = [0, 0, 128], sizes = [4, 16, 128], strides = [1, 1, 1]} : vector<4x16x256xbf16> to vector<4x16x128xbf16>
    %32 = vector.extract_strided_slice %13 {offsets = [0, 0, 128], sizes = [4, 16, 128], strides = [1, 1, 1]} : vector<4x16x256xbf16> to vector<4x16x128xbf16>
    "tpu.trace_start"() <{level = 10 : i32, message = "bqd,bkd->bqk"}> : () -> ()
    %cst_9 = arith.constant dense<0.000000e+00> : vector<4x16x16xf32>
    %33 = tpu.matmul %30, %31, %cst_9 {dimension_numbers = #tpu.dot_dimension_numbers<[2], [2], [1], [1], [0, 0, 0, 1, 1, 1], [0], [0]>} : vector<4x16x128xbf16>, vector<4x16x128xbf16>, vector<4x16x16xf32> -> vector<4x16x16xf32>
    "tpu.trace_stop"() : () -> ()
    %cst_10 = arith.constant dense<0xFF800000> : vector<4x16xf32>
    %34 = vector.multi_reduction <maximumf>, %33, %cst_10 [2] : vector<4x16x16xf32> to vector<4x16xf32>
    %35 = vector.shape_cast %34 : vector<4x16xf32> to vector<4x16x1xf32>
    %36 = vector.broadcast %35 : vector<4x16x1xf32> to vector<4x16x16xf32>
    %37 = arith.subf %33, %36 : vector<4x16x16xf32>
    %38 = math.exp %37 : vector<4x16x16xf32>
    %cst_11 = arith.constant dense<0.000000e+00> : vector<4x16xf32>
    %39 = vector.multi_reduction <add>, %38, %cst_11 [2] : vector<4x16x16xf32> to vector<4x16xf32>
    %40 = vector.shape_cast %39 : vector<4x16xf32> to vector<4x16x1xf32>
    %41 = tpu.reciprocal %40 {approx = true} : vector<4x16x1xf32> -> vector<4x16x1xf32>
    %42 = vector.broadcast %41 : vector<4x16x1xf32> to vector<4x16x16xf32>
    %43 = arith.mulf %38, %42 : vector<4x16x16xf32>
    %44 = arith.truncf %43 : vector<4x16x16xf32> to vector<4x16x16xbf16>
    "tpu.trace_start"() <{level = 10 : i32, message = "bqk,bkd->bqd"}> : () -> ()
    %cst_12 = arith.constant dense<0.000000e+00> : vector<4x16x128xf32>
    %45 = tpu.matmul %44, %32, %cst_12 {dimension_numbers = #tpu.dot_dimension_numbers<[2], [1], [1], [2], [0, 0, 0, 1, 1, 2], [0], [0]>} : vector<4x16x16xbf16>, vector<4x16x128xbf16>, vector<4x16x128xf32> -> vector<4x16x128xf32>
    "tpu.trace_stop"() : () -> ()
    %46 = tpu.concatenate %29, %45 in 2 : vector<4x16x128xf32>, vector<4x16x128xf32> -> vector<4x16x256xf32>
    %47 = vector.shape_cast %46 : vector<4x16x256xf32> to vector<64x256xf32>
    %48 = arith.truncf %47 : vector<64x256xf32> to vector<64x256xbf16>
    %c0_13 = arith.constant 0 : index
    %c0_14 = arith.constant 0 : index
    %49 = vector.load %arg4[%c0_13, %c0_14] : memref<256x256xbf16, #tpu.memory_space<vmem>>, vector<256x256xbf16>
    %cst_15 = arith.constant dense<0.000000e+00> : vector<64x256xf32>
    %50 = tpu.matmul %48, %49, %cst_15 {dimension_numbers = #tpu.dot_dimension_numbers<[1], [0], [0], [1], [0, 0, 1, 1], [], []>} : vector<64x256xbf16>, vector<256x256xbf16>, vector<64x256xf32> -> vector<64x256xf32>
    %c0_16 = arith.constant 0 : index
    %c0_17 = arith.constant 0 : index
    %51 = vector.load %arg5[%c0_16, %c0_17] : memref<1x256xf32, #tpu.memory_space<vmem>>, vector<1x256xf32>
    %52 = vector.broadcast %51 : vector<1x256xf32> to vector<64x256xf32>
    %53 = arith.addf %50, %52 : vector<64x256xf32>
    %c0_18 = arith.constant 0 : index
    %c0_19 = arith.constant 0 : index
    %54 = vector.load %arg6[%c0_18, %c0_19] : memref<64x256xf32, #tpu.memory_space<vmem>>, vector<64x256xf32>
    tpu.vector_store %arg6[%c0_18, %c0_19], %53 {strides = array<i32>} : memref<64x256xf32, #tpu.memory_space<vmem>>, vector<64x256xf32>,
    return
  }
  func.func @transform_0(%arg0: i32) -> (i32, i32) {
    %c0_i32 = arith.constant 0 : i32
    %c0_i32_0 = arith.constant 0 : i32
    return %arg0, %c0_i32 : i32, i32
  }
  func.func @transform_1(%arg0: i32) -> (i32, i32) {
    %c0_i32 = arith.constant 0 : i32
    %c0_i32_0 = arith.constant 0 : i32
    %c0_i32_1 = arith.constant 0 : i32
    return %c0_i32, %c0_i32_0 : i32, i32
  }
  func.func @transform_2(%arg0: i32) -> (i32, i32) {
    %c0_i32 = arith.constant 0 : i32
    %c0_i32_0 = arith.constant 0 : i32
    %c0_i32_1 = arith.constant 0 : i32
    return %c0_i32, %c0_i32_0 : i32, i32
  }
  func.func @transform_3(%arg0: i32) -> (i32, i32) {
    %c0_i32 = arith.constant 0 : i32
    %c0_i32_0 = arith.constant 0 : i32
    %c0_i32_1 = arith.constant 0 : i32
    return %c0_i32, %c0_i32_0 : i32, i32
  }
  func.func @transform_4(%arg0: i32) -> (i32, i32) {
    %c0_i32 = arith.constant 0 : i32
    %c0_i32_0 = arith.constant 0 : i32
    %c0_i32_1 = arith.constant 0 : i32
    return %c0_i32, %c0_i32_0 : i32, i32
  }
  func.func @transform_5(%arg0: i32) -> (i32, i32) {
    %c0_i32 = arith.constant 0 : i32
    %c0_i32_0 = arith.constant 0 : i32
    return %arg0, %c0_i32 : i32, i32
  }
}

</mosaic_0001>

<llo_original>
// kernel: tpu_custom_call.1
$region0: #{tpu_custom_call.1}
  #allocation0 [shape = 'u32[]', space=smem, size = 0x4, offset = 0x4, fixed_abs, tag = 'smem constant byte address 0x4 - core index']
  #allocation1 [shape = 'u32[144,128]{1,0:T(1,128)}', space=vmem, size = 0x12000, scoped, tag = 'internal scratch']
  %s0 = inlined_call_operand.hbm [shape: f32[64,256], index: 0, kind: input, shape index: {}]
  %s1 = inlined_call_operand.hbm [shape: bf16[256,768], index: 1, kind: input, shape index: {}]
  %s2 = inlined_call_operand.vmem [shape: f32[1,768], index: 2, kind: input, shape index: {}]
  %s3 = inlined_call_operand.hbm [shape: bf16[256,256], index: 3, kind: input, shape index: {}]
  %s4 = inlined_call_operand.vmem [shape: f32[1,256], index: 4, kind: input, shape index: {}]
  %s5 = inlined_call_operand.hbm [shape: f32[64,256], index: 5, kind: output, shape index: {}]
  %s6 = sld [smem:[#allocation0]]
  $region42: #{tpu_custom_call.1} parent=0
    _
  %s8 = ssub.s32 1, %s6
  %s9 = scalar_select 0, %s8, %s6
  $region1: #{tpu_custom_call.1} parent=0
    #allocation2 [shape = 'u8[65536]{0}', space=vmem, size = 0x10000, scoped, tag = 'input window, operand 0, single buffered']
    #allocation3 [shape = 's32[1]{0}', space=sflag, size = 0x4, scoped, tag = 'scoped memory for tpu_custom_call.1']
    #allocation4 [shape = 's32[1]{0}', space=sflag, size = 0x4, scoped, tag = 'scoped memory for tpu_custom_call.1']
    #allocation5 [shape = 'u8[393216]{0}', space=vmem, size = 0x60000, scoped, tag = 'input window, operand 1, single buffered']
    #allocation6 [shape = 's32[1]{0}', space=sflag, size = 0x4, scoped, tag = 'scoped memory for tpu_custom_call.1']
    #allocation7 [shape = 'u8[131072]{0}', space=vmem, size = 0x20000, scoped, tag = 'input window, operand 3, single buffered']
    #allocation8 [shape = 'u8[65536]{0}', space=vmem, size = 0x10000, scoped, tag = 'output window, operand 0, single buffered']
    %10 = vsyncpa [#allocation3], 0
    %11 = vsyncpa [#allocation6], 0
    %12 = vsyncpa [#allocation4], 0
    // Predicated region
    $region2: #{tpu_custom_call.1} parent=1 // pred_check
      _
    $region3: #{tpu_custom_call.1} parent=1 // pred_check_branch
      %14 = sbr.rel (0) target = $region5
    $region4: #{tpu_custom_call.1} parent=1 // pred_region
      %s16 = ssub.s32 2048, 2048
      %17 = vsyncadd [#allocation3], %s16
      %s18 = sshll.u32 [#allocation2], 4
      %s19 = int_to_ptr.vmem [resolvable:$true] %s18
      %24 = dma.hbm_to_vmem [thread:$0]  %s0, 2048, %s19, [#allocation3], 256, 256, 16
    $region5: #{tpu_custom_call.1} parent=1 // pred_fallthru
      _
    // Predicated region
    $region6: #{tpu_custom_call.1} parent=1 // pred_check
      _
    $region7: #{tpu_custom_call.1} parent=1 // pred_check_branch
      %26 = sbr.rel (0) target = $region9
    $region8: #{tpu_custom_call.1} parent=1 // pred_region
      %s28 = ssub.s32 12288, 12288
      %29 = vsyncadd [#allocation6], %s28
      %s30 = sshll.u32 [#allocation5], 4
      %s31 = int_to_ptr.vmem [resolvable:$true] %s30
      %36 = dma.hbm_to_vmem [thread:$0]  %s1, 12288, %s31, [#allocation6], 384, 384, 24
    $region9: #{tpu_custom_call.1} parent=1 // pred_fallthru
      _
    // Predicated region
    $region10: #{tpu_custom_call.1} parent=1 // pred_check
      _
    $region11: #{tpu_custom_call.1} parent=1 // pred_check_branch
      %38 = sbr.rel (0) target = $region13
    $region12: #{tpu_custom_call.1} parent=1 // pred_region
      _
    $region13: #{tpu_custom_call.1} parent=1 // pred_fallthru
      _
    // Predicated region
    $region14: #{tpu_custom_call.1} parent=1 // pred_check
      _
    $region15: #{tpu_custom_call.1} parent=1 // pred_check_branch
      %40 = sbr.rel (0) target = $region17
    $region16: #{tpu_custom_call.1} parent=1 // pred_region
      %s42 = ssub.s32 4096, 4096
      %43 = vsyncadd [#allocation6], %s42
      %s44 = sshll.u32 [#allocation7], 4
      %s45 = int_to_ptr.vmem [resolvable:$true] %s44
      %50 = dma.hbm_to_vmem [thread:$0]  %s3, 4096, %s45, [#allocation6], 128, 128, 8
    $region17: #{tpu_custom_call.1} parent=1 // pred_fallthru
      _
    // Predicated region
    $region18: #{tpu_custom_call.1} parent=1 // pred_check
      _
    $region19: #{tpu_custom_call.1} parent=1 // pred_check_branch
      %52 = sbr.rel (0) target = $region21
    $region20: #{tpu_custom_call.1} parent=1 // pred_region
      _
    $region21: #{tpu_custom_call.1} parent=1 // pred_fallthru
      _
    // Predicated region
    $region22: #{tpu_custom_call.1} parent=1 // pred_check
      _
    $region23: #{tpu_custom_call.1} parent=1 // pred_check_branch
      %54 = sbr.rel (0) target = $region25
    $region24: #{tpu_custom_call.1} parent=1 // pred_region
      %55 = dma.done [#allocation3], 2048
    $region25: #{tpu_custom_call.1} parent=1 // pred_fallthru
      _
    // Predicated region
    $region26: #{tpu_custom_call.1} parent=1 // pred_check
      _
    $region27: #{tpu_custom_call.1} parent=1 // pred_check_branch
      %57 = sbr.rel (0) target = $region29
    $region28: #{tpu_custom_call.1} parent=1 // pred_region
      %58 = dma.done [#allocation6], 12288
    $region29: #{tpu_custom_call.1} parent=1 // pred_fallthru
      _
    // Predicated region
    $region30: #{tpu_custom_call.1} parent=1 // pred_check
      _
    $region31: #{tpu_custom_call.1} parent=1 // pred_check_branch
      %60 = sbr.rel (0) target = $region33
    $region32: #{tpu_custom_call.1} parent=1 // pred_region
      %61 = dma.done [#allocation6], 4096
    $region33: #{tpu_custom_call.1} parent=1 // pred_fallthru
      _
    %v63 = vld [vmem:[#allocation2] sm:$0xff]
    %v64 = vld [vmem:[#allocation2 + $0x8] sm:$0xff]
    %v65 = vld [vmem:[#allocation2 + $0x10] sm:$0xff]
    %v66 = vld [vmem:[#allocation2 + $0x18] sm:$0xff]
    %v67 = vld [vmem:[#allocation2 + $0x20] sm:$0xff]
    %v68 = vld [vmem:[#allocation2 + $0x28] sm:$0xff]
    %v69 = vld [vmem:[#allocation2 + $0x30] sm:$0xff]
    %v70 = vld [vmem:[#allocation2 + $0x38] sm:$0xff]
    %v71 = vld [vmem:[#allocation2 + $0x40] sm:$0xff]
    %v72 = vld [vmem:[#allocation2 + $0x48] sm:$0xff]
    %v73 = vld [vmem:[#allocation2 + $0x50] sm:$0xff]
    %v74 = vld [vmem:[#allocation2 + $0x58] sm:$0xff]
    %v75 = vld [vmem:[#allocation2 + $0x60] sm:$0xff]
    %v76 = vld [vmem:[#allocation2 + $0x68] sm:$0xff]
    %v77 = vld [vmem:[#allocation2 + $0x70] sm:$0xff]
    %v78 = vld [vmem:[#allocation2 + $0x78] sm:$0xff]
    %v79 = vpack.c.bf16 %v65, %v63
    %v80 = vpack.c.bf16 %v66, %v64
    %v81 = vpack.c.bf16 %v69, %v67
    %v82 = vpack.c.bf16 %v70, %v68
    %v83 = vpack.c.bf16 %v73, %v71
    %v84 = vpack.c.bf16 %v74, %v72
    %v85 = vpack.c.bf16 %v77, %v75
    %v86 = vpack.c.bf16 %v78, %v76
    %v87 = vld [vmem:[#allocation5] sm:$0xff]
    %v88 = vld [vmem:[#allocation5 + $0x8] sm:$0xff]
    %v89 = vld [vmem:[#allocation5 + $0x10] sm:$0xff]
    %v90 = vld [vmem:[#allocation5 + $0x18] sm:$0xff]
    %v91 = vld [vmem:[#allocation5 + $0x20] sm:$0xff]
    %v92 = vld [vmem:[#allocation5 + $0x28] sm:$0xff]
    %v93 = vld [vmem:[#allocation5 + $0x30] sm:$0xff]
    %v94 = vld [vmem:[#allocation5 + $0x38] sm:$0xff]
    %v95 = vld [vmem:[#allocation5 + $0x40] sm:$0xff]
    %v96 = vld [vmem:[#allocation5 + $0x48] sm:$0xff]
    %v97 = vld [vmem:[#allocation5 + $0x50] sm:$0xff]
    %v98 = vld [vmem:[#allocation5 + $0x58] sm:$0xff]
    %v99 = vld [vmem:[#allocation5 + $0x60] sm:$0xff]
    %v100 = vld [vmem:[#allocation5 + $0x68] sm:$0xff]
    %v101 = vld [vmem:[#allocation5 + $0x70] sm:$0xff]
    %v102 = vld [vmem:[#allocation5 + $0x78] sm:$0xff]
    %v103 = vld [vmem:[#allocation5 + $0x80] sm:$0xff]
    %v104 = vld [vmem:[#allocation5 + $0x88] sm:$0xff]
    %v105 = vld [vmem:[#allocation5 + $0x90] sm:$0xff]
    %v106 = vld [vmem:[#allocation5 + $0x98] sm:$0xff]
    %v107 = vld [vmem:[#allocation5 + $0xa0] sm:$0xff]
    %v108 = vld [vmem:[#allocation5 + $0xa8] sm:$0xff]
    %v109 = vld [vmem:[#allocation5 + $0xb0] sm:$0xff]
    %v110 = vld [vmem:[#allocation5 + $0xb8] sm:$0xff]
    %v111 = vld [vmem:[#allocation5 + $0xc0] sm:$0xff]
    %v112 = vld [vmem:[#allocation5 + $0xc8] sm:$0xff]
    %v113 = vld [vmem:[#allocation5 + $0xd0] sm:$0xff]
    %v114 = vld [vmem:[#allocation5 + $0xd8] sm:$0xff]
    %v115 = vld [vmem:[#allocation5 + $0xe0] sm:$0xff]
    %v116 = vld [vmem:[#allocation5 + $0xe8] sm:$0xff]
    %v117 = vld [vmem:[#allocation5 + $0xf0] sm:$0xff]
    %v118 = vld [vmem:[#allocation5 + $0xf8] sm:$0xff]
    %v119 = vld [vmem:[#allocation5 + $0x100] sm:$0xff]
    %v120 = vld [vmem:[#allocation5 + $0x108] sm:$0xff]
    %v121 = vld [vmem:[#allocation5 + $0x110] sm:$0xff]
    %v122 = vld [vmem:[#allocation5 + $0x118] sm:$0xff]
    %v123 = vld [vmem:[#allocation5 + $0x120] sm:$0xff]
    %v124 = vld [vmem:[#allocation5 + $0x128] sm:$0xff]
    %v125 = vld [vmem:[#allocation5 + $0x130] sm:$0xff]
    %v126 = vld [vmem:[#allocation5 + $0x138] sm:$0xff]
    %v127 = vld [vmem:[#allocation5 + $0x140] sm:$0xff]
    %v128 = vld [vmem:[#allocation5 + $0x148] sm:$0xff]
    %v129 = vld [vmem:[#allocation5 + $0x150] sm:$0xff]
    %v130 = vld [vmem:[#allocation5 + $0x158] sm:$0xff]
    %v131 = vld [vmem:[#allocation5 + $0x160] sm:$0xff]
    %v132 = vld [vmem:[#allocation5 + $0x168] sm:$0xff]
    %v133 = vld [vmem:[#allocation5 + $0x170] sm:$0xff]
    %v134 = vld [vmem:[#allocation5 + $0x178] sm:$0xff]
    %v135 = vld [vmem:[#allocation5 + $0x180] sm:$0xff]
    %v136 = vld [vmem:[#allocation5 + $0x188] sm:$0xff]
    %v137 = vld [vmem:[#allocation5 + $0x190] sm:$0xff]
    %v138 = vld [vmem:[#allocation5 + $0x198] sm:$0xff]
    %v139 = vld [vmem:[#allocation5 + $0x1a0] sm:$0xff]
    %v140 = vld [vmem:[#allocation5 + $0x1a8] sm:$0xff]
    %v141 = vld [vmem:[#allocation5 + $0x1b0] sm:$0xff]
    %v142 = vld [vmem:[#allocation5 + $0x1b8] sm:$0xff]
    %v143 = vld [vmem:[#allocation5 + $0x1c0] sm:$0xff]
    %v144 = vld [vmem:[#allocation5 + $0x1c8] sm:$0xff]
    %v145 = vld [vmem:[#allocation5 + $0x1d0] sm:$0xff]
    %v146 = vld [vmem:[#allocation5 + $0x1d8] sm:$0xff]
    %v147 = vld [vmem:[#allocation5 + $0x1e0] sm:$0xff]
    %v148 = vld [vmem:[#allocation5 + $0x1e8] sm:$0xff]
    %v149 = vld [vmem:[#allocation5 + $0x1f0] sm:$0xff]
    %v150 = vld [vmem:[#allocation5 + $0x1f8] sm:$0xff]
    %v151 = vld [vmem:[#allocation5 + $0x200] sm:$0xff]
    %v152 = vld [vmem:[#allocation5 + $0x208] sm:$0xff]
    %v153 = vld [vmem:[#allocation5 + $0x210] sm:$0xff]
    %v154 = vld [vmem:[#allocation5 + $0x218] sm:$0xff]
    %v155 = vld [vmem:[#allocation5 + $0x220] sm:$0xff]
    %v156 = vld [vmem:[#allocation5 + $0x228] sm:$0xff]
    %v157 = vld [vmem:[#allocation5 + $0x230] sm:$0xff]
    %v158 = vld [vmem:[#allocation5 + $0x238] sm:$0xff]
    %v159 = vld [vmem:[#allocation5 + $0x240] sm:$0xff]
    %v160 = vld [vmem:[#allocation5 + $0x248] sm:$0xff]
    %v161 = vld [vmem:[#allocation5 + $0x250] sm:$0xff]
    %v162 = vld [vmem:[#allocation5 + $0x258] sm:$0xff]
    %v163 = vld [vmem:[#allocation5 + $0x260] sm:$0xff]
    %v164 = vld [vmem:[#allocation5 + $0x268] sm:$0xff]
    %v165 = vld [vmem:[#allocation5 + $0x270] sm:$0xff]
    %v166 = vld [vmem:[#allocation5 + $0x278] sm:$0xff]
    %v167 = vld [vmem:[#allocation5 + $0x280] sm:$0xff]
    %v168 = vld [vmem:[#allocation5 + $0x288] sm:$0xff]
    %v169 = vld [vmem:[#allocation5 + $0x290] sm:$0xff]
    %v170 = vld [vmem:[#allocation5 + $0x298] sm:$0xff]
    %v171 = vld [vmem:[#allocation5 + $0x2a0] sm:$0xff]
    %v172 = vld [vmem:[#allocation5 + $0x2a8] sm:$0xff]
    %v173 = vld [vmem:[#allocation5 + $0x2b0] sm:$0xff]
    %v174 = vld [vmem:[#allocation5 + $0x2b8] sm:$0xff]
    %v175 = vld [vmem:[#allocation5 + $0x2c0] sm:$0xff]
    %v176 = vld [vmem:[#allocation5 + $0x2c8] sm:$0xff]
    %v177 = vld [vmem:[#allocation5 + $0x2d0] sm:$0xff]
    %v178 = vld [vmem:[#allocation5 + $0x2d8] sm:$0xff]
    %v179 = vld [vmem:[#allocation5 + $0x2e0] sm:$0xff]
    %v180 = vld [vmem:[#allocation5 + $0x2e8] sm:$0xff]
    %v181 = vld [vmem:[#allocation5 + $0x2f0] sm:$0xff]
    %v182 = vld [vmem:[#allocation5 + $0x2f8] sm:$0xff]
    %v183 = vld [vmem:[%s2] sm:$0x3f]
    %v185 = vlaneseq
    %v186 = vshrl.u32 %v185, 7
    %v187 = vsub.s32 0, %v186
    %v188 = vrot.slane %v183, %v187
    %v189 = vlaneseq
    %v190 = vshrl.u32 %v189, 7
    %v191 = vsub.s32 1, %v190
    %v192 = vrot.slane %v183, %v191
    %v193 = vlaneseq
    %v194 = vshrl.u32 %v193, 7
    %v195 = vsub.s32 2, %v194
    %v196 = vrot.slane %v183, %v195
    %v197 = vlaneseq
    %v198 = vshrl.u32 %v197, 7
    %v199 = vsub.s32 3, %v198
    %v200 = vrot.slane %v183, %v199
    %v201 = vlaneseq
    %v202 = vshrl.u32 %v201, 7
    %v203 = vsub.s32 4, %v202
    %v204 = vrot.slane %v183, %v203
    %v205 = vlaneseq
    %v206 = vshrl.u32 %v205, 7
    %v207 = vsub.s32 5, %v206
    %v208 = vrot.slane %v183, %v207
    %v311 = vunpack.c.l.b16 %v87
    %v312 = vunpack.c.h.b16 %v87
    %v313 = vunpack.c.l.b16 %v88
    %v314 = vunpack.c.h.b16 %v88
    %v315 = vunpack.c.l.b16 %v89
    %v316 = vunpack.c.h.b16 %v89
    %v317 = vunpack.c.l.b16 %v90
    %v318 = vunpack.c.h.b16 %v90
    %v319 = vunpack.c.l.b16 %v91
    %v320 = vunpack.c.h.b16 %v91
    %v321 = vunpack.c.l.b16 %v92
    %v322 = vunpack.c.h.b16 %v92
    %v323 = vunpack.c.l.b16 %v93
    %v324 = vunpack.c.h.b16 %v93
    %v325 = vunpack.c.l.b16 %v94
    %v326 = vunpack.c.h.b16 %v94
    %v327 = vunpack.c.l.b16 %v95
    %v328 = vunpack.c.h.b16 %v95
    %v329 = vunpack.c.l.b16 %v96
    %v330 = vunpack.c.h.b16 %v96
    %v331 = vunpack.c.l.b16 %v97
    %v332 = vunpack.c.h.b16 %v97
    %v333 = vunpack.c.l.b16 %v98
    %v334 = vunpack.c.h.b16 %v98
    %v335 = vunpack.c.l.b16 %v99
    %v336 = vunpack.c.h.b16 %v99
    %v337 = vunpack.c.l.b16 %v100
    %v338 = vunpack.c.h.b16 %v100
    %v339 = vunpack.c.l.b16 %v101
    %v340 = vunpack.c.h.b16 %v101
    %v341 = vunpack.c.l.b16 %v102
    %v342 = vunpack.c.h.b16 %v102
    %v343 = vunpack.c.l.b16 %v103
    %v344 = vunpack.c.h.b16 %v103
    %v345 = vunpack.c.l.b16 %v104
    %v346 = vunpack.c.h.b16 %v104
    %v347 = vunpack.c.l.b16 %v105
    %v348 = vunpack.c.h.b16 %v105
    %v349 = vunpack.c.l.b16 %v106
    %v350 = vunpack.c.h.b16 %v106
    %v351 = vunpack.c.l.b16 %v107
    %v352 = vunpack.c.h.b16 %v107
    %v353 = vunpack.c.l.b16 %v108
    %v354 = vunpack.c.h.b16 %v108
    %v355 = vunpack.c.l.b16 %v109
    %v356 = vunpack.c.h.b16 %v109
    %v357 = vunpack.c.l.b16 %v110
    %v358 = vunpack.c.h.b16 %v110
    %v359 = vunpack.c.l.b16 %v111
    %v360 = vunpack.c.h.b16 %v111
    %v361 = vunpack.c.l.b16 %v112
    %v362 = vunpack.c.h.b16 %v112
    %v363 = vunpack.c.l.b16 %v113
    %v364 = vunpack.c.h.b16 %v113
    %v365 = vunpack.c.l.b16 %v114
    %v366 = vunpack.c.h.b16 %v114
    %v367 = vunpack.c.l.b16 %v115
    %v368 = vunpack.c.h.b16 %v115
    %v369 = vunpack.c.l.b16 %v116
    %v370 = vunpack.c.h.b16 %v116
    %v371 = vunpack.c.l.b16 %v117
    %v372 = vunpack.c.h.b16 %v117
    %v373 = vunpack.c.l.b16 %v118
    %v374 = vunpack.c.h.b16 %v118
    %v375 = vunpack.c.l.b16 %v119
    %v376 = vunpack.c.h.b16 %v119
    %v377 = vunpack.c.l.b16 %v120
    %v378 = vunpack.c.h.b16 %v120
    %v379 = vunpack.c.l.b16 %v121
    %v380 = vunpack.c.h.b16 %v121
    %v381 = vunpack.c.l.b16 %v122
    %v382 = vunpack.c.h.b16 %v122
    %v383 = vunpack.c.l.b16 %v123
    %v384 = vunpack.c.h.b16 %v123
    %v385 = vunpack.c.l.b16 %v124
    %v386 = vunpack.c.h.b16 %v124
    %v387 = vunpack.c.l.b16 %v125
    %v388 = vunpack.c.h.b16 %v125
    %v389 = vunpack.c.l.b16 %v126
    %v390 = vunpack.c.h.b16 %v126
    %v391 = vunpack.c.l.b16 %v127
    %v392 = vunpack.c.h.b16 %v127
    %v393 = vunpack.c.l.b16 %v128
    %v394 = vunpack.c.h.b16 %v128
    %v395 = vunpack.c.l.b16 %v129
    %v396 = vunpack.c.h.b16 %v129
    %v397 = vunpack.c.l.b16 %v130
    %v398 = vunpack.c.h.b16 %v130
    %v399 = vunpack.c.l.b16 %v131
    %v400 = vunpack.c.h.b16 %v131
    %v401 = vunpack.c.l.b16 %v132
    %v402 = vunpack.c.h.b16 %v132
    %v403 = vunpack.c.l.b16 %v133
    %v404 = vunpack.c.h.b16 %v133
    %v405 = vunpack.c.l.b16 %v134
    %v406 = vunpack.c.h.b16 %v134
    %v407 = vunpack.c.l.b16 %v135
    %v408 = vunpack.c.h.b16 %v135
    %v409 = vunpack.c.l.b16 %v136
    %v410 = vunpack.c.h.b16 %v136
    %v411 = vunpack.c.l.b16 %v137
    %v412 = vunpack.c.h.b16 %v137
    %v413 = vunpack.c.l.b16 %v138
    %v414 = vunpack.c.h.b16 %v138
    %v415 = vunpack.c.l.b16 %v139
    %v416 = vunpack.c.h.b16 %v139
    %v417 = vunpack.c.l.b16 %v140
    %v418 = vunpack.c.h.b16 %v140
    %v419 = vunpack.c.l.b16 %v141
    %v420 = vunpack.c.h.b16 %v141
    %v421 = vunpack.c.l.b16 %v142
    %v422 = vunpack.c.h.b16 %v142
    %v423 = vunpack.c.l.b16 %v143
    %v424 = vunpack.c.h.b16 %v143
    %v425 = vunpack.c.l.b16 %v144
    %v426 = vunpack.c.h.b16 %v144
    %v427 = vunpack.c.l.b16 %v145
    %v428 = vunpack.c.h.b16 %v145
    %v429 = vunpack.c.l.b16 %v146
    %v430 = vunpack.c.h.b16 %v146
    %v431 = vunpack.c.l.b16 %v147
    %v432 = vunpack.c.h.b16 %v147
    %v433 = vunpack.c.l.b16 %v148
    %v434 = vunpack.c.h.b16 %v148
    %v435 = vunpack.c.l.b16 %v149
    %v436 = vunpack.c.h.b16 %v149
    %v437 = vunpack.c.l.b16 %v150
    %v438 = vunpack.c.h.b16 %v150
    %v439 = vunpack.c.l.b16 %v151
    %v440 = vunpack.c.h.b16 %v151
    %v441 = vunpack.c.l.b16 %v152
    %v442 = vunpack.c.h.b16 %v152
    %v443 = vunpack.c.l.b16 %v153
    %v444 = vunpack.c.h.b16 %v153
    %v445 = vunpack.c.l.b16 %v154
    %v446 = vunpack.c.h.b16 %v154
    %v447 = vunpack.c.l.b16 %v155
    %v448 = vunpack.c.h.b16 %v155
    %v449 = vunpack.c.l.b16 %v156
    %v450 = vunpack.c.h.b16 %v156
    %v451 = vunpack.c.l.b16 %v157
    %v452 = vunpack.c.h.b16 %v157
    %v453 = vunpack.c.l.b16 %v158
    %v454 = vunpack.c.h.b16 %v158
    %v455 = vunpack.c.l.b16 %v159
    %v456 = vunpack.c.h.b16 %v159
    %v457 = vunpack.c.l.b16 %v160
    %v458 = vunpack.c.h.b16 %v160
    %v459 = vunpack.c.l.b16 %v161
    %v460 = vunpack.c.h.b16 %v161
    %v461 = vunpack.c.l.b16 %v162
    %v462 = vunpack.c.h.b16 %v162
    %v463 = vunpack.c.l.b16 %v163
    %v464 = vunpack.c.h.b16 %v163
    %v465 = vunpack.c.l.b16 %v164
    %v466 = vunpack.c.h.b16 %v164
    %v467 = vunpack.c.l.b16 %v165
    %v468 = vunpack.c.h.b16 %v165
    %v469 = vunpack.c.l.b16 %v166
    %v470 = vunpack.c.h.b16 %v166
    %v471 = vunpack.c.l.b16 %v167
    %v472 = vunpack.c.h.b16 %v167
    %v473 = vunpack.c.l.b16 %v168
    %v474 = vunpack.c.h.b16 %v168
    %v475 = vunpack.c.l.b16 %v169
    %v476 = vunpack.c.h.b16 %v169
    %v477 = vunpack.c.l.b16 %v170
    %v478 = vunpack.c.h.b16 %v170
    %v479 = vunpack.c.l.b16 %v171
    %v480 = vunpack.c.h.b16 %v171
    %v481 = vunpack.c.l.b16 %v172
    %v482 = vunpack.c.h.b16 %v172
    %v483 = vunpack.c.l.b16 %v173
    %v484 = vunpack.c.h.b16 %v173
    %v485 = vunpack.c.l.b16 %v174
    %v486 = vunpack.c.h.b16 %v174
    %v487 = vunpack.c.l.b16 %v175
    %v488 = vunpack.c.h.b16 %v175
    %v489 = vunpack.c.l.b16 %v176
    %v490 = vunpack.c.h.b16 %v176
    %v491 = vunpack.c.l.b16 %v177
    %v492 = vunpack.c.h.b16 %v177
    %v493 = vunpack.c.l.b16 %v178
    %v494 = vunpack.c.h.b16 %v178
    %v495 = vunpack.c.l.b16 %v179
    %v496 = vunpack.c.h.b16 %v179
    %v497 = vunpack.c.l.b16 %v180
    %v498 = vunpack.c.h.b16 %v180
    %v499 = vunpack.c.l.b16 %v181
    %v500 = vunpack.c.h.b16 %v181
    %v501 = vunpack.c.l.b16 %v182
    %v502 = vunpack.c.h.b16 %v182
    %v503 = vpack.c.b16 %v317, %v311
    %v504 = vpack.c.b16 %v318, %v312
    %v505 = vpack.c.b16 %v319, %v313
    %v506 = vpack.c.b16 %v320, %v314
    %v507 = vpack.c.b16 %v321, %v315
    %v508 = vpack.c.b16 %v322, %v316
    %v509 = vpack.c.b16 %v329, %v323
    %v510 = vpack.c.b16 %v330, %v324
    %v511 = vpack.c.b16 %v331, %v325
    %v512 = vpack.c.b16 %v332, %v326
    %v513 = vpack.c.b16 %v333, %v327
    %v514 = vpack.c.b16 %v334, %v328
    %v515 = vpack.c.b16 %v341, %v335
    %v516 = vpack.c.b16 %v342, %v336
    %v517 = vpack.c.b16 %v343, %v337
    %v518 = vpack.c.b16 %v344, %v338
    %v519 = vpack.c.b16 %v345, %v339
    %v520 = vpack.c.b16 %v346, %v340
    %v521 = vpack.c.b16 %v353, %v347
    %v522 = vpack.c.b16 %v354, %v348
    %v523 = vpack.c.b16 %v355, %v349
    %v524 = vpack.c.b16 %v356, %v350
    %v525 = vpack.c.b16 %v357, %v351
    %v526 = vpack.c.b16 %v358, %v352
    %v527 = vpack.c.b16 %v365, %v359
    %v528 = vpack.c.b16 %v366, %v360
    %v529 = vpack.c.b16 %v367, %v361
    %v530 = vpack.c.b16 %v368, %v362
    %v531 = vpack.c.b16 %v369, %v363
    %v532 = vpack.c.b16 %v370, %v364
    %v533 = vpack.c.b16 %v377, %v371
    %v534 = vpack.c.b16 %v378, %v372
    %v535 = vpack.c.b16 %v379, %v373
    %v536 = vpack.c.b16 %v380, %v374
    %v537 = vpack.c.b16 %v381, %v375
    %v538 = vpack.c.b16 %v382, %v376
    %v539 = vpack.c.b16 %v389, %v383
    %v540 = vpack.c.b16 %v390, %v384
    %v541 = vpack.c.b16 %v391, %v385
    %v542 = vpack.c.b16 %v392, %v386
    %v543 = vpack.c.b16 %v393, %v387
    %v544 = vpack.c.b16 %v394, %v388
    %v545 = vpack.c.b16 %v401, %v395
    %v546 = vpack.c.b16 %v402, %v396
    %v547 = vpack.c.b16 %v403, %v397
    %v548 = vpack.c.b16 %v404, %v398
    %v549 = vpack.c.b16 %v405, %v399
    %v550 = vpack.c.b16 %v406, %v400
    %v551 = vpack.c.b16 %v413, %v407
    %v552 = vpack.c.b16 %v414, %v408
    %v553 = vpack.c.b16 %v415, %v409
    %v554 = vpack.c.b16 %v416, %v410
    %v555 = vpack.c.b16 %v417, %v411
    %v556 = vpack.c.b16 %v418, %v412
    %v557 = vpack.c.b16 %v425, %v419
    %v558 = vpack.c.b16 %v426, %v420
    %v559 = vpack.c.b16 %v427, %v421
    %v560 = vpack.c.b16 %v428, %v422
    %v561 = vpack.c.b16 %v429, %v423
    %v562 = vpack.c.b16 %v430, %v424
    %v563 = vpack.c.b16 %v437, %v431
    %v564 = vpack.c.b16 %v438, %v432
    %v565 = vpack.c.b16 %v439, %v433
    %v566 = vpack.c.b16 %v440, %v434
    %v567 = vpack.c.b16 %v441, %v435
    %v568 = vpack.c.b16 %v442, %v436
    %v569 = vpack.c.b16 %v449, %v443
    %v570 = vpack.c.b16 %v450, %v444
    %v571 = vpack.c.b16 %v451, %v445
    %v572 = vpack.c.b16 %v452, %v446
    %v573 = vpack.c.b16 %v453, %v447
    %v574 = vpack.c.b16 %v454, %v448
    %v575 = vpack.c.b16 %v461, %v455
    %v576 = vpack.c.b16 %v462, %v456
    %v577 = vpack.c.b16 %v463, %v457
    %v578 = vpack.c.b16 %v464, %v458
    %v579 = vpack.c.b16 %v465, %v459
    %v580 = vpack.c.b16 %v466, %v460
    %v581 = vpack.c.b16 %v473, %v467
    %v582 = vpack.c.b16 %v474, %v468
    %v583 = vpack.c.b16 %v475, %v469
    %v584 = vpack.c.b16 %v476, %v470
    %v585 = vpack.c.b16 %v477, %v471
    %v586 = vpack.c.b16 %v478, %v472
    %v587 = vpack.c.b16 %v485, %v479
    %v588 = vpack.c.b16 %v486, %v480
    %v589 = vpack.c.b16 %v487, %v481
    %v590 = vpack.c.b16 %v488, %v482
    %v591 = vpack.c.b16 %v489, %v483
    %v592 = vpack.c.b16 %v490, %v484
    %v593 = vpack.c.b16 %v497, %v491
    %v594 = vpack.c.b16 %v498, %v492
    %v595 = vpack.c.b16 %v499, %v493
    %v596 = vpack.c.b16 %v500, %v494
    %v597 = vpack.c.b16 %v501, %v495
    %v598 = vpack.c.b16 %v502, %v496
    %695 = vmatprep.subr.bf16.mxu0 %v504
    %696 = vmatpush1.bf16.msra.mxu0 %v503
    %697 = vmatprep.subr.bf16.mxu0 %v510
    %698 = vmatpush1.bf16.msra.mxu0 %v509
    %699 = vmatprep.subr.bf16.mxu0 %v516
    %700 = vmatpush1.bf16.msra.mxu0 %v515
    %701 = vmatprep.subr.bf16.mxu0 %v522
    %702 = vmatpush1.bf16.msra.mxu0 %v521
    %703 = vmatprep.subr.bf16.mxu0 %v528
    %704 = vmatpush1.bf16.msra.mxu0 %v527
    %705 = vmatprep.subr.bf16.mxu0 %v534
    %706 = vmatpush1.bf16.msra.mxu0 %v533
    %707 = vmatprep.subr.bf16.mxu0 %v540
    %708 = vmatpush1.bf16.msra.mxu0 %v539
    %709 = vmatprep.subr.bf16.mxu0 %v546
    %710 = vmatpush1.bf16.msra.mxu0 %v545
    %711 = vmatprep.subr.bf16.mxu0 %v552
    %712 = vmatpush1.bf16.msra.mxu0 %v551
    %713 = vmatprep.subr.bf16.mxu0 %v558
    %714 = vmatpush1.bf16.msra.mxu0 %v557
    %715 = vmatprep.subr.bf16.mxu0 %v564
    %716 = vmatpush1.bf16.msra.mxu0 %v563
    %717 = vmatprep.subr.bf16.mxu0 %v570
    %718 = vmatpush1.bf16.msra.mxu0 %v569
    %719 = vmatprep.subr.bf16.mxu0 %v576
    %720 = vmatpush1.bf16.msra.mxu0 %v575
    %721 = vmatprep.subr.bf16.mxu0 %v582
    %722 = vmatpush1.bf16.msra.mxu0 %v581
    %723 = vmatprep.subr.bf16.mxu0 %v588
    %724 = vmatpush1.bf16.msra.mxu0 %v587
    %725 = vmatprep.subr.bf16.mxu0 %v594
    %726 = vmatpush1.bf16.msra.mxu0 %v593
    %727 = vmatprep.mubr.bf16.mxu0 %v80
    %728 = vmatmul.mubr.bf16.gmra.mrb[0].mxu0 %v79
    %v729 = vpop.f32.mrb[0].mxu0
    %v730 = vadd.f32 %v188, %v729
    %v731 = vpop.f32.mrb[0].mxu0
    %v732 = vadd.f32 %v192, %v731
    %v733 = vpop.f32.mrb[0].mxu0
    %v734 = vadd.f32 %v188, %v733
    %v735 = vpop.f32.mrb[0].mxu0
    %v736 = vadd.f32 %v192, %v735
    %737 = vmatprep.mubr.bf16.mxu0 %v82
    %738 = vmatmul.mubr.bf16.gmra.mrb[0].mxu0 %v81
    %v739 = vpop.f32.mrb[0].mxu0
    %v740 = vadd.f32 %v188, %v739
    %v741 = vpop.f32.mrb[0].mxu0
    %v742 = vadd.f32 %v192, %v741
    %v743 = vpop.f32.mrb[0].mxu0
    %v744 = vadd.f32 %v188, %v743
    %v745 = vpop.f32.mrb[0].mxu0
    %v746 = vadd.f32 %v192, %v745
    %747 = vmatprep.mubr.bf16.mxu0 %v84
    %748 = vmatmul.mubr.bf16.gmra.mrb[0].mxu0 %v83
    %v749 = vpop.f32.mrb[0].mxu0
    %v750 = vadd.f32 %v188, %v749
    %v751 = vpop.f32.mrb[0].mxu0
    %v752 = vadd.f32 %v192, %v751
    %v753 = vpop.f32.mrb[0].mxu0
    %v754 = vadd.f32 %v188, %v753
    %v755 = vpop.f32.mrb[0].mxu0
    %v756 = vadd.f32 %v192, %v755
    %757 = vmatprep.mubr.bf16.mxu0 %v86
    %758 = vmatmul.mubr.bf16.gmra.mrb[0].mxu0 %v85
    %v759 = vpop.f32.mrb[0].mxu0
    %v760 = vadd.f32 %v188, %v759
    %v761 = vpop.f32.mrb[0].mxu0
    %v762 = vadd.f32 %v192, %v761
    %v763 = vpop.f32.mrb[0].mxu0
    %v764 = vadd.f32 %v188, %v763
    %v765 = vpop.f32.mrb[0].mxu0
    %v766 = vadd.f32 %v192, %v765
    %767 = vdwg.mxu0
    %768 = vmatprep.subr.bf16.mxu0 %v506
    %769 = vmatpush1.bf16.msra.mxu0 %v505
    %770 = vmatprep.subr.bf16.mxu0 %v512
    %771 = vmatpush1.bf16.msra.mxu0 %v511
    %772 = vmatprep.subr.bf16.mxu0 %v518
    %773 = vmatpush1.bf16.msra.mxu0 %v517
    %774 = vmatprep.subr.bf16.mxu0 %v524
    %775 = vmatpush1.bf16.msra.mxu0 %v523
    %776 = vmatprep.subr.bf16.mxu0 %v530
    %777 = vmatpush1.bf16.msra.mxu0 %v529
    %778 = vmatprep.subr.bf16.mxu0 %v536
    %779 = vmatpush1.bf16.msra.mxu0 %v535
    %780 = vmatprep.subr.bf16.mxu0 %v542
    %781 = vmatpush1.bf16.msra.mxu0 %v541
    %782 = vmatprep.subr.bf16.mxu0 %v548
    %783 = vmatpush1.bf16.msra.mxu0 %v547
    %784 = vmatprep.subr.bf16.mxu0 %v554
    %785 = vmatpush1.bf16.msra.mxu0 %v553
    %786 = vmatprep.subr.bf16.mxu0 %v560
    %787 = vmatpush1.bf16.msra.mxu0 %v559
    %788 = vmatprep.subr.bf16.mxu0 %v566
    %789 = vmatpush1.bf16.msra.mxu0 %v565
    %790 = vmatprep.subr.bf16.mxu0 %v572
    %791 = vmatpush1.bf16.msra.mxu0 %v571
    %792 = vmatprep.subr.bf16.mxu0 %v578
    %793 = vmatpush1.bf16.msra.mxu0 %v577
    %794 = vmatprep.subr.bf16.mxu0 %v584
    %795 = vmatpush1.bf16.msra.mxu0 %v583
    %796 = vmatprep.subr.bf16.mxu0 %v590
    %797 = vmatpush1.bf16.msra.mxu0 %v589
    %798 = vmatprep.subr.bf16.mxu0 %v596
    %799 = vmatpush1.bf16.msra.mxu0 %v595
    %800 = vmatprep.mubr.bf16.mxu0 %v80
    %801 = vmatmul.mubr.bf16.gmra.mrb[0].mxu0 %v79
    %v802 = vpop.f32.mrb[0].mxu0
    %v803 = vadd.f32 %v196, %v802
    %v804 = vpop.f32.mrb[0].mxu0
    %v805 = vadd.f32 %v200, %v804
    %v806 = vpop.f32.mrb[0].mxu0
    %v807 = vadd.f32 %v196, %v806
    %v808 = vpop.f32.mrb[0].mxu0
    %v809 = vadd.f32 %v200, %v808
    %810 = vmatprep.mubr.bf16.mxu0 %v82
    %811 = vmatmul.mubr.bf16.gmra.mrb[0].mxu0 %v81
    %v812 = vpop.f32.mrb[0].mxu0
    %v813 = vadd.f32 %v196, %v812
    %v814 = vpop.f32.mrb[0].mxu0
    %v815 = vadd.f32 %v200, %v814
    %v816 = vpop.f32.mrb[0].mxu0
    %v817 = vadd.f32 %v196, %v816
    %v818 = vpop.f32.mrb[0].mxu0
    %v819 = vadd.f32 %v200, %v818
    %820 = vmatprep.mubr.bf16.mxu0 %v84
    %821 = vmatmul.mubr.bf16.gmra.mrb[0].mxu0 %v83
    %v822 = vpop.f32.mrb[0].mxu0
    %v823 = vadd.f32 %v196, %v822
    %v824 = vpop.f32.mrb[0].mxu0
    %v825 = vadd.f32 %v200, %v824
    %v826 = vpop.f32.mrb[0].mxu0
    %v827 = vadd.f32 %v196, %v826
    %v828 = vpop.f32.mrb[0].mxu0
    %v829 = vadd.f32 %v200, %v828
    %830 = vmatprep.mubr.bf16.mxu0 %v86
    %831 = vmatmul.mubr.bf16.gmra.mrb[0].mxu0 %v85
    %v832 = vpop.f32.mrb[0].mxu0
    %v833 = vadd.f32 %v196, %v832
    %v834 = vpop.f32.mrb[0].mxu0
    %v835 = vadd.f32 %v200, %v834
    %v836 = vpop.f32.mrb[0].mxu0
    %v837 = vadd.f32 %v196, %v836
    %v838 = vpop.f32.mrb[0].mxu0
    %v839 = vadd.f32 %v200, %v838
    %840 = vdwg.mxu0
    %841 = vmatprep.subr.bf16.mxu0 %v508
    %842 = vmatpush1.bf16.msra.mxu0 %v507
    %843 = vmatprep.subr.bf16.mxu0 %v514
    %844 = vmatpush1.bf16.msra.mxu0 %v513
    %845 = vmatprep.subr.bf16.mxu0 %v520
    %846 = vmatpush1.bf16.msra.mxu0 %v519
    %847 = vmatprep.subr.bf16.mxu0 %v526
    %848 = vmatpush1.bf16.msra.mxu0 %v525
    %849 = vmatprep.subr.bf16.mxu0 %v532
    %850 = vmatpush1.bf16.msra.mxu0 %v531
    %851 = vmatprep.subr.bf16.mxu0 %v538
    %852 = vmatpush1.bf16.msra.mxu0 %v537
    %853 = vmatprep.subr.bf16.mxu0 %v544
    %854 = vmatpush1.bf16.msra.mxu0 %v543
    %855 = vmatprep.subr.bf16.mxu0 %v550
    %856 = vmatpush1.bf16.msra.mxu0 %v549
    %857 = vmatprep.subr.bf16.mxu0 %v556
    %858 = vmatpush1.bf16.msra.mxu0 %v555
    %859 = vmatprep.subr.bf16.mxu0 %v562
    %860 = vmatpush1.bf16.msra.mxu0 %v561
    %861 = vmatprep.subr.bf16.mxu0 %v568
    %862 = vmatpush1.bf16.msra.mxu0 %v567
    %863 = vmatprep.subr.bf16.mxu0 %v574
    %864 = vmatpush1.bf16.msra.mxu0 %v573
    %865 = vmatprep.subr.bf16.mxu0 %v580
    %866 = vmatpush1.bf16.msra.mxu0 %v579
    %867 = vmatprep.subr.bf16.mxu0 %v586
    %868 = vmatpush1.bf16.msra.mxu0 %v585
    %869 = vmatprep.subr.bf16.mxu0 %v592
    %870 = vmatpush1.bf16.msra.mxu0 %v591
    %871 = vmatprep.subr.bf16.mxu0 %v598
    %872 = vmatpush1.bf16.msra.mxu0 %v597
    %873 = vmatprep.mubr.bf16.mxu0 %v80
    %874 = vmatmul.mubr.bf16.gmra.mrb[0].mxu0 %v79
    %v875 = vpop.f32.mrb[0].mxu0
    %v876 = vadd.f32 %v204, %v875
    %v877 = vpop.f32.mrb[0].mxu0
    %v878 = vadd.f32 %v208, %v877
    %v879 = vpop.f32.mrb[0].mxu0
    %v880 = vadd.f32 %v204, %v879
    %v881 = vpop.f32.mrb[0].mxu0
    %v882 = vadd.f32 %v208, %v881
    %883 = vmatprep.mubr.bf16.mxu0 %v82
    %884 = vmatmul.mubr.bf16.gmra.mrb[0].mxu0 %v81
    %v885 = vpop.f32.mrb[0].mxu0
    %v886 = vadd.f32 %v204, %v885
    %v887 = vpop.f32.mrb[0].mxu0
    %v888 = vadd.f32 %v208, %v887
    %v889 = vpop.f32.mrb[0].mxu0
    %v890 = vadd.f32 %v204, %v889
    %v891 = vpop.f32.mrb[0].mxu0
    %v892 = vadd.f32 %v208, %v891
    %893 = vmatprep.mubr.bf16.mxu0 %v84
    %894 = vmatmul.mubr.bf16.gmra.mrb[0].mxu0 %v83
    %v895 = vpop.f32.mrb[0].mxu0
    %v896 = vadd.f32 %v204, %v895
    %v897 = vpop.f32.mrb[0].mxu0
    %v898 = vadd.f32 %v208, %v897
    %v899 = vpop.f32.mrb[0].mxu0
    %v900 = vadd.f32 %v204, %v899
    %v901 = vpop.f32.mrb[0].mxu0
    %v902 = vadd.f32 %v208, %v901
    %903 = vmatprep.mubr.bf16.mxu0 %v86
    %904 = vmatmul.mubr.bf16.gmra.mrb[0].mxu0 %v85
    %v905 = vpop.f32.mrb[0].mxu0
    %v906 = vadd.f32 %v204, %v905
    %v907 = vpop.f32.mrb[0].mxu0
    %v908 = vadd.f32 %v208, %v907
    %v909 = vpop.f32.mrb[0].mxu0
    %v910 = vadd.f32 %v204, %v909
    %v911 = vpop.f32.mrb[0].mxu0
    %v912 = vadd.f32 %v208, %v911
    %913 = vdwg.mxu0
    %v914 = vpack.c.bf16 %v734, %v730
    %v915 = vpack.c.bf16 %v736, %v732
    %v916 = vpack.c.bf16 %v807, %v803
    %v917 = vpack.c.bf16 %v809, %v805
    %v918 = vpack.c.bf16 %v880, %v876
    %v919 = vpack.c.bf16 %v882, %v878
    %v920 = vpack.c.bf16 %v744, %v740
    %v921 = vpack.c.bf16 %v746, %v742
    %v922 = vpack.c.bf16 %v817, %v813
    %v923 = vpack.c.bf16 %v819, %v815
    %v924 = vpack.c.bf16 %v890, %v886
    %v925 = vpack.c.bf16 %v892, %v888
    %v926 = vpack.c.bf16 %v754, %v750
    %v927 = vpack.c.bf16 %v756, %v752
    %v928 = vpack.c.bf16 %v827, %v823
    %v929 = vpack.c.bf16 %v829, %v825
    %v930 = vpack.c.bf16 %v900, %v896
    %v931 = vpack.c.bf16 %v902, %v898
    %v932 = vpack.c.bf16 %v764, %v760
    %v933 = vpack.c.bf16 %v766, %v762
    %v934 = vpack.c.bf16 %v837, %v833
    %v935 = vpack.c.bf16 %v839, %v835
    %v936 = vpack.c.bf16 %v910, %v906
    %v937 = vpack.c.bf16 %v912, %v908
    %938 = vmatprep.subr.bf16.mxu0 0
    %939 = vmatpush1.bf16.xpose.msra.mxu0 %v916
    %940 = vmatprep.subr.bf16.mxu0 0
    %941 = vmatpush1.bf16.xpose.msra.mxu0 0
    %942 = vmatprep.subr.bf16.mxu0 0
    %943 = vmatpush1.bf16.xpose.msra.mxu0 0
    %944 = vmatprep.subr.bf16.mxu0 0
    %945 = vmatpush1.bf16.xpose.msra.mxu0 0
    %946 = vmatprep.subr.bf16.mxu0 0
    %947 = vmatpush1.bf16.xpose.msra.mxu0 0
    %948 = vmatprep.subr.bf16.mxu0 0
    %949 = vmatpush1.bf16.xpose.msra.mxu0 0
    %950 = vmatprep.subr.bf16.mxu0 0
    %951 = vmatpush1.bf16.xpose.msra.mxu0 0
    %952 = vmatprep.subr.bf16.mxu0 0
    %953 = vmatpush1.bf16.xpose.msra.mxu0 0
    %954 = vmatprep.subr.bf16.mxu0 0
    %955 = vmatpush1.bf16.xpose.msra.mxu0 0
    %956 = vmatprep.subr.bf16.mxu0 0
    %957 = vmatpush1.bf16.xpose.msra.mxu0 0
    %958 = vmatprep.subr.bf16.mxu0 0
    %959 = vmatpush1.bf16.xpose.msra.mxu0 0
    %960 = vmatprep.subr.bf16.mxu0 0
    %961 = vmatpush1.bf16.xpose.msra.mxu0 0
    %962 = vmatprep.subr.bf16.mxu0 0
    %963 = vmatpush1.bf16.xpose.msra.mxu0 0
    %964 = vmatprep.subr.bf16.mxu0 0
    %965 = vmatpush1.bf16.xpose.msra.mxu0 0
    %966 = vmatprep.subr.bf16.mxu0 0
    %967 = vmatpush1.bf16.xpose.msra.mxu0 0
    %968 = vmatprep.subr.bf16.mxu0 0
    %969 = vmatpush1.bf16.xpose.msra.mxu0 0
    %970 = vmatprep.mubr.bf16.mxu0 0
    %971 = vmatmul.mubr.bf16.gmra.mrb[0].mxu0 %v914
    %v972 = vpop.f32.mrb[0].mxu0
    %v973 = vadd.f32 0.0, %v972
    %v974 = vpop.f32.mrb[0].mxu0
    %v975 = vpop.f32.mrb[0].mxu0
    %v976 = vadd.f32 0.0, %v975
    %v977 = vpop.f32.mrb[0].mxu0
    %978 = vdwg.mxu0
    %979 = vmatprep.subr.bf16.mxu0 0
    %980 = vmatpush1.bf16.xpose.msra.mxu0 %v922
    %981 = vmatprep.subr.bf16.mxu0 0
    %982 = vmatpush1.bf16.xpose.msra.mxu0 0
    %983 = vmatprep.subr.bf16.mxu0 0
    %984 = vmatpush1.bf16.xpose.msra.mxu0 0
    %985 = vmatprep.subr.bf16.mxu0 0
    %986 = vmatpush1.bf16.xpose.msra.mxu0 0
    %987 = vmatprep.subr.bf16.mxu0 0
    %988 = vmatpush1.bf16.xpose.msra.mxu0 0
    %989 = vmatprep.subr.bf16.mxu0 0
    %990 = vmatpush1.bf16.xpose.msra.mxu0 0
    %991 = vmatprep.subr.bf16.mxu0 0
    %992 = vmatpush1.bf16.xpose.msra.mxu0 0
    %993 = vmatprep.subr.bf16.mxu0 0
    %994 = vmatpush1.bf16.xpose.msra.mxu0 0
    %995 = vmatprep.subr.bf16.mxu0 0
    %996 = vmatpush1.bf16.xpose.msra.mxu0 0
    %997 = vmatprep.subr.bf16.mxu0 0
    %998 = vmatpush1.bf16.xpose.msra.mxu0 0
    %999 = vmatprep.subr.bf16.mxu0 0
    %1000 = vmatpush1.bf16.xpose.msra.mxu0 0
    %1001 = vmatprep.subr.bf16.mxu0 0
    %1002 = vmatpush1.bf16.xpose.msra.mxu0 0
    %1003 = vmatprep.subr.bf16.mxu0 0
    %1004 = vmatpush1.bf16.xpose.msra.mxu0 0
    %1005 = vmatprep.subr.bf16.mxu0 0
    %1006 = vmatpush1.bf16.xpose.msra.mxu0 0
    %1007 = vmatprep.subr.bf16.mxu0 0
    %1008 = vmatpush1.bf16.xpose.msra.mxu0 0
    %1009 = vmatprep.subr.bf16.mxu0 0
    %1010 = vmatpush1.bf16.xpose.msra.mxu0 0
    %1011 = vmatprep.mubr.bf16.mxu0 0
    %1012 = vmatmul.mubr.bf16.gmra.mrb[0].mxu0 %v920
    %v1013 = vpop.f32.mrb[0].mxu0
    %v1014 = vadd.f32 0.0, %v1013
    %v1015 = vpop.f32.mrb[0].mxu0
    %v1016 = vpop.f32.mrb[0].mxu0
    %v1017 = vadd.f32 0.0, %v1016
    %v1018 = vpop.f32.mrb[0].mxu0
    %1019 = vdwg.mxu0
    %1020 = vmatprep.subr.bf16.mxu0 0
    %1021 = vmatpush1.bf16.xpose.msra.mxu0 %v928
    %1022 = vmatprep.subr.bf16.mxu0 0
    %1023 = vmatpush1.bf16.xpose.msra.mxu0 0
    %1024 = vmatprep.subr.bf16.mxu0 0
    %1025 = vmatpush1.bf16.xpose.msra.mxu0 0
    %1026 = vmatprep.subr.bf16.mxu0 0
    %1027 = vmatpush1.bf16.xpose.msra.mxu0 0
    %1028 = vmatprep.subr.bf16.mxu0 0
    %1029 = vmatpush1.bf16.xpose.msra.mxu0 0
    %1030 = vmatprep.subr.bf16.mxu0 0
    %1031 = vmatpush1.bf16.xpose.msra.mxu0 0
    %1032 = vmatprep.subr.bf16.mxu0 0
    %1033 = vmatpush1.bf16.xpose.msra.mxu0 0
    %1034 = vmatprep.subr.bf16.mxu0 0
    %1035 = vmatpush1.bf16.xpose.msra.mxu0 0
    %1036 = vmatprep.subr.bf16.mxu0 0
    %1037 = vmatpush1.bf16.xpose.msra.mxu0 0
    %1038 = vmatprep.subr.bf16.mxu0 0
    %1039 = vmatpush1.bf16.xpose.msra.mxu0 0
    %1040 = vmatprep.subr.bf16.mxu0 0
    %1041 = vmatpush1.bf16.xpose.msra.mxu0 0
    %1042 = vmatprep.subr.bf16.mxu0 0
    %1043 = vmatpush1.bf16.xpose.msra.mxu0 0
    %1044 = vmatprep.subr.bf16.mxu0 0
    %1045 = vmatpush1.bf16.xpose.msra.mxu0 0
    %1046 = vmatprep.subr.bf16.mxu0 0
    %1047 = vmatpush1.bf16.xpose.msra.mxu0 0
    %1048 = vmatprep.subr.bf16.mxu0 0
    %1049 = vmatpush1.bf16.xpose.msra.mxu0 0
    %1050 = vmatprep.subr.bf16.mxu0 0
    %1051 = vmatpush1.bf16.xpose.msra.mxu0 0
    %1052 = vmatprep.mubr.bf16.mxu0 0
    %1053 = vmatmul.mubr.bf16.gmra.mrb[0].mxu0 %v926
    %v1054 = vpop.f32.mrb[0].mxu0
    %v1055 = vadd.f32 0.0, %v1054
    %v1056 = vpop.f32.mrb[0].mxu0
    %v1057 = vpop.f32.mrb[0].mxu0
    %v1058 = vadd.f32 0.0, %v1057
    %v1059 = vpop.f32.mrb[0].mxu0
    %1060 = vdwg.mxu0
    %1061 = vmatprep.subr.bf16.mxu0 0
    %1062 = vmatpush1.bf16.xpose.msra.mxu0 %v934
    %1063 = vmatprep.subr.bf16.mxu0 0
    %1064 = vmatpush1.bf16.xpose.msra.mxu0 0
    %1065 = vmatprep.subr.bf16.mxu0 0
    %1066 = vmatpush1.bf16.xpose.msra.mxu0 0
    %1067 = vmatprep.subr.bf16.mxu0 0
    %1068 = vmatpush1.bf16.xpose.msra.mxu0 0
    %1069 = vmatprep.subr.bf16.mxu0 0
    %1070 = vmatpush1.bf16.xpose.msra.mxu0 0
    %1071 = vmatprep.subr.bf16.mxu0 0
    %1072 = vmatpush1.bf16.xpose.msra.mxu0 0
    %1073 = vmatprep.subr.bf16.mxu0 0
    %1074 = vmatpush1.bf16.xpose.msra.mxu0 0
    %1075 = vmatprep.subr.bf16.mxu0 0
    %1076 = vmatpush1.bf16.xpose.msra.mxu0 0
    %1077 = vmatprep.subr.bf16.mxu0 0
    %1078 = vmatpush1.bf16.xpose.msra.mxu0 0
    %1079 = vmatprep.subr.bf16.mxu0 0
    %1080 = vmatpush1.bf16.xpose.msra.mxu0 0
    %1081 = vmatprep.subr.bf16.mxu0 0
    %1082 = vmatpush1.bf16.xpose.msra.mxu0 0
    %1083 = vmatprep.subr.bf16.mxu0 0
    %1084 = vmatpush1.bf16.xpose.msra.mxu0 0
    %1085 = vmatprep.subr.bf16.mxu0 0
    %1086 = vmatpush1.bf16.xpose.msra.mxu0 0
    %1087 = vmatprep.subr.bf16.mxu0 0
    %1088 = vmatpush1.bf16.xpose.msra.mxu0 0
    %1089 = vmatprep.subr.bf16.mxu0 0
    %1090 = vmatpush1.bf16.xpose.msra.mxu0 0
    %1091 = vmatprep.subr.bf16.mxu0 0
    %1092 = vmatpush1.bf16.xpose.msra.mxu0 0
    %1093 = vmatprep.mubr.bf16.mxu0 0
    %1094 = vmatmul.mubr.bf16.gmra.mrb[0].mxu0 %v932
    %v1095 = vpop.f32.mrb[0].mxu0
    %v1096 = vadd.f32 0.0, %v1095
    %v1097 = vpop.f32.mrb[0].mxu0
    %v1098 = vpop.f32.mrb[0].mxu0
    %v1099 = vadd.f32 0.0, %v1098
    %v1100 = vpop.f32.mrb[0].mxu0
    %1101 = vdwg.mxu0
    %vm1102 = vcmask 130048
    %v1103 = vsel %vm1102, %v973, -inf
    %1104 = vmax.xlane.f32.xlu0 %v1103
    %v1105 = vpop.xlane.xlu0 %1104
    %v1106 = vsel %vm1102, %v976, -inf
    %1107 = vmax.xlane.f32.xlu0 %v1106
    %v1108 = vpop.xlane.xlu0 %1107
    %v1109 = vsel %vm1102, %v1014, -inf
    %1110 = vmax.xlane.f32.xlu0 %v1109
    %v1111 = vpop.xlane.xlu0 %1110
    %v1112 = vsel %vm1102, %v1017, -inf
    %1113 = vmax.xlane.f32.xlu0 %v1112
    %v1114 = vpop.xlane.xlu0 %1113
    %v1115 = vsel %vm1102, %v1055, -inf
    %1116 = vmax.xlane.f32.xlu0 %v1115
    %v1117 = vpop.xlane.xlu0 %1116
    %v1118 = vsel %vm1102, %v1058, -inf
    %1119 = vmax.xlane.f32.xlu0 %v1118
    %v1120 = vpop.xlane.xlu0 %1119
    %v1121 = vsel %vm1102, %v1096, -inf
    %1122 = vmax.xlane.f32.xlu0 %v1121
    %v1123 = vpop.xlane.xlu0 %1122
    %v1124 = vsel %vm1102, %v1099, -inf
    %1125 = vmax.xlane.f32.xlu0 %v1124
    %v1126 = vpop.xlane.xlu0 %1125
    %v1127 = vsub.f32 %v973, %v1105
    %v1128 = vsub.f32 %v976, %v1108
    %v1129 = vsub.f32 %v1014, %v1111
    %v1130 = vsub.f32 %v1017, %v1114
    %v1131 = vsub.f32 %v1055, %v1117
    %v1132 = vsub.f32 %v1058, %v1120
    %v1133 = vsub.f32 %v1096, %v1123
    %v1134 = vsub.f32 %v1099, %v1126
    %v1135 = vmul.f32 %v1127, 1.442695
    %v1136 = vpow.pop %v1135
    %v1137 = vmul.f32 %v1128, 1.442695
    %v1138 = vpow.pop %v1137
    %v1139 = vmul.f32 %v1129, 1.442695
    %v1140 = vpow.pop %v1139
    %v1141 = vmul.f32 %v1130, 1.442695
    %v1142 = vpow.pop %v1141
    %v1143 = vmul.f32 %v1131, 1.442695
    %v1144 = vpow.pop %v1143
    %v1145 = vmul.f32 %v1132, 1.442695
    %v1146 = vpow.pop %v1145
    %v1147 = vmul.f32 %v1133, 1.442695
    %v1148 = vpow.pop %v1147
    %v1149 = vmul.f32 %v1134, 1.442695
    %v1150 = vpow.pop %v1149
    %v1151 = vsel %vm1102, %v1136, 0.0
    %1152 = vadd.xlane.f32.xlu0 %v1151
    %v1153 = vpop.xlane.xlu0 %1152
    %v1154 = vsel %vm1102, %v1138, 0.0
    %1155 = vadd.xlane.f32.xlu0 %v1154
    %v1156 = vpop.xlane.xlu0 %1155
    %v1157 = vsel %vm1102, %v1140, 0.0
    %1158 = vadd.xlane.f32.xlu0 %v1157
    %v1159 = vpop.xlane.xlu0 %1158
    %v1160 = vsel %vm1102, %v1142, 0.0
    %1161 = vadd.xlane.f32.xlu0 %v1160
    %v1162 = vpop.xlane.xlu0 %1161
    %v1163 = vsel %vm1102, %v1144, 0.0
    %1164 = vadd.xlane.f32.xlu0 %v1163
    %v1165 = vpop.xlane.xlu0 %1164
    %v1166 = vsel %vm1102, %v1146, 0.0
    %1167 = vadd.xlane.f32.xlu0 %v1166
    %v1168 = vpop.xlane.xlu0 %1167
    %v1169 = vsel %vm1102, %v1148, 0.0
    %1170 = vadd.xlane.f32.xlu0 %v1169
    %v1171 = vpop.xlane.xlu0 %1170
    %v1172 = vsel %vm1102, %v1150, 0.0
    %1173 = vadd.xlane.f32.xlu0 %v1172
    %v1174 = vpop.xlane.xlu0 %1173
    %v1175 = vrcp.pop %v1153
    %v1176 = vrcp.pop %v1156
    %v1177 = vrcp.pop %v1159
    %v1178 = vrcp.pop %v1162
    %v1179 = vrcp.pop %v1165
    %v1180 = vrcp.pop %v1168
    %v1181 = vrcp.pop %v1171
    %v1182 = vrcp.pop %v1174
    %v1183 = vmul.f32 %v1136, %v1175
    %v1184 = vmul.f32 %v1138, %v1176
    %v1185 = vmul.f32 %v1140, %v1177
    %v1186 = vmul.f32 %v1142, %v1178
    %v1187 = vmul.f32 %v1144, %v1179
    %v1188 = vmul.f32 %v1146, %v1180
    %v1189 = vmul.f32 %v1148, %v1181
    %v1190 = vmul.f32 %v1150, %v1182
    %v1191 = vpack.c.bf16 %v1184, %v1183
    %v1192 = vpack.c.bf16 %v1186, %v1185
    %v1193 = vpack.c.bf16 %v1188, %v1187
    %v1194 = vpack.c.bf16 %v1190, %v1189
    %v1196 = vsel %vm1102, %v1191, 0
    %1198 = vmatprep.subr.bf16.mxu0 0
    %1199 = vmatpush1.bf16.msra.mxu0 %v918
    %1200 = vmatprep.subr.bf16.mxu0 0
    %1201 = vmatpush1.bf16.msra.mxu0 0
    %1202 = vmatprep.subr.bf16.mxu0 0
    %1203 = vmatpush1.bf16.msra.mxu0 0
    %1204 = vmatprep.subr.bf16.mxu0 0
    %1205 = vmatpush1.bf16.msra.mxu0 0
    %1206 = vmatprep.subr.bf16.mxu0 0
    %1207 = vmatpush1.bf16.msra.mxu0 0
    %1208 = vmatprep.subr.bf16.mxu0 0
    %1209 = vmatpush1.bf16.msra.mxu0 0
    %1210 = vmatprep.subr.bf16.mxu0 0
    %1211 = vmatpush1.bf16.msra.mxu0 0
    %1212 = vmatprep.subr.bf16.mxu0 0
    %1213 = vmatpush1.bf16.msra.mxu0 0
    %1214 = vmatprep.subr.bf16.mxu0 0
    %1215 = vmatpush1.bf16.msra.mxu0 0
    %1216 = vmatprep.subr.bf16.mxu0 0
    %1217 = vmatpush1.bf16.msra.mxu0 0
    %1218 = vmatprep.subr.bf16.mxu0 0
    %1219 = vmatpush1.bf16.msra.mxu0 0
    %1220 = vmatprep.subr.bf16.mxu0 0
    %1221 = vmatpush1.bf16.msra.mxu0 0
    %1222 = vmatprep.subr.bf16.mxu0 0
    %1223 = vmatpush1.bf16.msra.mxu0 0
    %1224 = vmatprep.subr.bf16.mxu0 0
    %1225 = vmatpush1.bf16.msra.mxu0 0
    %1226 = vmatprep.subr.bf16.mxu0 0
    %1227 = vmatpush1.bf16.msra.mxu0 0
    %1228 = vmatprep.subr.bf16.mxu0 0
    %1229 = vmatpush1.bf16.msra.mxu0 0
    %1230 = vmatprep.mubr.bf16.mxu0 0
    %1231 = vmatmul.mubr.bf16.gmra.mrb[0].mxu0 %v1196
    %v1232 = vpop.f32.mrb[0].mxu0
    %v1233 = vadd.f32 0.0, %v1232
    %v1234 = vpop.f32.mrb[0].mxu0
    %v1235 = vpop.f32.mrb[0].mxu0
    %v1236 = vadd.f32 0.0, %v1235
    %v1237 = vpop.f32.mrb[0].mxu0
    %1238 = vdwg.mxu0
    %v1240 = vsel %vm1102, %v1192, 0
    %1242 = vmatprep.subr.bf16.mxu0 0
    %1243 = vmatpush1.bf16.msra.mxu0 %v924
    %1244 = vmatprep.subr.bf16.mxu0 0
    %1245 = vmatpush1.bf16.msra.mxu0 0
    %1246 = vmatprep.subr.bf16.mxu0 0
    %1247 = vmatpush1.bf16.msra.mxu0 0
    %1248 = vmatprep.subr.bf16.mxu0 0
    %1249 = vmatpush1.bf16.msra.mxu0 0
    %1250 = vmatprep.subr.bf16.mxu0 0
    %1251 = vmatpush1.bf16.msra.mxu0 0
    %1252 = vmatprep.subr.bf16.mxu0 0
    %1253 = vmatpush1.bf16.msra.mxu0 0
    %1254 = vmatprep.subr.bf16.mxu0 0
    %1255 = vmatpush1.bf16.msra.mxu0 0
    %1256 = vmatprep.subr.bf16.mxu0 0
    %1257 = vmatpush1.bf16.msra.mxu0 0
    %1258 = vmatprep.subr.bf16.mxu0 0
    %1259 = vmatpush1.bf16.msra.mxu0 0
    %1260 = vmatprep.subr.bf16.mxu0 0
    %1261 = vmatpush1.bf16.msra.mxu0 0
    %1262 = vmatprep.subr.bf16.mxu0 0
    %1263 = vmatpush1.bf16.msra.mxu0 0
    %1264 = vmatprep.subr.bf16.mxu0 0
    %1265 = vmatpush1.bf16.msra.mxu0 0
    %1266 = vmatprep.subr.bf16.mxu0 0
    %1267 = vmatpush1.bf16.msra.mxu0 0
    %1268 = vmatprep.subr.bf16.mxu0 0
    %1269 = vmatpush1.bf16.msra.mxu0 0
    %1270 = vmatprep.subr.bf16.mxu0 0
    %1271 = vmatpush1.bf16.msra.mxu0 0
    %1272 = vmatprep.subr.bf16.mxu0 0
    %1273 = vmatpush1.bf16.msra.mxu0 0
    %1274 = vmatprep.mubr.bf16.mxu0 0
    %1275 = vmatmul.mubr.bf16.gmra.mrb[0].mxu0 %v1240
    %v1276 = vpop.f32.mrb[0].mxu0
    %v1277 = vadd.f32 0.0, %v1276
    %v1278 = vpop.f32.mrb[0].mxu0
    %v1279 = vpop.f32.mrb[0].mxu0
    %v1280 = vadd.f32 0.0, %v1279
    %v1281 = vpop.f32.mrb[0].mxu0
    %1282 = vdwg.mxu0
    %v1284 = vsel %vm1102, %v1193, 0
    %1286 = vmatprep.subr.bf16.mxu0 0
    %1287 = vmatpush1.bf16.msra.mxu0 %v930
    %1288 = vmatprep.subr.bf16.mxu0 0
    %1289 = vmatpush1.bf16.msra.mxu0 0
    %1290 = vmatprep.subr.bf16.mxu0 0
    %1291 = vmatpush1.bf16.msra.mxu0 0
    %1292 = vmatprep.subr.bf16.mxu0 0
    %1293 = vmatpush1.bf16.msra.mxu0 0
    %1294 = vmatprep.subr.bf16.mxu0 0
    %1295 = vmatpush1.bf16.msra.mxu0 0
    %1296 = vmatprep.subr.bf16.mxu0 0
    %1297 = vmatpush1.bf16.msra.mxu0 0
    %1298 = vmatprep.subr.bf16.mxu0 0
    %1299 = vmatpush1.bf16.msra.mxu0 0
    %1300 = vmatprep.subr.bf16.mxu0 0
    %1301 = vmatpush1.bf16.msra.mxu0 0
    %1302 = vmatprep.subr.bf16.mxu0 0
    %1303 = vmatpush1.bf16.msra.mxu0 0
    %1304 = vmatprep.subr.bf16.mxu0 0
    %1305 = vmatpush1.bf16.msra.mxu0 0
    %1306 = vmatprep.subr.bf16.mxu0 0
    %1307 = vmatpush1.bf16.msra.mxu0 0
    %1308 = vmatprep.subr.bf16.mxu0 0
    %1309 = vmatpush1.bf16.msra.mxu0 0
    %1310 = vmatprep.subr.bf16.mxu0 0
    %1311 = vmatpush1.bf16.msra.mxu0 0
    %1312 = vmatprep.subr.bf16.mxu0 0
    %1313 = vmatpush1.bf16.msra.mxu0 0
    %1314 = vmatprep.subr.bf16.mxu0 0
    %1315 = vmatpush1.bf16.msra.mxu0 0
    %1316 = vmatprep.subr.bf16.mxu0 0
    %1317 = vmatpush1.bf16.msra.mxu0 0
    %1318 = vmatprep.mubr.bf16.mxu0 0
    %1319 = vmatmul.mubr.bf16.gmra.mrb[0].mxu0 %v1284
    %v1320 = vpop.f32.mrb[0].mxu0
    %v1321 = vadd.f32 0.0, %v1320
    %v1322 = vpop.f32.mrb[0].mxu0
    %v1323 = vpop.f32.mrb[0].mxu0
    %v1324 = vadd.f32 0.0, %v1323
    %v1325 = vpop.f32.mrb[0].mxu0
    %1326 = vdwg.mxu0
    %v1328 = vsel %vm1102, %v1194, 0
    %1330 = vmatprep.subr.bf16.mxu0 0
    %1331 = vmatpush1.bf16.msra.mxu0 %v936
    %1332 = vmatprep.subr.bf16.mxu0 0
    %1333 = vmatpush1.bf16.msra.mxu0 0
    %1334 = vmatprep.subr.bf16.mxu0 0
    %1335 = vmatpush1.bf16.msra.mxu0 0
    %1336 = vmatprep.subr.bf16.mxu0 0
    %1337 = vmatpush1.bf16.msra.mxu0 0
    %1338 = vmatprep.subr.bf16.mxu0 0
    %1339 = vmatpush1.bf16.msra.mxu0 0
    %1340 = vmatprep.subr.bf16.mxu0 0
    %1341 = vmatpush1.bf16.msra.mxu0 0
    %1342 = vmatprep.subr.bf16.mxu0 0
    %1343 = vmatpush1.bf16.msra.mxu0 0
    %1344 = vmatprep.subr.bf16.mxu0 0
    %1345 = vmatpush1.bf16.msra.mxu0 0
    %1346 = vmatprep.subr.bf16.mxu0 0
    %1347 = vmatpush1.bf16.msra.mxu0 0
    %1348 = vmatprep.subr.bf16.mxu0 0
    %1349 = vmatpush1.bf16.msra.mxu0 0
    %1350 = vmatprep.subr.bf16.mxu0 0
    %1351 = vmatpush1.bf16.msra.mxu0 0
    %1352 = vmatprep.subr.bf16.mxu0 0
    %1353 = vmatpush1.bf16.msra.mxu0 0
    %1354 = vmatprep.subr.bf16.mxu0 0
    %1355 = vmatpush1.bf16.msra.mxu0 0
    %1356 = vmatprep.subr.bf16.mxu0 0
    %1357 = vmatpush1.bf16.msra.mxu0 0
    %1358 = vmatprep.subr.bf16.mxu0 0
    %1359 = vmatpush1.bf16.msra.mxu0 0
    %1360 = vmatprep.subr.bf16.mxu0 0
    %1361 = vmatpush1.bf16.msra.mxu0 0
    %1362 = vmatprep.mubr.bf16.mxu0 0
    %1363 = vmatmul.mubr.bf16.gmra.mrb[0].mxu0 %v1328
    %v1364 = vpop.f32.mrb[0].mxu0
    %v1365 = vadd.f32 0.0, %v1364
    %v1366 = vpop.f32.mrb[0].mxu0
    %v1367 = vpop.f32.mrb[0].mxu0
    %v1368 = vadd.f32 0.0, %v1367
    %v1369 = vpop.f32.mrb[0].mxu0
    %1370 = vdwg.mxu0
    %1371 = vmatprep.subr.bf16.mxu0 0
    %1372 = vmatpush1.bf16.xpose.msra.mxu0 %v917
    %1373 = vmatprep.subr.bf16.mxu0 0
    %1374 = vmatpush1.bf16.xpose.msra.mxu0 0
    %1375 = vmatprep.subr.bf16.mxu0 0
    %1376 = vmatpush1.bf16.xpose.msra.mxu0 0
    %1377 = vmatprep.subr.bf16.mxu0 0
    %1378 = vmatpush1.bf16.xpose.msra.mxu0 0
    %1379 = vmatprep.subr.bf16.mxu0 0
    %1380 = vmatpush1.bf16.xpose.msra.mxu0 0
    %1381 = vmatprep.subr.bf16.mxu0 0
    %1382 = vmatpush1.bf16.xpose.msra.mxu0 0
    %1383 = vmatprep.subr.bf16.mxu0 0
    %1384 = vmatpush1.bf16.xpose.msra.mxu0 0
    %1385 = vmatprep.subr.bf16.mxu0 0
    %1386 = vmatpush1.bf16.xpose.msra.mxu0 0
    %1387 = vmatprep.subr.bf16.mxu0 0
    %1388 = vmatpush1.bf16.xpose.msra.mxu0 0
    %1389 = vmatprep.subr.bf16.mxu0 0
    %1390 = vmatpush1.bf16.xpose.msra.mxu0 0
    %1391 = vmatprep.subr.bf16.mxu0 0
    %1392 = vmatpush1.bf16.xpose.msra.mxu0 0
    %1393 = vmatprep.subr.bf16.mxu0 0
    %1394 = vmatpush1.bf16.xpose.msra.mxu0 0
    %1395 = vmatprep.subr.bf16.mxu0 0
    %1396 = vmatpush1.bf16.xpose.msra.mxu0 0
    %1397 = vmatprep.subr.bf16.mxu0 0
    %1398 = vmatpush1.bf16.xpose.msra.mxu0 0
    %1399 = vmatprep.subr.bf16.mxu0 0
    %1400 = vmatpush1.bf16.xpose.msra.mxu0 0
    %1401 = vmatprep.subr.bf16.mxu0 0
    %1402 = vmatpush1.bf16.xpose.msra.mxu0 0
    %1403 = vmatprep.mubr.bf16.mxu0 0
    %1404 = vmatmul.mubr.bf16.gmra.mrb[0].mxu0 %v915
    %v1405 = vpop.f32.mrb[0].mxu0
    %v1406 = vadd.f32 0.0, %v1405
    %v1407 = vpop.f32.mrb[0].mxu0
    %v1408 = vpop.f32.mrb[0].mxu0
    %v1409 = vadd.f32 0.0, %v1408
    %v1410 = vpop.f32.mrb[0].mxu0
    %1411 = vdwg.mxu0
    %1412 = vmatprep.subr.bf16.mxu0 0
    %1413 = vmatpush1.bf16.xpose.msra.mxu0 %v923
    %1414 = vmatprep.subr.bf16.mxu0 0
    %1415 = vmatpush1.bf16.xpose.msra.mxu0 0
    %1416 = vmatprep.subr.bf16.mxu0 0
    %1417 = vmatpush1.bf16.xpose.msra.mxu0 0
    %1418 = vmatprep.subr.bf16.mxu0 0
    %1419 = vmatpush1.bf16.xpose.msra.mxu0 0
    %1420 = vmatprep.subr.bf16.mxu0 0
    %1421 = vmatpush1.bf16.xpose.msra.mxu0 0
    %1422 = vmatprep.subr.bf16.mxu0 0
    %1423 = vmatpush1.bf16.xpose.msra.mxu0 0
    %1424 = vmatprep.subr.bf16.mxu0 0
    %1425 = vmatpush1.bf16.xpose.msra.mxu0 0
    %1426 = vmatprep.subr.bf16.mxu0 0
    %1427 = vmatpush1.bf16.xpose.msra.mxu0 0
    %1428 = vmatprep.subr.bf16.mxu0 0
    %1429 = vmatpush1.bf16.xpose.msra.mxu0 0
    %1430 = vmatprep.subr.bf16.mxu0 0
    %1431 = vmatpush1.bf16.xpose.msra.mxu0 0
    %1432 = vmatprep.subr.bf16.mxu0 0
    %1433 = vmatpush1.bf16.xpose.msra.mxu0 0
    %1434 = vmatprep.subr.bf16.mxu0 0
    %1435 = vmatpush1.bf16.xpose.msra.mxu0 0
    %1436 = vmatprep.subr.bf16.mxu0 0
    %1437 = vmatpush1.bf16.xpose.msra.mxu0 0
    %1438 = vmatprep.subr.bf16.mxu0 0
    %1439 = vmatpush1.bf16.xpose.msra.mxu0 0
    %1440 = vmatprep.subr.bf16.mxu0 0
    %1441 = vmatpush1.bf16.xpose.msra.mxu0 0
    %1442 = vmatprep.subr.bf16.mxu0 0
    %1443 = vmatpush1.bf16.xpose.msra.mxu0 0
    %1444 = vmatprep.mubr.bf16.mxu0 0
    %1445 = vmatmul.mubr.bf16.gmra.mrb[0].mxu0 %v921
    %v1446 = vpop.f32.mrb[0].mxu0
    %v1447 = vadd.f32 0.0, %v1446
    %v1448 = vpop.f32.mrb[0].mxu0
    %v1449 = vpop.f32.mrb[0].mxu0
    %v1450 = vadd.f32 0.0, %v1449
    %v1451 = vpop.f32.mrb[0].mxu0
    %1452 = vdwg.mxu0
    %1453 = vmatprep.subr.bf16.mxu0 0
    %1454 = vmatpush1.bf16.xpose.msra.mxu0 %v929
    %1455 = vmatprep.subr.bf16.mxu0 0
    %1456 = vmatpush1.bf16.xpose.msra.mxu0 0
    %1457 = vmatprep.subr.bf16.mxu0 0
    %1458 = vmatpush1.bf16.xpose.msra.mxu0 0
    %1459 = vmatprep.subr.bf16.mxu0 0
    %1460 = vmatpush1.bf16.xpose.msra.mxu0 0
    %1461 = vmatprep.subr.bf16.mxu0 0
    %1462 = vmatpush1.bf16.xpose.msra.mxu0 0
    %1463 = vmatprep.subr.bf16.mxu0 0
    %1464 = vmatpush1.bf16.xpose.msra.mxu0 0
    %1465 = vmatprep.subr.bf16.mxu0 0
    %1466 = vmatpush1.bf16.xpose.msra.mxu0 0
    %1467 = vmatprep.subr.bf16.mxu0 0
    %1468 = vmatpush1.bf16.xpose.msra.mxu0 0
    %1469 = vmatprep.subr.bf16.mxu0 0
    %1470 = vmatpush1.bf16.xpose.msra.mxu0 0
    %1471 = vmatprep.subr.bf16.mxu0 0
    %1472 = vmatpush1.bf16.xpose.msra.mxu0 0
    %1473 = vmatprep.subr.bf16.mxu0 0
    %1474 = vmatpush1.bf16.xpose.msra.mxu0 0
    %1475 = vmatprep.subr.bf16.mxu0 0
    %1476 = vmatpush1.bf16.xpose.msra.mxu0 0
    %1477 = vmatprep.subr.bf16.mxu0 0
    %1478 = vmatpush1.bf16.xpose.msra.mxu0 0
    %1479 = vmatprep.subr.bf16.mxu0 0
    %1480 = vmatpush1.bf16.xpose.msra.mxu0 0
    %1481 = vmatprep.subr.bf16.mxu0 0
    %1482 = vmatpush1.bf16.xpose.msra.mxu0 0
    %1483 = vmatprep.subr.bf16.mxu0 0
    %1484 = vmatpush1.bf16.xpose.msra.mxu0 0
    %1485 = vmatprep.mubr.bf16.mxu0 0
    %1486 = vmatmul.mubr.bf16.gmra.mrb[0].mxu0 %v927
    %v1487 = vpop.f32.mrb[0].mxu0
    %v1488 = vadd.f32 0.0, %v1487
    %v1489 = vpop.f32.mrb[0].mxu0
    %v1490 = vpop.f32.mrb[0].mxu0
    %v1491 = vadd.f32 0.0, %v1490
    %v1492 = vpop.f32.mrb[0].mxu0
    %1493 = vdwg.mxu0
    %1494 = vmatprep.subr.bf16.mxu0 0
    %1495 = vmatpush1.bf16.xpose.msra.mxu0 %v935
    %1496 = vmatprep.subr.bf16.mxu0 0
    %1497 = vmatpush1.bf16.xpose.msra.mxu0 0
    %1498 = vmatprep.subr.bf16.mxu0 0
    %1499 = vmatpush1.bf16.xpose.msra.mxu0 0
    %1500 = vmatprep.subr.bf16.mxu0 0
    %1501 = vmatpush1.bf16.xpose.msra.mxu0 0
    %1502 = vmatprep.subr.bf16.mxu0 0
    %1503 = vmatpush1.bf16.xpose.msra.mxu0 0
    %1504 = vmatprep.subr.bf16.mxu0 0
    %1505 = vmatpush1.bf16.xpose.msra.mxu0 0
    %1506 = vmatprep.subr.bf16.mxu0 0
    %1507 = vmatpush1.bf16.xpose.msra.mxu0 0
    %1508 = vmatprep.subr.bf16.mxu0 0
    %1509 = vmatpush1.bf16.xpose.msra.mxu0 0
    %1510 = vmatprep.subr.bf16.mxu0 0
    %1511 = vmatpush1.bf16.xpose.msra.mxu0 0
    %1512 = vmatprep.subr.bf16.mxu0 0
    %1513 = vmatpush1.bf16.xpose.msra.mxu0 0
    %1514 = vmatprep.subr.bf16.mxu0 0
    %1515 = vmatpush1.bf16.xpose.msra.mxu0 0
    %1516 = vmatprep.subr.bf16.mxu0 0
    %1517 = vmatpush1.bf16.xpose.msra.mxu0 0
    %1518 = vmatprep.subr.bf16.mxu0 0
    %1519 = vmatpush1.bf16.xpose.msra.mxu0 0
    %1520 = vmatprep.subr.bf16.mxu0 0
    %1521 = vmatpush1.bf16.xpose.msra.mxu0 0
    %1522 = vmatprep.subr.bf16.mxu0 0
    %1523 = vmatpush1.bf16.xpose.msra.mxu0 0
    %1524 = vmatprep.subr.bf16.mxu0 0
    %1525 = vmatpush1.bf16.xpose.msra.mxu0 0
    %1526 = vmatprep.mubr.bf16.mxu0 0
    %1527 = vmatmul.mubr.bf16.gmra.mrb[0].mxu0 %v933
    %v1528 = vpop.f32.mrb[0].mxu0
    %v1529 = vadd.f32 0.0, %v1528
    %v1530 = vpop.f32.mrb[0].mxu0
    %v1531 = vpop.f32.mrb[0].mxu0
    %v1532 = vadd.f32 0.0, %v1531
    %v1533 = vpop.f32.mrb[0].mxu0
    %1534 = vdwg.mxu0
    %v1535 = vsel %vm1102, %v1406, -inf
    %1536 = vmax.xlane.f32.xlu0 %v1535
    %v1537 = vpop.xlane.xlu0 %1536
    %v1538 = vsel %vm1102, %v1409, -inf
    %1539 = vmax.xlane.f32.xlu0 %v1538
    %v1540 = vpop.xlane.xlu0 %1539
    %v1541 = vsel %vm1102, %v1447, -inf
    %1542 = vmax.xlane.f32.xlu0 %v1541
    %v1543 = vpop.xlane.xlu0 %1542
    %v1544 = vsel %vm1102, %v1450, -inf
    %1545 = vmax.xlane.f32.xlu0 %v1544
    %v1546 = vpop.xlane.xlu0 %1545
    %v1547 = vsel %vm1102, %v1488, -inf
    %1548 = vmax.xlane.f32.xlu0 %v1547
    %v1549 = vpop.xlane.xlu0 %1548
    %v1550 = vsel %vm1102, %v1491, -inf
    %1551 = vmax.xlane.f32.xlu0 %v1550
    %v1552 = vpop.xlane.xlu0 %1551
    %v1553 = vsel %vm1102, %v1529, -inf
    %1554 = vmax.xlane.f32.xlu0 %v1553
    %v1555 = vpop.xlane.xlu0 %1554
    %v1556 = vsel %vm1102, %v1532, -inf
    %1557 = vmax.xlane.f32.xlu0 %v1556
    %v1558 = vpop.xlane.xlu0 %1557
    %v1559 = vsub.f32 %v1406, %v1537
    %v1560 = vsub.f32 %v1409, %v1540
    %v1561 = vsub.f32 %v1447, %v1543
    %v1562 = vsub.f32 %v1450, %v1546
    %v1563 = vsub.f32 %v1488, %v1549
    %v1564 = vsub.f32 %v1491, %v1552
    %v1565 = vsub.f32 %v1529, %v1555
    %v1566 = vsub.f32 %v1532, %v1558
    %v1567 = vmul.f32 %v1559, 1.442695
    %v1568 = vpow.pop %v1567
    %v1569 = vmul.f32 %v1560, 1.442695
    %v1570 = vpow.pop %v1569
    %v1571 = vmul.f32 %v1561, 1.442695
    %v1572 = vpow.pop %v1571
    %v1573 = vmul.f32 %v1562, 1.442695
    %v1574 = vpow.pop %v1573
    %v1575 = vmul.f32 %v1563, 1.442695
    %v1576 = vpow.pop %v1575
    %v1577 = vmul.f32 %v1564, 1.442695
    %v1578 = vpow.pop %v1577
    %v1579 = vmul.f32 %v1565, 1.442695
    %v1580 = vpow.pop %v1579
    %v1581 = vmul.f32 %v1566, 1.442695
    %v1582 = vpow.pop %v1581
    %v1583 = vsel %vm1102, %v1568, 0.0
    %1584 = vadd.xlane.f32.xlu0 %v1583
    %v1585 = vpop.xlane.xlu0 %1584
    %v1586 = vsel %vm1102, %v1570, 0.0
    %1587 = vadd.xlane.f32.xlu0 %v1586
    %v1588 = vpop.xlane.xlu0 %1587
    %v1589 = vsel %vm1102, %v1572, 0.0
    %1590 = vadd.xlane.f32.xlu0 %v1589
    %v1591 = vpop.xlane.xlu0 %1590
    %v1592 = vsel %vm1102, %v1574, 0.0
    %1593 = vadd.xlane.f32.xlu0 %v1592
    %v1594 = vpop.xlane.xlu0 %1593
    %v1595 = vsel %vm1102, %v1576, 0.0
    %1596 = vadd.xlane.f32.xlu0 %v1595
    %v1597 = vpop.xlane.xlu0 %1596
    %v1598 = vsel %vm1102, %v1578, 0.0
    %1599 = vadd.xlane.f32.xlu0 %v1598
    %v1600 = vpop.xlane.xlu0 %1599
    %v1601 = vsel %vm1102, %v1580, 0.0
    %1602 = vadd.xlane.f32.xlu0 %v1601
    %v1603 = vpop.xlane.xlu0 %1602
    %v1604 = vsel %vm1102, %v1582, 0.0
    %1605 = vadd.xlane.f32.xlu0 %v1604
    %v1606 = vpop.xlane.xlu0 %1605
    %v1607 = vrcp.pop %v1585
    %v1608 = vrcp.pop %v1588
    %v1609 = vrcp.pop %v1591
    %v1610 = vrcp.pop %v1594
    %v1611 = vrcp.pop %v1597
    %v1612 = vrcp.pop %v1600
    %v1613 = vrcp.pop %v1603
    %v1614 = vrcp.pop %v1606
    %v1615 = vmul.f32 %v1568, %v1607
    %v1616 = vmul.f32 %v1570, %v1608
    %v1617 = vmul.f32 %v1572, %v1609
    %v1618 = vmul.f32 %v1574, %v1610
    %v1619 = vmul.f32 %v1576, %v1611
    %v1620 = vmul.f32 %v1578, %v1612
    %v1621 = vmul.f32 %v1580, %v1613
    %v1622 = vmul.f32 %v1582, %v1614
    %v1623 = vpack.c.bf16 %v1616, %v1615
    %v1624 = vpack.c.bf16 %v1618, %v1617
    %v1625 = vpack.c.bf16 %v1620, %v1619
    %v1626 = vpack.c.bf16 %v1622, %v1621
    %v1628 = vsel %vm1102, %v1623, 0
    %1630 = vmatprep.subr.bf16.mxu0 0
    %1631 = vmatpush1.bf16.msra.mxu0 %v919
    %1632 = vmatprep.subr.bf16.mxu0 0
    %1633 = vmatpush1.bf16.msra.mxu0 0
    %1634 = vmatprep.subr.bf16.mxu0 0
    %1635 = vmatpush1.bf16.msra.mxu0 0
    %1636 = vmatprep.subr.bf16.mxu0 0
    %1637 = vmatpush1.bf16.msra.mxu0 0
    %1638 = vmatprep.subr.bf16.mxu0 0
    %1639 = vmatpush1.bf16.msra.mxu0 0
    %1640 = vmatprep.subr.bf16.mxu0 0
    %1641 = vmatpush1.bf16.msra.mxu0 0
    %1642 = vmatprep.subr.bf16.mxu0 0
    %1643 = vmatpush1.bf16.msra.mxu0 0
    %1644 = vmatprep.subr.bf16.mxu0 0
    %1645 = vmatpush1.bf16.msra.mxu0 0
    %1646 = vmatprep.subr.bf16.mxu0 0
    %1647 = vmatpush1.bf16.msra.mxu0 0
    %1648 = vmatprep.subr.bf16.mxu0 0
    %1649 = vmatpush1.bf16.msra.mxu0 0
    %1650 = vmatprep.subr.bf16.mxu0 0
    %1651 = vmatpush1.bf16.msra.mxu0 0
    %1652 = vmatprep.subr.bf16.mxu0 0
    %1653 = vmatpush1.bf16.msra.mxu0 0
    %1654 = vmatprep.subr.bf16.mxu0 0
    %1655 = vmatpush1.bf16.msra.mxu0 0
    %1656 = vmatprep.subr.bf16.mxu0 0
    %1657 = vmatpush1.bf16.msra.mxu0 0
    %1658 = vmatprep.subr.bf16.mxu0 0
    %1659 = vmatpush1.bf16.msra.mxu0 0
    %1660 = vmatprep.subr.bf16.mxu0 0
    %1661 = vmatpush1.bf16.msra.mxu0 0
    %1662 = vmatprep.mubr.bf16.mxu0 0
    %1663 = vmatmul.mubr.bf16.gmra.mrb[0].mxu0 %v1628
    %v1664 = vpop.f32.mrb[0].mxu0
    %v1665 = vadd.f32 0.0, %v1664
    %v1666 = vpop.f32.mrb[0].mxu0
    %v1667 = vpop.f32.mrb[0].mxu0
    %v1668 = vadd.f32 0.0, %v1667
    %v1669 = vpop.f32.mrb[0].mxu0
    %1670 = vdwg.mxu0
    %v1672 = vsel %vm1102, %v1624, 0
    %1674 = vmatprep.subr.bf16.mxu0 0
    %1675 = vmatpush1.bf16.msra.mxu0 %v925
    %1676 = vmatprep.subr.bf16.mxu0 0
    %1677 = vmatpush1.bf16.msra.mxu0 0
    %1678 = vmatprep.subr.bf16.mxu0 0
    %1679 = vmatpush1.bf16.msra.mxu0 0
    %1680 = vmatprep.subr.bf16.mxu0 0
    %1681 = vmatpush1.bf16.msra.mxu0 0
    %1682 = vmatprep.subr.bf16.mxu0 0
    %1683 = vmatpush1.bf16.msra.mxu0 0
    %1684 = vmatprep.subr.bf16.mxu0 0
    %1685 = vmatpush1.bf16.msra.mxu0 0
    %1686 = vmatprep.subr.bf16.mxu0 0
    %1687 = vmatpush1.bf16.msra.mxu0 0
    %1688 = vmatprep.subr.bf16.mxu0 0
    %1689 = vmatpush1.bf16.msra.mxu0 0
    %1690 = vmatprep.subr.bf16.mxu0 0
    %1691 = vmatpush1.bf16.msra.mxu0 0
    %1692 = vmatprep.subr.bf16.mxu0 0
    %1693 = vmatpush1.bf16.msra.mxu0 0
    %1694 = vmatprep.subr.bf16.mxu0 0
    %1695 = vmatpush1.bf16.msra.mxu0 0
    %1696 = vmatprep.subr.bf16.mxu0 0
    %1697 = vmatpush1.bf16.msra.mxu0 0
    %1698 = vmatprep.subr.bf16.mxu0 0
    %1699 = vmatpush1.bf16.msra.mxu0 0
    %1700 = vmatprep.subr.bf16.mxu0 0
    %1701 = vmatpush1.bf16.msra.mxu0 0
    %1702 = vmatprep.subr.bf16.mxu0 0
    %1703 = vmatpush1.bf16.msra.mxu0 0
    %1704 = vmatprep.subr.bf16.mxu0 0
    %1705 = vmatpush1.bf16.msra.mxu0 0
    %1706 = vmatprep.mubr.bf16.mxu0 0
    %1707 = vmatmul.mubr.bf16.gmra.mrb[0].mxu0 %v1672
    %v1708 = vpop.f32.mrb[0].mxu0
    %v1709 = vadd.f32 0.0, %v1708
    %v1710 = vpop.f32.mrb[0].mxu0
    %v1711 = vpop.f32.mrb[0].mxu0
    %v1712 = vadd.f32 0.0, %v1711
    %v1713 = vpop.f32.mrb[0].mxu0
    %1714 = vdwg.mxu0
    %v1716 = vsel %vm1102, %v1625, 0
    %1718 = vmatprep.subr.bf16.mxu0 0
    %1719 = vmatpush1.bf16.msra.mxu0 %v931
    %1720 = vmatprep.subr.bf16.mxu0 0
    %1721 = vmatpush1.bf16.msra.mxu0 0
    %1722 = vmatprep.subr.bf16.mxu0 0
    %1723 = vmatpush1.bf16.msra.mxu0 0
    %1724 = vmatprep.subr.bf16.mxu0 0
    %1725 = vmatpush1.bf16.msra.mxu0 0
    %1726 = vmatprep.subr.bf16.mxu0 0
    %1727 = vmatpush1.bf16.msra.mxu0 0
    %1728 = vmatprep.subr.bf16.mxu0 0
    %1729 = vmatpush1.bf16.msra.mxu0 0
    %1730 = vmatprep.subr.bf16.mxu0 0
    %1731 = vmatpush1.bf16.msra.mxu0 0
    %1732 = vmatprep.subr.bf16.mxu0 0
    %1733 = vmatpush1.bf16.msra.mxu0 0
    %1734 = vmatprep.subr.bf16.mxu0 0
    %1735 = vmatpush1.bf16.msra.mxu0 0
    %1736 = vmatprep.subr.bf16.mxu0 0
    %1737 = vmatpush1.bf16.msra.mxu0 0
    %1738 = vmatprep.subr.bf16.mxu0 0
    %1739 = vmatpush1.bf16.msra.mxu0 0
    %1740 = vmatprep.subr.bf16.mxu0 0
    %1741 = vmatpush1.bf16.msra.mxu0 0
    %1742 = vmatprep.subr.bf16.mxu0 0
    %1743 = vmatpush1.bf16.msra.mxu0 0
    %1744 = vmatprep.subr.bf16.mxu0 0
    %1745 = vmatpush1.bf16.msra.mxu0 0
    %1746 = vmatprep.subr.bf16.mxu0 0
    %1747 = vmatpush1.bf16.msra.mxu0 0
    %1748 = vmatprep.subr.bf16.mxu0 0
    %1749 = vmatpush1.bf16.msra.mxu0 0
    %1750 = vmatprep.mubr.bf16.mxu0 0
    %1751 = vmatmul.mubr.bf16.gmra.mrb[0].mxu0 %v1716
    %v1752 = vpop.f32.mrb[0].mxu0
    %v1753 = vadd.f32 0.0, %v1752
    %v1754 = vpop.f32.mrb[0].mxu0
    %v1755 = vpop.f32.mrb[0].mxu0
    %v1756 = vadd.f32 0.0, %v1755
    %v1757 = vpop.f32.mrb[0].mxu0
    %1758 = vdwg.mxu0
    %v1760 = vsel %vm1102, %v1626, 0
    %1762 = vmatprep.subr.bf16.mxu0 0
    %1763 = vmatpush1.bf16.msra.mxu0 %v937
    %1764 = vmatprep.subr.bf16.mxu0 0
    %1765 = vmatpush1.bf16.msra.mxu0 0
    %1766 = vmatprep.subr.bf16.mxu0 0
    %1767 = vmatpush1.bf16.msra.mxu0 0
    %1768 = vmatprep.subr.bf16.mxu0 0
    %1769 = vmatpush1.bf16.msra.mxu0 0
    %1770 = vmatprep.subr.bf16.mxu0 0
    %1771 = vmatpush1.bf16.msra.mxu0 0
    %1772 = vmatprep.subr.bf16.mxu0 0
    %1773 = vmatpush1.bf16.msra.mxu0 0
    %1774 = vmatprep.subr.bf16.mxu0 0
    %1775 = vmatpush1.bf16.msra.mxu0 0
    %1776 = vmatprep.subr.bf16.mxu0 0
    %1777 = vmatpush1.bf16.msra.mxu0 0
    %1778 = vmatprep.subr.bf16.mxu0 0
    %1779 = vmatpush1.bf16.msra.mxu0 0
    %1780 = vmatprep.subr.bf16.mxu0 0
    %1781 = vmatpush1.bf16.msra.mxu0 0
    %1782 = vmatprep.subr.bf16.mxu0 0
    %1783 = vmatpush1.bf16.msra.mxu0 0
    %1784 = vmatprep.subr.bf16.mxu0 0
    %1785 = vmatpush1.bf16.msra.mxu0 0
    %1786 = vmatprep.subr.bf16.mxu0 0
    %1787 = vmatpush1.bf16.msra.mxu0 0
    %1788 = vmatprep.subr.bf16.mxu0 0
    %1789 = vmatpush1.bf16.msra.mxu0 0
    %1790 = vmatprep.subr.bf16.mxu0 0
    %1791 = vmatpush1.bf16.msra.mxu0 0
    %1792 = vmatprep.subr.bf16.mxu0 0
    %1793 = vmatpush1.bf16.msra.mxu0 0
    %1794 = vmatprep.mubr.bf16.mxu0 0
    %1795 = vmatmul.mubr.bf16.gmra.mrb[0].mxu0 %v1760
    %v1796 = vpop.f32.mrb[0].mxu0
    %v1797 = vadd.f32 0.0, %v1796
    %v1798 = vpop.f32.mrb[0].mxu0
    %v1799 = vpop.f32.mrb[0].mxu0
    %v1800 = vadd.f32 0.0, %v1799
    %v1801 = vpop.f32.mrb[0].mxu0
    %1802 = vdwg.mxu0
    %v1803 = vpack.c.bf16 %v1236, %v1233
    %v1804 = vpack.c.bf16 %v1668, %v1665
    %v1805 = vpack.c.bf16 %v1280, %v1277
    %v1806 = vpack.c.bf16 %v1712, %v1709
    %v1807 = vpack.c.bf16 %v1324, %v1321
    %v1808 = vpack.c.bf16 %v1756, %v1753
    %v1809 = vpack.c.bf16 %v1368, %v1365
    %v1810 = vpack.c.bf16 %v1800, %v1797
    %v1811 = vld [vmem:[#allocation7] sm:$0xff]
    %v1812 = vld [vmem:[#allocation7 + $0x8] sm:$0xff]
    %v1813 = vld [vmem:[#allocation7 + $0x10] sm:$0xff]
    %v1814 = vld [vmem:[#allocation7 + $0x18] sm:$0xff]
    %v1815 = vld [vmem:[#allocation7 + $0x20] sm:$0xff]
    %v1816 = vld [vmem:[#allocation7 + $0x28] sm:$0xff]
    %v1817 = vld [vmem:[#allocation7 + $0x30] sm:$0xff]
    %v1818 = vld [vmem:[#allocation7 + $0x38] sm:$0xff]
    %v1819 = vld [vmem:[#allocation7 + $0x40] sm:$0xff]
    %v1820 = vld [vmem:[#allocation7 + $0x48] sm:$0xff]
    %v1821 = vld [vmem:[#allocation7 + $0x50] sm:$0xff]
    %v1822 = vld [vmem:[#allocation7 + $0x58] sm:$0xff]
    %v1823 = vld [vmem:[#allocation7 + $0x60] sm:$0xff]
    %v1824 = vld [vmem:[#allocation7 + $0x68] sm:$0xff]
    %v1825 = vld [vmem:[#allocation7 + $0x70] sm:$0xff]
    %v1826 = vld [vmem:[#allocation7 + $0x78] sm:$0xff]
    %v1827 = vld [vmem:[#allocation7 + $0x80] sm:$0xff]
    %v1828 = vld [vmem:[#allocation7 + $0x88] sm:$0xff]
    %v1829 = vld [vmem:[#allocation7 + $0x90] sm:$0xff]
    %v1830 = vld [vmem:[#allocation7 + $0x98] sm:$0xff]
    %v1831 = vld [vmem:[#allocation7 + $0xa0] sm:$0xff]
    %v1832 = vld [vmem:[#allocation7 + $0xa8] sm:$0xff]
    %v1833 = vld [vmem:[#allocation7 + $0xb0] sm:$0xff]
    %v1834 = vld [vmem:[#allocation7 + $0xb8] sm:$0xff]
    %v1835 = vld [vmem:[#allocation7 + $0xc0] sm:$0xff]
    %v1836 = vld [vmem:[#allocation7 + $0xc8] sm:$0xff]
    %v1837 = vld [vmem:[#allocation7 + $0xd0] sm:$0xff]
    %v1838 = vld [vmem:[#allocation7 + $0xd8] sm:$0xff]
    %v1839 = vld [vmem:[#allocation7 + $0xe0] sm:$0xff]
    %v1840 = vld [vmem:[#allocation7 + $0xe8] sm:$0xff]
    %v1841 = vld [vmem:[#allocation7 + $0xf0] sm:$0xff]
    %v1842 = vld [vmem:[#allocation7 + $0xf8] sm:$0xff]
    %v1843 = vld [vmem:[%s4] sm:$0x3]
    %v1845 = vlaneseq
    %v1846 = vshrl.u32 %v1845, 7
    %v1847 = vsub.s32 0, %v1846
    %v1848 = vrot.slane %v1843, %v1847
    %v1849 = vlaneseq
    %v1850 = vshrl.u32 %v1849, 7
    %v1851 = vsub.s32 1, %v1850
    %v1852 = vrot.slane %v1843, %v1851
    %v1887 = vunpack.c.l.b16 %v1811
    %v1888 = vunpack.c.h.b16 %v1811
    %v1889 = vunpack.c.l.b16 %v1812
    %v1890 = vunpack.c.h.b16 %v1812
    %v1891 = vunpack.c.l.b16 %v1813
    %v1892 = vunpack.c.h.b16 %v1813
    %v1893 = vunpack.c.l.b16 %v1814
    %v1894 = vunpack.c.h.b16 %v1814
    %v1895 = vunpack.c.l.b16 %v1815
    %v1896 = vunpack.c.h.b16 %v1815
    %v1897 = vunpack.c.l.b16 %v1816
    %v1898 = vunpack.c.h.b16 %v1816
    %v1899 = vunpack.c.l.b16 %v1817
    %v1900 = vunpack.c.h.b16 %v1817
    %v1901 = vunpack.c.l.b16 %v1818
    %v1902 = vunpack.c.h.b16 %v1818
    %v1903 = vunpack.c.l.b16 %v1819
    %v1904 = vunpack.c.h.b16 %v1819
    %v1905 = vunpack.c.l.b16 %v1820
    %v1906 = vunpack.c.h.b16 %v1820
    %v1907 = vunpack.c.l.b16 %v1821
    %v1908 = vunpack.c.h.b16 %v1821
    %v1909 = vunpack.c.l.b16 %v1822
    %v1910 = vunpack.c.h.b16 %v1822
    %v1911 = vunpack.c.l.b16 %v1823
    %v1912 = vunpack.c.h.b16 %v1823
    %v1913 = vunpack.c.l.b16 %v1824
    %v1914 = vunpack.c.h.b16 %v1824
    %v1915 = vunpack.c.l.b16 %v1825
    %v1916 = vunpack.c.h.b16 %v1825
    %v1917 = vunpack.c.l.b16 %v1826
    %v1918 = vunpack.c.h.b16 %v1826
    %v1919 = vunpack.c.l.b16 %v1827
    %v1920 = vunpack.c.h.b16 %v1827
    %v1921 = vunpack.c.l.b16 %v1828
    %v1922 = vunpack.c.h.b16 %v1828
    %v1923 = vunpack.c.l.b16 %v1829
    %v1924 = vunpack.c.h.b16 %v1829
    %v1925 = vunpack.c.l.b16 %v1830
    %v1926 = vunpack.c.h.b16 %v1830
    %v1927 = vunpack.c.l.b16 %v1831
    %v1928 = vunpack.c.h.b16 %v1831
    %v1929 = vunpack.c.l.b16 %v1832
    %v1930 = vunpack.c.h.b16 %v1832
    %v1931 = vunpack.c.l.b16 %v1833
    %v1932 = vunpack.c.h.b16 %v1833
    %v1933 = vunpack.c.l.b16 %v1834
    %v1934 = vunpack.c.h.b16 %v1834
    %v1935 = vunpack.c.l.b16 %v1835
    %v1936 = vunpack.c.h.b16 %v1835
    %v1937 = vunpack.c.l.b16 %v1836
    %v1938 = vunpack.c.h.b16 %v1836
    %v1939 = vunpack.c.l.b16 %v1837
    %v1940 = vunpack.c.h.b16 %v1837
    %v1941 = vunpack.c.l.b16 %v1838
    %v1942 = vunpack.c.h.b16 %v1838
    %v1943 = vunpack.c.l.b16 %v1839
    %v1944 = vunpack.c.h.b16 %v1839
    %v1945 = vunpack.c.l.b16 %v1840
    %v1946 = vunpack.c.h.b16 %v1840
    %v1947 = vunpack.c.l.b16 %v1841
    %v1948 = vunpack.c.h.b16 %v1841
    %v1949 = vunpack.c.l.b16 %v1842
    %v1950 = vunpack.c.h.b16 %v1842
    %v1951 = vpack.c.b16 %v1889, %v1887
    %v1952 = vpack.c.b16 %v1890, %v1888
    %v1953 = vpack.c.b16 %v1893, %v1891
    %v1954 = vpack.c.b16 %v1894, %v1892
    %v1955 = vpack.c.b16 %v1897, %v1895
    %v1956 = vpack.c.b16 %v1898, %v1896
    %v1957 = vpack.c.b16 %v1901, %v1899
    %v1958 = vpack.c.b16 %v1902, %v1900
    %v1959 = vpack.c.b16 %v1905, %v1903
    %v1960 = vpack.c.b16 %v1906, %v1904
    %v1961 = vpack.c.b16 %v1909, %v1907
    %v1962 = vpack.c.b16 %v1910, %v1908
    %v1963 = vpack.c.b16 %v1913, %v1911
    %v1964 = vpack.c.b16 %v1914, %v1912
    %v1965 = vpack.c.b16 %v1917, %v1915
    %v1966 = vpack.c.b16 %v1918, %v1916
    %v1967 = vpack.c.b16 %v1921, %v1919
    %v1968 = vpack.c.b16 %v1922, %v1920
    %v1969 = vpack.c.b16 %v1925, %v1923
    %v1970 = vpack.c.b16 %v1926, %v1924
    %v1971 = vpack.c.b16 %v1929, %v1927
    %v1972 = vpack.c.b16 %v1930, %v1928
    %v1973 = vpack.c.b16 %v1933, %v1931
    %v1974 = vpack.c.b16 %v1934, %v1932
    %v1975 = vpack.c.b16 %v1937, %v1935
    %v1976 = vpack.c.b16 %v1938, %v1936
    %v1977 = vpack.c.b16 %v1941, %v1939
    %v1978 = vpack.c.b16 %v1942, %v1940
    %v1979 = vpack.c.b16 %v1945, %v1943
    %v1980 = vpack.c.b16 %v1946, %v1944
    %v1981 = vpack.c.b16 %v1949, %v1947
    %v1982 = vpack.c.b16 %v1950, %v1948
    %2015 = vmatprep.subr.bf16.mxu0 %v1952
    %2016 = vmatpush1.bf16.msra.mxu0 %v1951
    %2017 = vmatprep.subr.bf16.mxu0 %v1954
    %2018 = vmatpush1.bf16.msra.mxu0 %v1953
    %2019 = vmatprep.subr.bf16.mxu0 %v1956
    %2020 = vmatpush1.bf16.msra.mxu0 %v1955
    %2021 = vmatprep.subr.bf16.mxu0 %v1958
    %2022 = vmatpush1.bf16.msra.mxu0 %v1957
    %2023 = vmatprep.subr.bf16.mxu0 %v1960
    %2024 = vmatpush1.bf16.msra.mxu0 %v1959
    %2025 = vmatprep.subr.bf16.mxu0 %v1962
    %2026 = vmatpush1.bf16.msra.mxu0 %v1961
    %2027 = vmatprep.subr.bf16.mxu0 %v1964
    %2028 = vmatpush1.bf16.msra.mxu0 %v1963
    %2029 = vmatprep.subr.bf16.mxu0 %v1966
    %2030 = vmatpush1.bf16.msra.mxu0 %v1965
    %2031 = vmatprep.subr.bf16.mxu0 %v1968
    %2032 = vmatpush1.bf16.msra.mxu0 %v1967
    %2033 = vmatprep.subr.bf16.mxu0 %v1970
    %2034 = vmatpush1.bf16.msra.mxu0 %v1969
    %2035 = vmatprep.subr.bf16.mxu0 %v1972
    %2036 = vmatpush1.bf16.msra.mxu0 %v1971
    %2037 = vmatprep.subr.bf16.mxu0 %v1974
    %2038 = vmatpush1.bf16.msra.mxu0 %v1973
    %2039 = vmatprep.subr.bf16.mxu0 %v1976
    %2040 = vmatpush1.bf16.msra.mxu0 %v1975
    %2041 = vmatprep.subr.bf16.mxu0 %v1978
    %2042 = vmatpush1.bf16.msra.mxu0 %v1977
    %2043 = vmatprep.subr.bf16.mxu0 %v1980
    %2044 = vmatpush1.bf16.msra.mxu0 %v1979
    %2045 = vmatprep.subr.bf16.mxu0 %v1982
    %2046 = vmatpush1.bf16.msra.mxu0 %v1981
    %2047 = vmatprep.mubr.bf16.mxu0 %v1804
    %2048 = vmatmul.mubr.bf16.gmra.mrb[0].mxu0 %v1803
    %v2049 = vpop.f32.mrb[0].mxu0
    %v2050 = vadd.f32 %v1848, %v2049
    %v2051 = vpop.f32.mrb[0].mxu0
    %v2052 = vadd.f32 %v1852, %v2051
    %v2053 = vpop.f32.mrb[0].mxu0
    %v2054 = vadd.f32 %v1848, %v2053
    %v2055 = vpop.f32.mrb[0].mxu0
    %v2056 = vadd.f32 %v1852, %v2055
    %2057 = vmatprep.mubr.bf16.mxu0 %v1806
    %2058 = vmatmul.mubr.bf16.gmra.mrb[0].mxu0 %v1805
    %v2059 = vpop.f32.mrb[0].mxu0
    %v2060 = vadd.f32 %v1848, %v2059
    %v2061 = vpop.f32.mrb[0].mxu0
    %v2062 = vadd.f32 %v1852, %v2061
    %v2063 = vpop.f32.mrb[0].mxu0
    %v2064 = vadd.f32 %v1848, %v2063
    %v2065 = vpop.f32.mrb[0].mxu0
    %v2066 = vadd.f32 %v1852, %v2065
    %2067 = vmatprep.mubr.bf16.mxu0 %v1808
    %2068 = vmatmul.mubr.bf16.gmra.mrb[0].mxu0 %v1807
    %v2069 = vpop.f32.mrb[0].mxu0
    %v2070 = vadd.f32 %v1848, %v2069
    %v2071 = vpop.f32.mrb[0].mxu0
    %v2072 = vadd.f32 %v1852, %v2071
    %v2073 = vpop.f32.mrb[0].mxu0
    %v2074 = vadd.f32 %v1848, %v2073
    %v2075 = vpop.f32.mrb[0].mxu0
    %v2076 = vadd.f32 %v1852, %v2075
    %2077 = vmatprep.mubr.bf16.mxu0 %v1810
    %2078 = vmatmul.mubr.bf16.gmra.mrb[0].mxu0 %v1809
    %v2079 = vpop.f32.mrb[0].mxu0
    %v2080 = vadd.f32 %v1848, %v2079
    %v2081 = vpop.f32.mrb[0].mxu0
    %v2082 = vadd.f32 %v1852, %v2081
    %v2083 = vpop.f32.mrb[0].mxu0
    %v2084 = vadd.f32 %v1848, %v2083
    %v2085 = vpop.f32.mrb[0].mxu0
    %v2086 = vadd.f32 %v1852, %v2085
    %2087 = vdwg.mxu0
    %2088 = vst [vmem:[#allocation8] sm:$0xff] %v2050
    %2089 = vst [vmem:[#allocation8 + $0x8] sm:$0xff] %v2052
    %2090 = vst [vmem:[#allocation8 + $0x10] sm:$0xff] %v2054
    %2091 = vst [vmem:[#allocation8 + $0x18] sm:$0xff] %v2056
    %2092 = vst [vmem:[#allocation8 + $0x20] sm:$0xff] %v2060
    %2093 = vst [vmem:[#allocation8 + $0x28] sm:$0xff] %v2062
    %2094 = vst [vmem:[#allocation8 + $0x30] sm:$0xff] %v2064
    %2095 = vst [vmem:[#allocation8 + $0x38] sm:$0xff] %v2066
    %2096 = vst [vmem:[#allocation8 + $0x40] sm:$0xff] %v2070
    %2097 = vst [vmem:[#allocation8 + $0x48] sm:$0xff] %v2072
    %2098 = vst [vmem:[#allocation8 + $0x50] sm:$0xff] %v2074
    %2099 = vst [vmem:[#allocation8 + $0x58] sm:$0xff] %v2076
    %2100 = vst [vmem:[#allocation8 + $0x60] sm:$0xff] %v2080
    %2101 = vst [vmem:[#allocation8 + $0x68] sm:$0xff] %v2082
    %2102 = vst [vmem:[#allocation8 + $0x70] sm:$0xff] %v2084
    %2103 = vst [vmem:[#allocation8 + $0x78] sm:$0xff] %v2086
    // Predicated region
    $region34: #{tpu_custom_call.1} parent=1 // pred_check
      _
    $region35: #{tpu_custom_call.1} parent=1 // pred_check_branch
      %2105 = sbr.rel (0) target = $region37
    $region36: #{tpu_custom_call.1} parent=1 // pred_region
      %s2107 = ssub.s32 2048, 2048
      %2108 = vsyncadd [#allocation4], %s2107
      %s2109 = sshll.u32 [#allocation8], 4
      %s2110 = int_to_ptr.vmem [resolvable:$true] %s2109
      %2115 = dma.vmem_to_hbm [thread:$0]  %s2110, 2048, %s5, [#allocation4], 256, 256, 16
    $region37: #{tpu_custom_call.1} parent=1 // pred_fallthru
      _
    // Predicated region
    $region38: #{tpu_custom_call.1} parent=1 // pred_check
      _
    $region39: #{tpu_custom_call.1} parent=1 // pred_check_branch
      %2117 = sbr.rel (0) target = $region41
    $region40: #{tpu_custom_call.1} parent=1 // pred_region
      %2118 = dma.done [#allocation4], 2048
    $region41: #{tpu_custom_call.1} parent=1 // pred_fallthru
      _
    %2119 = vsyncpa [#allocation3], 1
    %2120 = vsyncpa [#allocation6], 1
    %2121 = vsyncpa [#allocation4], 1

// kernel: tpu_custom_call.1
$region0: #{tpu_custom_call.1}
  #allocation0 [shape = 'u32[]', space=smem, size = 0x4, offset = 0x4, fixed_abs, tag = 'smem constant byte address 0x4 - core index']
  #allocation1 [shape = 'u32[144,128]{1,0:T(1,128)}', space=vmem, size = 0x12000, scoped, tag = 'internal scratch']
  %s0 = inlined_call_operand.hbm [shape: f32[64,256], index: 0, kind: input, shape index: {}]
  %s1 = inlined_call_operand.hbm [shape: bf16[256,768], index: 1, kind: input, shape index: {}]
  %s2 = inlined_call_operand.vmem [shape: f32[1,768], index: 2, kind: input, shape index: {}]
  %s3 = inlined_call_operand.hbm [shape: bf16[256,256], index: 3, kind: input, shape index: {}]
  %s4 = inlined_call_operand.vmem [shape: f32[1,256], index: 4, kind: input, shape index: {}]
  %s5 = inlined_call_operand.hbm [shape: f32[64,256], index: 5, kind: output, shape index: {}]
  %s6 = sld [smem:[#allocation0]]
  $region42: #{tpu_custom_call.1} parent=0
    _
  %s8 = ssub.s32 1, %s6
  %s9 = scalar_select 0, %s8, %s6
  $region1: #{tpu_custom_call.1} parent=0
    #allocation2 [shape = 'u8[65536]{0}', space=vmem, size = 0x10000, scoped, tag = 'input window, operand 0, single buffered']
    #allocation3 [shape = 's32[1]{0}', space=sflag, size = 0x4, scoped, tag = 'scoped memory for tpu_custom_call.1']
    #allocation4 [shape = 's32[1]{0}', space=sflag, size = 0x4, scoped, tag = 'scoped memory for tpu_custom_call.1']
    #allocation5 [shape = 'u8[393216]{0}', space=vmem, size = 0x60000, scoped, tag = 'input window, operand 1, single buffered']
    #allocation6 [shape = 's32[1]{0}', space=sflag, size = 0x4, scoped, tag = 'scoped memory for tpu_custom_call.1']
    #allocation7 [shape = 'u8[131072]{0}', space=vmem, size = 0x20000, scoped, tag = 'input window, operand 3, single buffered']
    #allocation8 [shape = 'u8[65536]{0}', space=vmem, size = 0x10000, scoped, tag = 'output window, operand 0, single buffered']
    %10 = vsyncpa [#allocation3], 0
    %11 = vsyncpa [#allocation6], 0
    %12 = vsyncpa [#allocation4], 0
    // Predicated region
    $region2: #{tpu_custom_call.1} parent=1 // pred_check
      _
    $region3: #{tpu_custom_call.1} parent=1 // pred_check_branch
      %14 = sbr.rel (0) target = $region5
    $region4: #{tpu_custom_call.1} parent=1 // pred_region
      %s16 = ssub.s32 2048, 2048
      %17 = vsyncadd [#allocation3], %s16
      %s18 = sshll.u32 [#allocation2], 4
      %s19 = int_to_ptr.vmem [resolvable:$true] %s18
      %24 = dma.hbm_to_vmem [thread:$0]  %s0, 2048, %s19, [#allocation3], 256, 256, 16
    $region5: #{tpu_custom_call.1} parent=1 // pred_fallthru
      _
    // Predicated region
    $region6: #{tpu_custom_call.1} parent=1 // pred_check
      _
    $region7: #{tpu_custom_call.1} parent=1 // pred_check_branch
      %26 = sbr.rel (0) target = $region9
    $region8: #{tpu_custom_call.1} parent=1 // pred_region
      %s28 = ssub.s32 12288, 12288
      %29 = vsyncadd [#allocation6], %s28
      %s30 = sshll.u32 [#allocation5], 4
      %s31 = int_to_ptr.vmem [resolvable:$true] %s30
      %36 = dma.hbm_to_vmem [thread:$0]  %s1, 12288, %s31, [#allocation6], 384, 384, 24
    $region9: #{tpu_custom_call.1} parent=1 // pred_fallthru
      _
    // Predicated region
    $region10: #{tpu_custom_call.1} parent=1 // pred_check
      _
    $region11: #{tpu_custom_call.1} parent=1 // pred_check_branch
      %38 = sbr.rel (0) target = $region13
    $region12: #{tpu_custom_call.1} parent=1 // pred_region
      _
    $region13: #{tpu_custom_call.1} parent=1 // pred_fallthru
      _
    // Predicated region
    $region14: #{tpu_custom_call.1} parent=1 // pred_check
      _
    $region15: #{tpu_custom_call.1} parent=1 // pred_check_branch
      %40 = sbr.rel (0) target = $region17
    $region16: #{tpu_custom_call.1} parent=1 // pred_region
      %s42 = ssub.s32 4096, 4096
      %43 = vsyncadd [#allocation6], %s42
      %s44 = sshll.u32 [#allocation7], 4
      %s45 = int_to_ptr.vmem [resolvable:$true] %s44
      %50 = dma.hbm_to_vmem [thread:$0]  %s3, 4096, %s45, [#allocation6], 128, 128, 8
    $region17: #{tpu_custom_call.1} parent=1 // pred_fallthru
      _
    // Predicated region
    $region18: #{tpu_custom_call.1} parent=1 // pred_check
      _
    $region19: #{tpu_custom_call.1} parent=1 // pred_check_branch
      %52 = sbr.rel (0) target = $region21
    $region20: #{tpu_custom_call.1} parent=1 // pred_region
      _
    $region21: #{tpu_custom_call.1} parent=1 // pred_fallthru
      _
    // Predicated region
    $region22: #{tpu_custom_call.1} parent=1 // pred_check
      _
    $region23: #{tpu_custom_call.1} parent=1 // pred_check_branch
      %54 = sbr.rel (0) target = $region25
    $region24: #{tpu_custom_call.1} parent=1 // pred_region
      %55 = dma.done [#allocation3], 2048
    $region25: #{tpu_custom_call.1} parent=1 // pred_fallthru
      _
    // Predicated region
    $region26: #{tpu_custom_call.1} parent=1 // pred_check
      _
    $region27: #{tpu_custom_call.1} parent=1 // pred_check_branch
      %57 = sbr.rel (0) target = $region29
    $region28: #{tpu_custom_call.1} parent=1 // pred_region
      %58 = dma.done [#allocation6], 12288
    $region29: #{tpu_custom_call.1} parent=1 // pred_fallthru
      _
    // Predicated region
    $region30: #{tpu_custom_call.1} parent=1 // pred_check
      _
    $region31: #{tpu_custom_call.1} parent=1 // pred_check_branch
      %60 = sbr.rel (0) target = $region33
    $region32: #{tpu_custom_call.1} parent=1 // pred_region
      %61 = dma.done [#allocation6], 4096
    $region33: #{tpu_custom_call.1} parent=1 // pred_fallthru
      _
    %v63 = vld [vmem:[#allocation2] sm:$0xff]
    %v64 = vld [vmem:[#allocation2 + $0x8] sm:$0xff]
    %v65 = vld [vmem:[#allocation2 + $0x10] sm:$0xff]
    %v66 = vld [vmem:[#allocation2 + $0x18] sm:$0xff]
    %v67 = vld [vmem:[#allocation2 + $0x20] sm:$0xff]
    %v68 = vld [vmem:[#allocation2 + $0x28] sm:$0xff]
    %v69 = vld [vmem:[#allocation2 + $0x30] sm:$0xff]
    %v70 = vld [vmem:[#allocation2 + $0x38] sm:$0xff]
    %v71 = vld [vmem:[#allocation2 + $0x40] sm:$0xff]
    %v72 = vld [vmem:[#allocation2 + $0x48] sm:$0xff]
    %v73 = vld [vmem:[#allocation2 + $0x50] sm:$0xff]
    %v74 = vld [vmem:[#allocation2 + $0x58] sm:$0xff]
    %v75 = vld [vmem:[#allocation2 + $0x60] sm:$0xff]
    %v76 = vld [vmem:[#allocation2 + $0x68] sm:$0xff]
    %v77 = vld [vmem:[#allocation2 + $0x70] sm:$0xff]
    %v78 = vld [vmem:[#allocation2 + $0x78] sm:$0xff]
    %v79 = vpack.c.bf16 %v65, %v63
    %v80 = vpack.c.bf16 %v66, %v64
    %v81 = vpack.c.bf16 %v69, %v67
    %v82 = vpack.c.bf16 %v70, %v68
    %v83 = vpack.c.bf16 %v73, %v71
    %v84 = vpack.c.bf16 %v74, %v72
    %v85 = vpack.c.bf16 %v77, %v75
    %v86 = vpack.c.bf16 %v78, %v76
    %v87 = vld [vmem:[#allocation5] sm:$0xff]
    %v88 = vld [vmem:[#allocation5 + $0x8] sm:$0xff]
    %v89 = vld [vmem:[#allocation5 + $0x10] sm:$0xff]
    %v90 = vld [vmem:[#allocation5 + $0x18] sm:$0xff]
    %v91 = vld [vmem:[#allocation5 + $0x20] sm:$0xff]
    %v92 = vld [vmem:[#allocation5 + $0x28] sm:$0xff]
    %v93 = vld [vmem:[#allocation5 + $0x30] sm:$0xff]
    %v94 = vld [vmem:[#allocation5 + $0x38] sm:$0xff]
    %v95 = vld [vmem:[#allocation5 + $0x40] sm:$0xff]
    %v96 = vld [vmem:[#allocation5 + $0x48] sm:$0xff]
    %v97 = vld [vmem:[#allocation5 + $0x50] sm:$0xff]
    %v98 = vld [vmem:[#allocation5 + $0x58] sm:$0xff]
    %v99 = vld [vmem:[#allocation5 + $0x60] sm:$0xff]
    %v100 = vld [vmem:[#allocation5 + $0x68] sm:$0xff]
    %v101 = vld [vmem:[#allocation5 + $0x70] sm:$0xff]
    %v102 = vld [vmem:[#allocation5 + $0x78] sm:$0xff]
    %v103 = vld [vmem:[#allocation5 + $0x80] sm:$0xff]
    %v104 = vld [vmem:[#allocation5 + $0x88] sm:$0xff]
    %v105 = vld [vmem:[#allocation5 + $0x90] sm:$0xff]
    %v106 = vld [vmem:[#allocation5 + $0x98] sm:$0xff]
    %v107 = vld [vmem:[#allocation5 + $0xa0] sm:$0xff]
    %v108 = vld [vmem:[#allocation5 + $0xa8] sm:$0xff]
    %v109 = vld [vmem:[#allocation5 + $0xb0] sm:$0xff]
    %v110 = vld [vmem:[#allocation5 + $0xb8] sm:$0xff]
    %v111 = vld [vmem:[#allocation5 + $0xc0] sm:$0xff]
    %v112 = vld [vmem:[#allocation5 + $0xc8] sm:$0xff]
    %v113 = vld [vmem:[#allocation5 + $0xd0] sm:$0xff]
    %v114 = vld [vmem:[#allocation5 + $0xd8] sm:$0xff]
    %v115 = vld [vmem:[#allocation5 + $0xe0] sm:$0xff]
    %v116 = vld [vmem:[#allocation5 + $0xe8] sm:$0xff]
    %v117 = vld [vmem:[#allocation5 + $0xf0] sm:$0xff]
    %v118 = vld [vmem:[#allocation5 + $0xf8] sm:$0xff]
    %v119 = vld [vmem:[#allocation5 + $0x100] sm:$0xff]
    %v120 = vld [vmem:[#allocation5 + $0x108] sm:$0xff]
    %v121 = vld [vmem:[#allocation5 + $0x110] sm:$0xff]
    %v122 = vld [vmem:[#allocation5 + $0x118] sm:$0xff]
    %v123 = vld [vmem:[#allocation5 + $0x120] sm:$0xff]
    %v124 = vld [vmem:[#allocation5 + $0x128] sm:$0xff]
    %v125 = vld [vmem:[#allocation5 + $0x130] sm:$0xff]
    %v126 = vld [vmem:[#allocation5 + $0x138] sm:$0xff]
    %v127 = vld [vmem:[#allocation5 + $0x140] sm:$0xff]
    %v128 = vld [vmem:[#allocation5 + $0x148] sm:$0xff]
    %v129 = vld [vmem:[#allocation5 + $0x150] sm:$0xff]
    %v130 = vld [vmem:[#allocation5 + $0x158] sm:$0xff]
    %v131 = vld [vmem:[#allocation5 + $0x160] sm:$0xff]
    %v132 = vld [vmem:[#allocation5 + $0x168] sm:$0xff]
    %v133 = vld [vmem:[#allocation5 + $0x170] sm:$0xff]
    %v134 = vld [vmem:[#allocation5 + $0x178] sm:$0xff]
    %v135 = vld [vmem:[#allocation5 + $0x180] sm:$0xff]
    %v136 = vld [vmem:[#allocation5 + $0x188] sm:$0xff]
    %v137 = vld [vmem:[#allocation5 + $0x190] sm:$0xff]
    %v138 = vld [vmem:[#allocation5 + $0x198] sm:$0xff]
    %v139 = vld [vmem:[#allocation5 + $0x1a0] sm:$0xff]
    %v140 = vld [vmem:[#allocation5 + $0x1a8] sm:$0xff]
    %v141 = vld [vmem:[#allocation5 + $0x1b0] sm:$0xff]
    %v142 = vld [vmem:[#allocation5 + $0x1b8] sm:$0xff]
    %v143 = vld [vmem:[#allocation5 + $0x1c0] sm:$0xff]
    %v144 = vld [vmem:[#allocation5 + $0x1c8] sm:$0xff]
    %v145 = vld [vmem:[#allocation5 + $0x1d0] sm:$0xff]
    %v146 = vld [vmem:[#allocation5 + $0x1d8] sm:$0xff]
    %v147 = vld [vmem:[#allocation5 + $0x1e0] sm:$0xff]
    %v148 = vld [vmem:[#allocation5 + $0x1e8] sm:$0xff]
    %v149 = vld [vmem:[#allocation5 + $0x1f0] sm:$0xff]
    %v150 = vld [vmem:[#allocation5 + $0x1f8] sm:$0xff]
    %v151 = vld [vmem:[#allocation5 + $0x200] sm:$0xff]
    %v152 = vld [vmem:[#allocation5 + $0x208] sm:$0xff]
    %v153 = vld [vmem:[#allocation5 + $0x210] sm:$0xff]
    %v154 = vld [vmem:[#allocation5 + $0x218] sm:$0xff]
    %v155 = vld [vmem:[#allocation5 + $0x220] sm:$0xff]
    %v156 = vld [vmem:[#allocation5 + $0x228] sm:$0xff]
    %v157 = vld [vmem:[#allocation5 + $0x230] sm:$0xff]
    %v158 = vld [vmem:[#allocation5 + $0x238] sm:$0xff]
    %v159 = vld [vmem:[#allocation5 + $0x240] sm:$0xff]
    %v160 = vld [vmem:[#allocation5 + $0x248] sm:$0xff]
    %v161 = vld [vmem:[#allocation5 + $0x250] sm:$0xff]
    %v162 = vld [vmem:[#allocation5 + $0x258] sm:$0xff]
    %v163 = vld [vmem:[#allocation5 + $0x260] sm:$0xff]
    %v164 = vld [vmem:[#allocation5 + $0x268] sm:$0xff]
    %v165 = vld [vmem:[#allocation5 + $0x270] sm:$0xff]
    %v166 = vld [vmem:[#allocation5 + $0x278] sm:$0xff]
    %v167 = vld [vmem:[#allocation5 + $0x280] sm:$0xff]
    %v168 = vld [vmem:[#allocation5 + $0x288] sm:$0xff]
    %v169 = vld [vmem:[#allocation5 + $0x290] sm:$0xff]
    %v170 = vld [vmem:[#allocation5 + $0x298] sm:$0xff]
    %v171 = vld [vmem:[#allocation5 + $0x2a0] sm:$0xff]
    %v172 = vld [vmem:[#allocation5 + $0x2a8] sm:$0xff]
    %v173 = vld [vmem:[#allocation5 + $0x2b0] sm:$0xff]
    %v174 = vld [vmem:[#allocation5 + $0x2b8] sm:$0xff]
    %v175 = vld [vmem:[#allocation5 + $0x2c0] sm:$0xff]
    %v176 = vld [vmem:[#allocation5 + $0x2c8] sm:$0xff]
    %v177 = vld [vmem:[#allocation5 + $0x2d0] sm:$0xff]
    %v178 = vld [vmem:[#allocation5 + $0x2d8] sm:$0xff]
    %v179 = vld [vmem:[#allocation5 + $0x2e0] sm:$0xff]
    %v180 = vld [vmem:[#allocation5 + $0x2e8] sm:$0xff]
    %v181 = vld [vmem:[#allocation5 + $0x2f0] sm:$0xff]
    %v182 = vld [vmem:[#allocation5 + $0x2f8] sm:$0xff]
    %v183 = vld [vmem:[%s2] sm:$0x3f]
    %v185 = vlaneseq
    %v186 = vshrl.u32 %v185, 7
    %v187 = vsub.s32 0, %v186
    %v188 = vrot.slane %v183, %v187
    %v189 = vlaneseq
    %v190 = vshrl.u32 %v189, 7
    %v191 = vsub.s32 1, %v190
    %v192 = vrot.slane %v183, %v191
    %v193 = vlaneseq
    %v194 = vshrl.u32 %v193, 7
    %v195 = vsub.s32 2, %v194
    %v196 = vrot.slane %v183, %v195
    %v197 = vlaneseq
    %v198 = vshrl.u32 %v197, 7
    %v199 = vsub.s32 3, %v198
    %v200 = vrot.slane %v183, %v199
    %v201 = vlaneseq
    %v202 = vshrl.u32 %v201, 7
    %v203 = vsub.s32 4, %v202
    %v204 = vrot.slane %v183, %v203
    %v205 = vlaneseq
    %v206 = vshrl.u32 %v205, 7
    %v207 = vsub.s32 5, %v206
    %v208 = vrot.slane %v183, %v207
    %v311 = vunpack.c.l.b16 %v87
    %v312 = vunpack.c.h.b16 %v87
    %v313 = vunpack.c.l.b16 %v88
    %v314 = vunpack.c.h.b16 %v88
    %v315 = vunpack.c.l.b16 %v89
    %v316 = vunpack.c.h.b16 %v89
    %v317 = vunpack.c.l.b16 %v90
    %v318 = vunpack.c.h.b16 %v90
    %v319 = vunpack.c.l.b16 %v91
    %v320 = vunpack.c.h.b16 %v91
    %v321 = vunpack.c.l.b16 %v92
    %v322 = vunpack.c.h.b16 %v92
    %v323 = vunpack.c.l.b16 %v93
    %v324 = vunpack.c.h.b16 %v93
    %v325 = vunpack.c.l.b16 %v94
    %v326 = vunpack.c.h.b16 %v94
    %v327 = vunpack.c.l.b16 %v95
    %v328 = vunpack.c.h.b16 %v95
    %v329 = vunpack.c.l.b16 %v96
    %v330 = vunpack.c.h.b16 %v96
    %v331 = vunpack.c.l.b16 %v97
    %v332 = vunpack.c.h.b16 %v97
    %v333 = vunpack.c.l.b16 %v98
    %v334 = vunpack.c.h.b16 %v98
    %v335 = vunpack.c.l.b16 %v99
    %v336 = vunpack.c.h.b16 %v99
    %v337 = vunpack.c.l.b16 %v100
    %v338 = vunpack.c.h.b16 %v100
    %v339 = vunpack.c.l.b16 %v101
    %v340 = vunpack.c.h.b16 %v101
    %v341 = vunpack.c.l.b16 %v102
    %v342 = vunpack.c.h.b16 %v102
    %v343 = vunpack.c.l.b16 %v103
    %v344 = vunpack.c.h.b16 %v103
    %v345 = vunpack.c.l.b16 %v104
    %v346 = vunpack.c.h.b16 %v104
    %v347 = vunpack.c.l.b16 %v105
    %v348 = vunpack.c.h.b16 %v105
    %v349 = vunpack.c.l.b16 %v106
    %v350 = vunpack.c.h.b16 %v106
    %v351 = vunpack.c.l.b16 %v107
    %v352 = vunpack.c.h.b16 %v107
    %v353 = vunpack.c.l.b16 %v108
    %v354 = vunpack.c.h.b16 %v108
    %v355 = vunpack.c.l.b16 %v109
    %v356 = vunpack.c.h.b16 %v109
    %v357 = vunpack.c.l.b16 %v110
    %v358 = vunpack.c.h.b16 %v110
    %v359 = vunpack.c.l.b16 %v111
    %v360 = vunpack.c.h.b16 %v111
    %v361 = vunpack.c.l.b16 %v112
    %v362 = vunpack.c.h.b16 %v112
    %v363 = vunpack.c.l.b16 %v113
    %v364 = vunpack.c.h.b16 %v113
    %v365 = vunpack.c.l.b16 %v114
    %v366 = vunpack.c.h.b16 %v114
    %v367 = vunpack.c.l.b16 %v115
    %v368 = vunpack.c.h.b16 %v115
    %v369 = vunpack.c.l.b16 %v116
    %v370 = vunpack.c.h.b16 %v116
    %v371 = vunpack.c.l.b16 %v117
    %v372 = vunpack.c.h.b16 %v117
    %v373 = vunpack.c.l.b16 %v118
    %v374 = vunpack.c.h.b16 %v118
    %v375 = vunpack.c.l.b16 %v119
    %v376 = vunpack.c.h.b16 %v119
    %v377 = vunpack.c.l.b16 %v120
    %v378 = vunpack.c.h.b16 %v120
    %v379 = vunpack.c.l.b16 %v121
    %v380 = vunpack.c.h.b16 %v121
    %v381 = vunpack.c.l.b16 %v122
    %v382 = vunpack.c.h.b16 %v122
    %v383 = vunpack.c.l.b16 %v123
    %v384 = vunpack.c.h.b16 %v123
    %v385 = vunpack.c.l.b16 %v124
    %v386 = vunpack.c.h.b16 %v124
    %v387 = vunpack.c.l.b16 %v125
    %v388 = vunpack.c.h.b16 %v125
    %v389 = vunpack.c.l.b16 %v126
    %v390 = vunpack.c.h.b16 %v126
    %v391 = vunpack.c.l.b16 %v127
    %v392 = vunpack.c.h.b16 %v127
    %v393 = vunpack.c.l.b16 %v128
    %v394 = vunpack.c.h.b16 %v128
    %v395 = vunpack.c.l.b16 %v129
    %v396 = vunpack.c.h.b16 %v129
    %v397 = vunpack.c.l.b16 %v130
    %v398 = vunpack.c.h.b16 %v130
    %v399 = vunpack.c.l.b16 %v131
    %v400 = vunpack.c.h.b16 %v131
    %v401 = vunpack.c.l.b16 %v132
    %v402 = vunpack.c.h.b16 %v132
    %v403 = vunpack.c.l.b16 %v133
    %v404 = vunpack.c.h.b16 %v133
    %v405 = vunpack.c.l.b16 %v134
    %v406 = vunpack.c.h.b16 %v134
    %v407 = vunpack.c.l.b16 %v135
    %v408 = vunpack.c.h.b16 %v135
    %v409 = vunpack.c.l.b16 %v136
    %v410 = vunpack.c.h.b16 %v136
    %v411 = vunpack.c.l.b16 %v137
    %v412 = vunpack.c.h.b16 %v137
    %v413 = vunpack.c.l.b16 %v138
    %v414 = vunpack.c.h.b16 %v138
    %v415 = vunpack.c.l.b16 %v139
    %v416 = vunpack.c.h.b16 %v139
    %v417 = vunpack.c.l.b16 %v140
    %v418 = vunpack.c.h.b16 %v140
    %v419 = vunpack.c.l.b16 %v141
    %v420 = vunpack.c.h.b16 %v141
    %v421 = vunpack.c.l.b16 %v142
    %v422 = vunpack.c.h.b16 %v142
    %v423 = vunpack.c.l.b16 %v143
    %v424 = vunpack.c.h.b16 %v143
    %v425 = vunpack.c.l.b16 %v144
    %v426 = vunpack.c.h.b16 %v144
    %v427 = vunpack.c.l.b16 %v145
    %v428 = vunpack.c.h.b16 %v145
    %v429 = vunpack.c.l.b16 %v146
    %v430 = vunpack.c.h.b16 %v146
    %v431 = vunpack.c.l.b16 %v147
    %v432 = vunpack.c.h.b16 %v147
    %v433 = vunpack.c.l.b16 %v148
    %v434 = vunpack.c.h.b16 %v148
    %v435 = vunpack.c.l.b16 %v149
    %v436 = vunpack.c.h.b16 %v149
    %v437 = vunpack.c.l.b16 %v150
    %v438 = vunpack.c.h.b16 %v150
    %v439 = vunpack.c.l.b16 %v151
    %v440 = vunpack.c.h.b16 %v151
    %v441 = vunpack.c.l.b16 %v152
    %v442 = vunpack.c.h.b16 %v152
    %v443 = vunpack.c.l.b16 %v153
    %v444 = vunpack.c.h.b16 %v153
    %v445 = vunpack.c.l.b16 %v154
    %v446 = vunpack.c.h.b16 %v154
    %v447 = vunpack.c.l.b16 %v155
    %v448 = vunpack.c.h.b16 %v155
    %v449 = vunpack.c.l.b16 %v156
    %v450 = vunpack.c.h.b16 %v156
    %v451 = vunpack.c.l.b16 %v157
    %v452 = vunpack.c.h.b16 %v157
    %v453 = vunpack.c.l.b16 %v158
    %v454 = vunpack.c.h.b16 %v158
    %v455 = vunpack.c.l.b16 %v159
    %v456 = vunpack.c.h.b16 %v159
    %v457 = vunpack.c.l.b16 %v160
    %v458 = vunpack.c.h.b16 %v160
    %v459 = vunpack.c.l.b16 %v161
    %v460 = vunpack.c.h.b16 %v161
    %v461 = vunpack.c.l.b16 %v162
    %v462 = vunpack.c.h.b16 %v162
    %v463 = vunpack.c.l.b16 %v163
    %v464 = vunpack.c.h.b16 %v163
    %v465 = vunpack.c.l.b16 %v164
    %v466 = vunpack.c.h.b16 %v164
    %v467 = vunpack.c.l.b16 %v165
    %v468 = vunpack.c.h.b16 %v165
    %v469 = vunpack.c.l.b16 %v166
    %v470 = vunpack.c.h.b16 %v166
    %v471 = vunpack.c.l.b16 %v167
    %v472 = vunpack.c.h.b16 %v167
    %v473 = vunpack.c.l.b16 %v168
    %v474 = vunpack.c.h.b16 %v168
    %v475 = vunpack.c.l.b16 %v169
    %v476 = vunpack.c.h.b16 %v169
    %v477 = vunpack.c.l.b16 %v170
    %v478 = vunpack.c.h.b16 %v170
    %v479 = vunpack.c.l.b16 %v171
    %v480 = vunpack.c.h.b16 %v171
    %v481 = vunpack.c.l.b16 %v172
    %v482 = vunpack.c.h.b16 %v172
    %v483 = vunpack.c.l.b16 %v173
    %v484 = vunpack.c.h.b16 %v173
    %v485 = vunpack.c.l.b16 %v174
    %v486 = vunpack.c.h.b16 %v174
    %v487 = vunpack.c.l.b16 %v175
    %v488 = vunpack.c.h.b16 %v175
    %v489 = vunpack.c.l.b16 %v176
    %v490 = vunpack.c.h.b16 %v176
    %v491 = vunpack.c.l.b16 %v177
    %v492 = vunpack.c.h.b16 %v177
    %v493 = vunpack.c.l.b16 %v178
    %v494 = vunpack.c.h.b16 %v178
    %v495 = vunpack.c.l.b16 %v179
    %v496 = vunpack.c.h.b16 %v179
    %v497 = vunpack.c.l.b16 %v180
    %v498 = vunpack.c.h.b16 %v180
    %v499 = vunpack.c.l.b16 %v181
    %v500 = vunpack.c.h.b16 %v181
    %v501 = vunpack.c.l.b16 %v182
    %v502 = vunpack.c.h.b16 %v182
    %v503 = vpack.c.b16 %v317, %v311
    %v504 = vpack.c.b16 %v318, %v312
    %v505 = vpack.c.b16 %v319, %v313
    %v506 = vpack.c.b16 %v320, %v314
    %v507 = vpack.c.b16 %v321, %v315
    %v508 = vpack.c.b16 %v322, %v316
    %v509 = vpack.c.b16 %v329, %v323
    %v510 = vpack.c.b16 %v330, %v324
    %v511 = vpack.c.b16 %v331, %v325
    %v512 = vpack.c.b16 %v332, %v326
    %v513 = vpack.c.b16 %v333, %v327
    %v514 = vpack.c.b16 %v334, %v328
    %v515 = vpack.c.b16 %v341, %v335
    %v516 = vpack.c.b16 %v342, %v336
    %v517 = vpack.c.b16 %v343, %v337
    %v518 = vpack.c.b16 %v344, %v338
    %v519 = vpack.c.b16 %v345, %v339
    %v520 = vpack.c.b16 %v346, %v340
    %v521 = vpack.c.b16 %v353, %v347
    %v522 = vpack.c.b16 %v354, %v348
    %v523 = vpack.c.b16 %v355, %v349
    %v524 = vpack.c.b16 %v356, %v350
    %v525 = vpack.c.b16 %v357, %v351
    %v526 = vpack.c.b16 %v358, %v352
    %v527 = vpack.c.b16 %v365, %v359
    %v528 = vpack.c.b16 %v366, %v360
    %v529 = vpack.c.b16 %v367, %v361
    %v530 = vpack.c.b16 %v368, %v362
    %v531 = vpack.c.b16 %v369, %v363
    %v532 = vpack.c.b16 %v370, %v364
    %v533 = vpack.c.b16 %v377, %v371
    %v534 = vpack.c.b16 %v378, %v372
    %v535 = vpack.c.b16 %v379, %v373
    %v536 = vpack.c.b16 %v380, %v374
    %v537 = vpack.c.b16 %v381, %v375
    %v538 = vpack.c.b16 %v382, %v376
    %v539 = vpack.c.b16 %v389, %v383
    %v540 = vpack.c.b16 %v390, %v384
    %v541 = vpack.c.b16 %v391, %v385
    %v542 = vpack.c.b16 %v392, %v386
    %v543 = vpack.c.b16 %v393, %v387
    %v544 = vpack.c.b16 %v394, %v388
    %v545 = vpack.c.b16 %v401, %v395
    %v546 = vpack.c.b16 %v402, %v396
    %v547 = vpack.c.b16 %v403, %v397
    %v548 = vpack.c.b16 %v404, %v398
    %v549 = vpack.c.b16 %v405, %v399
    %v550 = vpack.c.b16 %v406, %v400
    %v551 = vpack.c.b16 %v413, %v407
    %v552 = vpack.c.b16 %v414, %v408
    %v553 = vpack.c.b16 %v415, %v409
    %v554 = vpack.c.b16 %v416, %v410
    %v555 = vpack.c.b16 %v417, %v411
    %v556 = vpack.c.b16 %v418, %v412
    %v557 = vpack.c.b16 %v425, %v419
    %v558 = vpack.c.b16 %v426, %v420
    %v559 = vpack.c.b16 %v427, %v421
    %v560 = vpack.c.b16 %v428, %v422
    %v561 = vpack.c.b16 %v429, %v423
    %v562 = vpack.c.b16 %v430, %v424
    %v563 = vpack.c.b16 %v437, %v431
    %v564 = vpack.c.b16 %v438, %v432
    %v565 = vpack.c.b16 %v439, %v433
    %v566 = vpack.c.b16 %v440, %v434
    %v567 = vpack.c.b16 %v441, %v435
    %v568 = vpack.c.b16 %v442, %v436
    %v569 = vpack.c.b16 %v449, %v443
    %v570 = vpack.c.b16 %v450, %v444
    %v571 = vpack.c.b16 %v451, %v445
    %v572 = vpack.c.b16 %v452, %v446
    %v573 = vpack.c.b16 %v453, %v447
    %v574 = vpack.c.b16 %v454, %v448
    %v575 = vpack.c.b16 %v461, %v455
    %v576 = vpack.c.b16 %v462, %v456
    %v577 = vpack.c.b16 %v463, %v457
    %v578 = vpack.c.b16 %v464, %v458
    %v579 = vpack.c.b16 %v465, %v459
    %v580 = vpack.c.b16 %v466, %v460
    %v581 = vpack.c.b16 %v473, %v467
    %v582 = vpack.c.b16 %v474, %v468
    %v583 = vpack.c.b16 %v475, %v469
    %v584 = vpack.c.b16 %v476, %v470
    %v585 = vpack.c.b16 %v477, %v471
    %v586 = vpack.c.b16 %v478, %v472
    %v587 = vpack.c.b16 %v485, %v479
    %v588 = vpack.c.b16 %v486, %v480
    %v589 = vpack.c.b16 %v487, %v481
    %v590 = vpack.c.b16 %v488, %v482
    %v591 = vpack.c.b16 %v489, %v483
    %v592 = vpack.c.b16 %v490, %v484
    %v593 = vpack.c.b16 %v497, %v491
    %v594 = vpack.c.b16 %v498, %v492
    %v595 = vpack.c.b16 %v499, %v493
    %v596 = vpack.c.b16 %v500, %v494
    %v597 = vpack.c.b16 %v501, %v495
    %v598 = vpack.c.b16 %v502, %v496
    %695 = vmatprep.subr.bf16.mxu0 %v504
    %696 = vmatpush1.bf16.msra.mxu0 %v503
    %697 = vmatprep.subr.bf16.mxu0 %v510
    %698 = vmatpush1.bf16.msra.mxu0 %v509
    %699 = vmatprep.subr.bf16.mxu0 %v516
    %700 = vmatpush1.bf16.msra.mxu0 %v515
    %701 = vmatprep.subr.bf16.mxu0 %v522
    %702 = vmatpush1.bf16.msra.mxu0 %v521
    %703 = vmatprep.subr.bf16.mxu0 %v528
    %704 = vmatpush1.bf16.msra.mxu0 %v527
    %705 = vmatprep.subr.bf16.mxu0 %v534
    %706 = vmatpush1.bf16.msra.mxu0 %v533
    %707 = vmatprep.subr.bf16.mxu0 %v540
    %708 = vmatpush1.bf16.msra.mxu0 %v539
    %709 = vmatprep.subr.bf16.mxu0 %v546
    %710 = vmatpush1.bf16.msra.mxu0 %v545
    %711 = vmatprep.subr.bf16.mxu0 %v552
    %712 = vmatpush1.bf16.msra.mxu0 %v551
    %713 = vmatprep.subr.bf16.mxu0 %v558
    %714 = vmatpush1.bf16.msra.mxu0 %v557
    %715 = vmatprep.subr.bf16.mxu0 %v564
    %716 = vmatpush1.bf16.msra.mxu0 %v563
    %717 = vmatprep.subr.bf16.mxu0 %v570
    %718 = vmatpush1.bf16.msra.mxu0 %v569
    %719 = vmatprep.subr.bf16.mxu0 %v576
    %720 = vmatpush1.bf16.msra.mxu0 %v575
    %721 = vmatprep.subr.bf16.mxu0 %v582
    %722 = vmatpush1.bf16.msra.mxu0 %v581
    %723 = vmatprep.subr.bf16.mxu0 %v588
    %724 = vmatpush1.bf16.msra.mxu0 %v587
    %725 = vmatprep.subr.bf16.mxu0 %v594
    %726 = vmatpush1.bf16.msra.mxu0 %v593
    %727 = vmatprep.mubr.bf16.mxu0 %v80
    %728 = vmatmul.mubr.bf16.gmra.mrb[0].mxu0 %v79
    %v729 = vpop.f32.mrb[0].mxu0
    %v730 = vadd.f32 %v188, %v729
    %v731 = vpop.f32.mrb[0].mxu0
    %v732 = vadd.f32 %v192, %v731
    %v733 = vpop.f32.mrb[0].mxu0
    %v734 = vadd.f32 %v188, %v733
    %v735 = vpop.f32.mrb[0].mxu0
    %v736 = vadd.f32 %v192, %v735
    %737 = vmatprep.mubr.bf16.mxu0 %v82
    %738 = vmatmul.mubr.bf16.gmra.mrb[0].mxu0 %v81
    %v739 = vpop.f32.mrb[0].mxu0
    %v740 = vadd.f32 %v188, %v739
    %v741 = vpop.f32.mrb[0].mxu0
    %v742 = vadd.f32 %v192, %v741
    %v743 = vpop.f32.mrb[0].mxu0
    %v744 = vadd.f32 %v188, %v743
    %v745 = vpop.f32.mrb[0].mxu0
    %v746 = vadd.f32 %v192, %v745
    %747 = vmatprep.mubr.bf16.mxu0 %v84
    %748 = vmatmul.mubr.bf16.gmra.mrb[0].mxu0 %v83
    %v749 = vpop.f32.mrb[0].mxu0
    %v750 = vadd.f32 %v188, %v749
    %v751 = vpop.f32.mrb[0].mxu0
    %v752 = vadd.f32 %v192, %v751
    %v753 = vpop.f32.mrb[0].mxu0
    %v754 = vadd.f32 %v188, %v753
    %v755 = vpop.f32.mrb[0].mxu0
    %v756 = vadd.f32 %v192, %v755
    %757 = vmatprep.mubr.bf16.mxu0 %v86
    %758 = vmatmul.mubr.bf16.gmra.mrb[0].mxu0 %v85
    %v759 = vpop.f32.mrb[0].mxu0
    %v760 = vadd.f32 %v188, %v759
    %v761 = vpop.f32.mrb[0].mxu0
    %v762 = vadd.f32 %v192, %v761
    %v763 = vpop.f32.mrb[0].mxu0
    %v764 = vadd.f32 %v188, %v763
    %v765 = vpop.f32.mrb[0].mxu0
    %v766 = vadd.f32 %v192, %v765
    %767 = vdwg.mxu0
    %768 = vmatprep.subr.bf16.mxu0 %v506
    %769 = vmatpush1.bf16.msra.mxu0 %v505
    %770 = vmatprep.subr.bf16.mxu0 %v512
    %771 = vmatpush1.bf16.msra.mxu0 %v511
    %772 = vmatprep.subr.bf16.mxu0 %v518
    %773 = vmatpush1.bf16.msra.mxu0 %v517
    %774 = vmatprep.subr.bf16.mxu0 %v524
    %775 = vmatpush1.bf16.msra.mxu0 %v523
    %776 = vmatprep.subr.bf16.mxu0 %v530
    %777 = vmatpush1.bf16.msra.mxu0 %v529
    %778 = vmatprep.subr.bf16.mxu0 %v536
    %779 = vmatpush1.bf16.msra.mxu0 %v535
    %780 = vmatprep.subr.bf16.mxu0 %v542
    %781 = vmatpush1.bf16.msra.mxu0 %v541
    %782 = vmatprep.subr.bf16.mxu0 %v548
    %783 = vmatpush1.bf16.msra.mxu0 %v547
    %784 = vmatprep.subr.bf16.mxu0 %v554
    %785 = vmatpush1.bf16.msra.mxu0 %v553
    %786 = vmatprep.subr.bf16.mxu0 %v560
    %787 = vmatpush1.bf16.msra.mxu0 %v559
    %788 = vmatprep.subr.bf16.mxu0 %v566
    %789 = vmatpush1.bf16.msra.mxu0 %v565
    %790 = vmatprep.subr.bf16.mxu0 %v572
    %791 = vmatpush1.bf16.msra.mxu0 %v571
    %792 = vmatprep.subr.bf16.mxu0 %v578
    %793 = vmatpush1.bf16.msra.mxu0 %v577
    %794 = vmatprep.subr.bf16.mxu0 %v584
    %795 = vmatpush1.bf16.msra.mxu0 %v583
    %796 = vmatprep.subr.bf16.mxu0 %v590
    %797 = vmatpush1.bf16.msra.mxu0 %v589
    %798 = vmatprep.subr.bf16.mxu0 %v596
    %799 = vmatpush1.bf16.msra.mxu0 %v595
    %800 = vmatprep.mubr.bf16.mxu0 %v80
    %801 = vmatmul.mubr.bf16.gmra.mrb[0].mxu0 %v79
    %v802 = vpop.f32.mrb[0].mxu0
    %v803 = vadd.f32 %v196, %v802
    %v804 = vpop.f32.mrb[0].mxu0
    %v805 = vadd.f32 %v200, %v804
    %v806 = vpop.f32.mrb[0].mxu0
    %v807 = vadd.f32 %v196, %v806
    %v808 = vpop.f32.mrb[0].mxu0
    %v809 = vadd.f32 %v200, %v808
    %810 = vmatprep.mubr.bf16.mxu0 %v82
    %811 = vmatmul.mubr.bf16.gmra.mrb[0].mxu0 %v81
    %v812 = vpop.f32.mrb[0].mxu0
    %v813 = vadd.f32 %v196, %v812
    %v814 = vpop.f32.mrb[0].mxu0
    %v815 = vadd.f32 %v200, %v814
    %v816 = vpop.f32.mrb[0].mxu0
    %v817 = vadd.f32 %v196, %v816
    %v818 = vpop.f32.mrb[0].mxu0
    %v819 = vadd.f32 %v200, %v818
    %820 = vmatprep.mubr.bf16.mxu0 %v84
    %821 = vmatmul.mubr.bf16.gmra.mrb[0].mxu0 %v83
    %v822 = vpop.f32.mrb[0].mxu0
    %v823 = vadd.f32 %v196, %v822
    %v824 = vpop.f32.mrb[0].mxu0
    %v825 = vadd.f32 %v200, %v824
    %v826 = vpop.f32.mrb[0].mxu0
    %v827 = vadd.f32 %v196, %v826
    %v828 = vpop.f32.mrb[0].mxu0
    %v829 = vadd.f32 %v200, %v828
    %830 = vmatprep.mubr.bf16.mxu0 %v86
    %831 = vmatmul.mubr.bf16.gmra.mrb[0].mxu0 %v85
    %v832 = vpop.f32.mrb[0].mxu0
    %v833 = vadd.f32 %v196, %v832
    %v834 = vpop.f32.mrb[0].mxu0
    %v835 = vadd.f32 %v200, %v834
    %v836 = vpop.f32.mrb[0].mxu0
    %v837 = vadd.f32 %v196, %v836
    %v838 = vpop.f32.mrb[0].mxu0
    %v839 = vadd.f32 %v200, %v838
    %840 = vdwg.mxu0
    %841 = vmatprep.subr.bf16.mxu0 %v508
    %842 = vmatpush1.bf16.msra.mxu0 %v507
    %843 = vmatprep.subr.bf16.mxu0 %v514
    %844 = vmatpush1.bf16.msra.mxu0 %v513
    %845 = vmatprep.subr.bf16.mxu0 %v520
    %846 = vmatpush1.bf16.msra.mxu0 %v519
    %847 = vmatprep.subr.bf16.mxu0 %v526
    %848 = vmatpush1.bf16.msra.mxu0 %v525
    %849 = vmatprep.subr.bf16.mxu0 %v532
    %850 = vmatpush1.bf16.msra.mxu0 %v531
    %851 = vmatprep.subr.bf16.mxu0 %v538
    %852 = vmatpush1.bf16.msra.mxu0 %v537
    %853 = vmatprep.subr.bf16.mxu0 %v544
    %854 = vmatpush1.bf16.msra.mxu0 %v543
    %855 = vmatprep.subr.bf16.mxu0 %v550
    %856 = vmatpush1.bf16.msra.mxu0 %v549
    %857 = vmatprep.subr.bf16.mxu0 %v556
    %858 = vmatpush1.bf16.msra.mxu0 %v555
    %859 = vmatprep.subr.bf16.mxu0 %v562
    %860 = vmatpush1.bf16.msra.mxu0 %v561
    %861 = vmatprep.subr.bf16.mxu0 %v568
    %862 = vmatpush1.bf16.msra.mxu0 %v567
    %863 = vmatprep.subr.bf16.mxu0 %v574
    %864 = vmatpush1.bf16.msra.mxu0 %v573
    %865 = vmatprep.subr.bf16.mxu0 %v580
    %866 = vmatpush1.bf16.msra.mxu0 %v579
    %867 = vmatprep.subr.bf16.mxu0 %v586
    %868 = vmatpush1.bf16.msra.mxu0 %v585
    %869 = vmatprep.subr.bf16.mxu0 %v592
    %870 = vmatpush1.bf16.msra.mxu0 %v591
    %871 = vmatprep.subr.bf16.mxu0 %v598
    %872 = vmatpush1.bf16.msra.mxu0 %v597
    %873 = vmatprep.mubr.bf16.mxu0 %v80
    %874 = vmatmul.mubr.bf16.gmra.mrb[0].mxu0 %v79
    %v875 = vpop.f32.mrb[0].mxu0
    %v876 = vadd.f32 %v204, %v875
    %v877 = vpop.f32.mrb[0].mxu0
    %v878 = vadd.f32 %v208, %v877
    %v879 = vpop.f32.mrb[0].mxu0
    %v880 = vadd.f32 %v204, %v879
    %v881 = vpop.f32.mrb[0].mxu0
    %v882 = vadd.f32 %v208, %v881
    %883 = vmatprep.mubr.bf16.mxu0 %v82
    %884 = vmatmul.mubr.bf16.gmra.mrb[0].mxu0 %v81
    %v885 = vpop.f32.mrb[0].mxu0
    %v886 = vadd.f32 %v204, %v885
    %v887 = vpop.f32.mrb[0].mxu0
    %v888 = vadd.f32 %v208, %v887
    %v889 = vpop.f32.mrb[0].mxu0
    %v890 = vadd.f32 %v204, %v889
    %v891 = vpop.f32.mrb[0].mxu0
    %v892 = vadd.f32 %v208, %v891
    %893 = vmatprep.mubr.bf16.mxu0 %v84
    %894 = vmatmul.mubr.bf16.gmra.mrb[0].mxu0 %v83
    %v895 = vpop.f32.mrb[0].mxu0
    %v896 = vadd.f32 %v204, %v895
    %v897 = vpop.f32.mrb[0].mxu0
    %v898 = vadd.f32 %v208, %v897
    %v899 = vpop.f32.mrb[0].mxu0
    %v900 = vadd.f32 %v204, %v899
    %v901 = vpop.f32.mrb[0].mxu0
    %v902 = vadd.f32 %v208, %v901
    %903 = vmatprep.mubr.bf16.mxu0 %v86
    %904 = vmatmul.mubr.bf16.gmra.mrb[0].mxu0 %v85
    %v905 = vpop.f32.mrb[0].mxu0
    %v906 = vadd.f32 %v204, %v905
    %v907 = vpop.f32.mrb[0].mxu0
    %v908 = vadd.f32 %v208, %v907
    %v909 = vpop.f32.mrb[0].mxu0
    %v910 = vadd.f32 %v204, %v909
    %v911 = vpop.f32.mrb[0].mxu0
    %v912 = vadd.f32 %v208, %v911
    %913 = vdwg.mxu0
    %v914 = vpack.c.bf16 %v734, %v730
    %v915 = vpack.c.bf16 %v736, %v732
    %v916 = vpack.c.bf16 %v807, %v803
    %v917 = vpack.c.bf16 %v809, %v805
    %v918 = vpack.c.bf16 %v880, %v876
    %v919 = vpack.c.bf16 %v882, %v878
    %v920 = vpack.c.bf16 %v744, %v740
    %v921 = vpack.c.bf16 %v746, %v742
    %v922 = vpack.c.bf16 %v817, %v813
    %v923 = vpack.c.bf16 %v819, %v815
    %v924 = vpack.c.bf16 %v890, %v886
    %v925 = vpack.c.bf16 %v892, %v888
    %v926 = vpack.c.bf16 %v754, %v750
    %v927 = vpack.c.bf16 %v756, %v752
    %v928 = vpack.c.bf16 %v827, %v823
    %v929 = vpack.c.bf16 %v829, %v825
    %v930 = vpack.c.bf16 %v900, %v896
    %v931 = vpack.c.bf16 %v902, %v898
    %v932 = vpack.c.bf16 %v764, %v760
    %v933 = vpack.c.bf16 %v766, %v762
    %v934 = vpack.c.bf16 %v837, %v833
    %v935 = vpack.c.bf16 %v839, %v835
    %v936 = vpack.c.bf16 %v910, %v906
    %v937 = vpack.c.bf16 %v912, %v908
    %938 = vmatprep.subr.bf16.mxu0 0
    %939 = vmatpush1.bf16.xpose.msra.mxu0 %v916
    %940 = vmatprep.subr.bf16.mxu0 0
    %941 = vmatpush1.bf16.xpose.msra.mxu0 0
    %942 = vmatprep.subr.bf16.mxu0 0
    %943 = vmatpush1.bf16.xpose.msra.mxu0 0
    %944 = vmatprep.subr.bf16.mxu0 0
    %945 = vmatpush1.bf16.xpose.msra.mxu0 0
    %946 = vmatprep.subr.bf16.mxu0 0
    %947 = vmatpush1.bf16.xpose.msra.mxu0 0
    %948 = vmatprep.subr.bf16.mxu0 0
    %949 = vmatpush1.bf16.xpose.msra.mxu0 0
    %950 = vmatprep.subr.bf16.mxu0 0
    %951 = vmatpush1.bf16.xpose.msra.mxu0 0
    %952 = vmatprep.subr.bf16.mxu0 0
    %953 = vmatpush1.bf16.xpose.msra.mxu0 0
    %954 = vmatprep.subr.bf16.mxu0 0
    %955 = vmatpush1.bf16.xpose.msra.mxu0 0
    %956 = vmatprep.subr.bf16.mxu0 0
    %957 = vmatpush1.bf16.xpose.msra.mxu0 0
    %958 = vmatprep.subr.bf16.mxu0 0
    %959 = vmatpush1.bf16.xpose.msra.mxu0 0
    %960 = vmatprep.subr.bf16.mxu0 0
    %961 = vmatpush1.bf16.xpose.msra.mxu0 0
    %962 = vmatprep.subr.bf16.mxu0 0
    %963 = vmatpush1.bf16.xpose.msra.mxu0 0
    %964 = vmatprep.subr.bf16.mxu0 0
    %965 = vmatpush1.bf16.xpose.msra.mxu0 0
    %966 = vmatprep.subr.bf16.mxu0 0
    %967 = vmatpush1.bf16.xpose.msra.mxu0 0
    %968 = vmatprep.subr.bf16.mxu0 0
    %969 = vmatpush1.bf16.xpose.msra.mxu0 0
    %970 = vmatprep.mubr.bf16.mxu0 0
    %971 = vmatmul.mubr.bf16.gmra.mrb[0].mxu0 %v914
    %v972 = vpop.f32.mrb[0].mxu0
    %v973 = vadd.f32 0.0, %v972
    %v974 = vpop.f32.mrb[0].mxu0
    %v975 = vpop.f32.mrb[0].mxu0
    %v976 = vadd.f32 0.0, %v975
    %v977 = vpop.f32.mrb[0].mxu0
    %978 = vdwg.mxu0
    %979 = vmatprep.subr.bf16.mxu0 0
    %980 = vmatpush1.bf16.xpose.msra.mxu0 %v922
    %981 = vmatprep.subr.bf16.mxu0 0
    %982 = vmatpush1.bf16.xpose.msra.mxu0 0
    %983 = vmatprep.subr.bf16.mxu0 0
    %984 = vmatpush1.bf16.xpose.msra.mxu0 0
    %985 = vmatprep.subr.bf16.mxu0 0
    %986 = vmatpush1.bf16.xpose.msra.mxu0 0
    %987 = vmatprep.subr.bf16.mxu0 0
    %988 = vmatpush1.bf16.xpose.msra.mxu0 0
    %989 = vmatprep.subr.bf16.mxu0 0
    %990 = vmatpush1.bf16.xpose.msra.mxu0 0
    %991 = vmatprep.subr.bf16.mxu0 0
    %992 = vmatpush1.bf16.xpose.msra.mxu0 0
    %993 = vmatprep.subr.bf16.mxu0 0
    %994 = vmatpush1.bf16.xpose.msra.mxu0 0
    %995 = vmatprep.subr.bf16.mxu0 0
    %996 = vmatpush1.bf16.xpose.msra.mxu0 0
    %997 = vmatprep.subr.bf16.mxu0 0
    %998 = vmatpush1.bf16.xpose.msra.mxu0 0
    %999 = vmatprep.subr.bf16.mxu0 0
    %1000 = vmatpush1.bf16.xpose.msra.mxu0 0
    %1001 = vmatprep.subr.bf16.mxu0 0
    %1002 = vmatpush1.bf16.xpose.msra.mxu0 0
    %1003 = vmatprep.subr.bf16.mxu0 0
    %1004 = vmatpush1.bf16.xpose.msra.mxu0 0
    %1005 = vmatprep.subr.bf16.mxu0 0
    %1006 = vmatpush1.bf16.xpose.msra.mxu0 0
    %1007 = vmatprep.subr.bf16.mxu0 0
    %1008 = vmatpush1.bf16.xpose.msra.mxu0 0
    %1009 = vmatprep.subr.bf16.mxu0 0
    %1010 = vmatpush1.bf16.xpose.msra.mxu0 0
    %1011 = vmatprep.mubr.bf16.mxu0 0
    %1012 = vmatmul.mubr.bf16.gmra.mrb[0].mxu0 %v920
    %v1013 = vpop.f32.mrb[0].mxu0
    %v1014 = vadd.f32 0.0, %v1013
    %v1015 = vpop.f32.mrb[0].mxu0
    %v1016 = vpop.f32.mrb[0].mxu0
    %v1017 = vadd.f32 0.0, %v1016
    %v1018 = vpop.f32.mrb[0].mxu0
    %1019 = vdwg.mxu0
    %1020 = vmatprep.subr.bf16.mxu0 0
    %1021 = vmatpush1.bf16.xpose.msra.mxu0 %v928
    %1022 = vmatprep.subr.bf16.mxu0 0
    %1023 = vmatpush1.bf16.xpose.msra.mxu0 0
    %1024 = vmatprep.subr.bf16.mxu0 0
    %1025 = vmatpush1.bf16.xpose.msra.mxu0 0
    %1026 = vmatprep.subr.bf16.mxu0 0
    %1027 = vmatpush1.bf16.xpose.msra.mxu0 0
    %1028 = vmatprep.subr.bf16.mxu0 0
    %1029 = vmatpush1.bf16.xpose.msra.mxu0 0
    %1030 = vmatprep.subr.bf16.mxu0 0
    %1031 = vmatpush1.bf16.xpose.msra.mxu0 0
    %1032 = vmatprep.subr.bf16.mxu0 0
    %1033 = vmatpush1.bf16.xpose.msra.mxu0 0
    %1034 = vmatprep.subr.bf16.mxu0 0
    %1035 = vmatpush1.bf16.xpose.msra.mxu0 0
    %1036 = vmatprep.subr.bf16.mxu0 0
    %1037 = vmatpush1.bf16.xpose.msra.mxu0 0
    %1038 = vmatprep.subr.bf16.mxu0 0
    %1039 = vmatpush1.bf16.xpose.msra.mxu0 0
    %1040 = vmatprep.subr.bf16.mxu0 0
    %1041 = vmatpush1.bf16.xpose.msra.mxu0 0
    %1042 = vmatprep.subr.bf16.mxu0 0
    %1043 = vmatpush1.bf16.xpose.msra.mxu0 0
    %1044 = vmatprep.subr.bf16.mxu0 0
    %1045 = vmatpush1.bf16.xpose.msra.mxu0 0
    %1046 = vmatprep.subr.bf16.mxu0 0
    %1047 = vmatpush1.bf16.xpose.msra.mxu0 0
    %1048 = vmatprep.subr.bf16.mxu0 0
    %1049 = vmatpush1.bf16.xpose.msra.mxu0 0
    %1050 = vmatprep.subr.bf16.mxu0 0
    %1051 = vmatpush1.bf16.xpose.msra.mxu0 0
    %1052 = vmatprep.mubr.bf16.mxu0 0
    %1053 = vmatmul.mubr.bf16.gmra.mrb[0].mxu0 %v926
    %v1054 = vpop.f32.mrb[0].mxu0
    %v1055 = vadd.f32 0.0, %v1054
    %v1056 = vpop.f32.mrb[0].mxu0
    %v1057 = vpop.f32.mrb[0].mxu0
    %v1058 = vadd.f32 0.0, %v1057
    %v1059 = vpop.f32.mrb[0].mxu0
    %1060 = vdwg.mxu0
    %1061 = vmatprep.subr.bf16.mxu0 0
    %1062 = vmatpush1.bf16.xpose.msra.mxu0 %v934
    %1063 = vmatprep.subr.bf16.mxu0 0
    %1064 = vmatpush1.bf16.xpose.msra.mxu0 0
    %1065 = vmatprep.subr.bf16.mxu0 0
    %1066 = vmatpush1.bf16.xpose.msra.mxu0 0
    %1067 = vmatprep.subr.bf16.mxu0 0
    %1068 = vmatpush1.bf16.xpose.msra.mxu0 0
    %1069 = vmatprep.subr.bf16.mxu0 0
    %1070 = vmatpush1.bf16.xpose.msra.mxu0 0
    %1071 = vmatprep.subr.bf16.mxu0 0
    %1072 = vmatpush1.bf16.xpose.msra.mxu0 0
    %1073 = vmatprep.subr.bf16.mxu0 0
    %1074 = vmatpush1.bf16.xpose.msra.mxu0 0
    %1075 = vmatprep.subr.bf16.mxu0 0
    %1076 = vmatpush1.bf16.xpose.msra.mxu0 0
    %1077 = vmatprep.subr.bf16.mxu0 0
    %1078 = vmatpush1.bf16.xpose.msra.mxu0 0
    %1079 = vmatprep.subr.bf16.mxu0 0
    %1080 = vmatpush1.bf16.xpose.msra.mxu0 0
    %1081 = vmatprep.subr.bf16.mxu0 0
    %1082 = vmatpush1.bf16.xpose.msra.mxu0 0
    %1083 = vmatprep.subr.bf16.mxu0 0
    %1084 = vmatpush1.bf16.xpose.msra.mxu0 0
    %1085 = vmatprep.subr.bf16.mxu0 0
    %1086 = vmatpush1.bf16.xpose.msra.mxu0 0
    %1087 = vmatprep.subr.bf16.mxu0 0
    %1088 = vmatpush1.bf16.xpose.msra.mxu0 0
    %1089 = vmatprep.subr.bf16.mxu0 0
    %1090 = vmatpush1.bf16.xpose.msra.mxu0 0
    %1091 = vmatprep.subr.bf16.mxu0 0
    %1092 = vmatpush1.bf16.xpose.msra.mxu0 0
    %1093 = vmatprep.mubr.bf16.mxu0 0
    %1094 = vmatmul.mubr.bf16.gmra.mrb[0].mxu0 %v932
    %v1095 = vpop.f32.mrb[0].mxu0
    %v1096 = vadd.f32 0.0, %v1095
    %v1097 = vpop.f32.mrb[0].mxu0
    %v1098 = vpop.f32.mrb[0].mxu0
    %v1099 = vadd.f32 0.0, %v1098
    %v1100 = vpop.f32.mrb[0].mxu0
    %1101 = vdwg.mxu0
    %vm1102 = vcmask 130048
    %v1103 = vsel %vm1102, %v973, -inf
    %1104 = vmax.xlane.f32.xlu0 %v1103
    %v1105 = vpop.xlane.xlu0 %1104
    %v1106 = vsel %vm1102, %v976, -inf
    %1107 = vmax.xlane.f32.xlu0 %v1106
    %v1108 = vpop.xlane.xlu0 %1107
    %v1109 = vsel %vm1102, %v1014, -inf
    %1110 = vmax.xlane.f32.xlu0 %v1109
    %v1111 = vpop.xlane.xlu0 %1110
    %v1112 = vsel %vm1102, %v1017, -inf
    %1113 = vmax.xlane.f32.xlu0 %v1112
    %v1114 = vpop.xlane.xlu0 %1113
    %v1115 = vsel %vm1102, %v1055, -inf
    %1116 = vmax.xlane.f32.xlu0 %v1115
    %v1117 = vpop.xlane.xlu0 %1116
    %v1118 = vsel %vm1102, %v1058, -inf
    %1119 = vmax.xlane.f32.xlu0 %v1118
    %v1120 = vpop.xlane.xlu0 %1119
    %v1121 = vsel %vm1102, %v1096, -inf
    %1122 = vmax.xlane.f32.xlu0 %v1121
    %v1123 = vpop.xlane.xlu0 %1122
    %v1124 = vsel %vm1102, %v1099, -inf
    %1125 = vmax.xlane.f32.xlu0 %v1124
    %v1126 = vpop.xlane.xlu0 %1125
    %v1127 = vsub.f32 %v973, %v1105
    %v1128 = vsub.f32 %v976, %v1108
    %v1129 = vsub.f32 %v1014, %v1111
    %v1130 = vsub.f32 %v1017, %v1114
    %v1131 = vsub.f32 %v1055, %v1117
    %v1132 = vsub.f32 %v1058, %v1120
    %v1133 = vsub.f32 %v1096, %v1123
    %v1134 = vsub.f32 %v1099, %v1126
    %v1135 = vmul.f32 %v1127, 1.442695
    %v1136 = vpow.pop %v1135
    %v1137 = vmul.f32 %v1128, 1.442695
    %v1138 = vpow.pop %v1137
    %v1139 = vmul.f32 %v1129, 1.442695
    %v1140 = vpow.pop %v1139
    %v1141 = vmul.f32 %v1130, 1.442695
    %v1142 = vpow.pop %v1141
    %v1143 = vmul.f32 %v1131, 1.442695
    %v1144 = vpow.pop %v1143
    %v1145 = vmul.f32 %v1132, 1.442695
    %v1146 = vpow.pop %v1145
    %v1147 = vmul.f32 %v1133, 1.442695
    %v1148 = vpow.pop %v1147
    %v1149 = vmul.f32 %v1134, 1.442695
    %v1150 = vpow.pop %v1149
    %v1151 = vsel %vm1102, %v1136, 0.0
    %1152 = vadd.xlane.f32.xlu0 %v1151
    %v1153 = vpop.xlane.xlu0 %1152
    %v1154 = vsel %vm1102, %v1138, 0.0
    %1155 = vadd.xlane.f32.xlu0 %v1154
    %v1156 = vpop.xlane.xlu0 %1155
    %v1157 = vsel %vm1102, %v1140, 0.0
    %1158 = vadd.xlane.f32.xlu0 %v1157
    %v1159 = vpop.xlane.xlu0 %1158
    %v1160 = vsel %vm1102, %v1142, 0.0
    %1161 = vadd.xlane.f32.xlu0 %v1160
    %v1162 = vpop.xlane.xlu0 %1161
    %v1163 = vsel %vm1102, %v1144, 0.0
    %1164 = vadd.xlane.f32.xlu0 %v1163
    %v1165 = vpop.xlane.xlu0 %1164
    %v1166 = vsel %vm1102, %v1146, 0.0
    %1167 = vadd.xlane.f32.xlu0 %v1166
    %v1168 = vpop.xlane.xlu0 %1167
    %v1169 = vsel %vm1102, %v1148, 0.0
    %1170 = vadd.xlane.f32.xlu0 %v1169
    %v1171 = vpop.xlane.xlu0 %1170
    %v1172 = vsel %vm1102, %v1150, 0.0
    %1173 = vadd.xlane.f32.xlu0 %v1172
    %v1174 = vpop.xlane.xlu0 %1173
    %v1175 = vrcp.pop %v1153
    %v1176 = vrcp.pop %v1156
    %v1177 = vrcp.pop %v1159
    %v1178 = vrcp.pop %v1162
    %v1179 = vrcp.pop %v1165
    %v1180 = vrcp.pop %v1168
    %v1181 = vrcp.pop %v1171
    %v1182 = vrcp.pop %v1174
    %v1183 = vmul.f32 %v1136, %v1175
    %v1184 = vmul.f32 %v1138, %v1176
    %v1185 = vmul.f32 %v1140, %v1177
    %v1186 = vmul.f32 %v1142, %v1178
    %v1187 = vmul.f32 %v1144, %v1179
    %v1188 = vmul.f32 %v1146, %v1180
    %v1189 = vmul.f32 %v1148, %v1181
    %v1190 = vmul.f32 %v1150, %v1182
    %v1191 = vpack.c.bf16 %v1184, %v1183
    %v1192 = vpack.c.bf16 %v1186, %v1185
    %v1193 = vpack.c.bf16 %v1188, %v1187
    %v1194 = vpack.c.bf16 %v1190, %v1189
    %v1196 = vsel %vm1102, %v1191, 0
    %1198 = vmatprep.subr.bf16.mxu0 0
    %1199 = vmatpush1.bf16.msra.mxu0 %v918
    %1200 = vmatprep.subr.bf16.mxu0 0
    %1201 = vmatpush1.bf16.msra.mxu0 0
    %1202 = vmatprep.subr.bf16.mxu0 0
    %1203 = vmatpush1.bf16.msra.mxu0 0
    %1204 = vmatprep.subr.bf16.mxu0 0
    %1205 = vmatpush1.bf16.msra.mxu0 0
    %1206 = vmatprep.subr.bf16.mxu0 0
    %1207 = vmatpush1.bf16.msra.mxu0 0
    %1208 = vmatprep.subr.bf16.mxu0 0
    %1209 = vmatpush1.bf16.msra.mxu0 0
    %1210 = vmatprep.subr.bf16.mxu0 0
    %1211 = vmatpush1.bf16.msra.mxu0 0
    %1212 = vmatprep.subr.bf16.mxu0 0
    %1213 = vmatpush1.bf16.msra.mxu0 0
    %1214 = vmatprep.subr.bf16.mxu0 0
    %1215 = vmatpush1.bf16.msra.mxu0 0
    %1216 = vmatprep.subr.bf16.mxu0 0
    %1217 = vmatpush1.bf16.msra.mxu0 0
    %1218 = vmatprep.subr.bf16.mxu0 0
    %1219 = vmatpush1.bf16.msra.mxu0 0
    %1220 = vmatprep.subr.bf16.mxu0 0
    %1221 = vmatpush1.bf16.msra.mxu0 0
    %1222 = vmatprep.subr.bf16.mxu0 0
    %1223 = vmatpush1.bf16.msra.mxu0 0
    %1224 = vmatprep.subr.bf16.mxu0 0
    %1225 = vmatpush1.bf16.msra.mxu0 0
    %1226 = vmatprep.subr.bf16.mxu0 0
    %1227 = vmatpush1.bf16.msra.mxu0 0
    %1228 = vmatprep.subr.bf16.mxu0 0
    %1229 = vmatpush1.bf16.msra.mxu0 0
    %1230 = vmatprep.mubr.bf16.mxu0 0
    %1231 = vmatmul.mubr.bf16.gmra.mrb[0].mxu0 %v1196
    %v1232 = vpop.f32.mrb[0].mxu0
    %v1233 = vadd.f32 0.0, %v1232
    %v1234 = vpop.f32.mrb[0].mxu0
    %v1235 = vpop.f32.mrb[0].mxu0
    %v1236 = vadd.f32 0.0, %v1235
    %v1237 = vpop.f32.mrb[0].mxu0
    %1238 = vdwg.mxu0
    %v1240 = vsel %vm1102, %v1192, 0
    %1242 = vmatprep.subr.bf16.mxu0 0
    %1243 = vmatpush1.bf16.msra.mxu0 %v924
    %1244 = vmatprep.subr.bf16.mxu0 0
    %1245 = vmatpush1.bf16.msra.mxu0 0
    %1246 = vmatprep.subr.bf16.mxu0 0
    %1247 = vmatpush1.bf16.msra.mxu0 0
    %1248 = vmatprep.subr.bf16.mxu0 0
    %1249 = vmatpush1.bf16.msra.mxu0 0
    %1250 = vmatprep.subr.bf16.mxu0 0
    %1251 = vmatpush1.bf16.msra.mxu0 0
    %1252 = vmatprep.subr.bf16.mxu0 0
    %1253 = vmatpush1.bf16.msra.mxu0 0
    %1254 = vmatprep.subr.bf16.mxu0 0
    %1255 = vmatpush1.bf16.msra.mxu0 0
    %1256 = vmatprep.subr.bf16.mxu0 0
    %1257 = vmatpush1.bf16.msra.mxu0 0
    %1258 = vmatprep.subr.bf16.mxu0 0
    %1259 = vmatpush1.bf16.msra.mxu0 0
    %1260 = vmatprep.subr.bf16.mxu0 0
    %1261 = vmatpush1.bf16.msra.mxu0 0
    %1262 = vmatprep.subr.bf16.mxu0 0
    %1263 = vmatpush1.bf16.msra.mxu0 0
    %1264 = vmatprep.subr.bf16.mxu0 0
    %1265 = vmatpush1.bf16.msra.mxu0 0
    %1266 = vmatprep.subr.bf16.mxu0 0
    %1267 = vmatpush1.bf16.msra.mxu0 0
    %1268 = vmatprep.subr.bf16.mxu0 0
    %1269 = vmatpush1.bf16.msra.mxu0 0
    %1270 = vmatprep.subr.bf16.mxu0 0
    %1271 = vmatpush1.bf16.msra.mxu0 0
    %1272 = vmatprep.subr.bf16.mxu0 0
    %1273 = vmatpush1.bf16.msra.mxu0 0
    %1274 = vmatprep.mubr.bf16.mxu0 0
    %1275 = vmatmul.mubr.bf16.gmra.mrb[0].mxu0 %v1240
    %v1276 = vpop.f32.mrb[0].mxu0
    %v1277 = vadd.f32 0.0, %v1276
    %v1278 = vpop.f32.mrb[0].mxu0
    %v1279 = vpop.f32.mrb[0].mxu0
    %v1280 = vadd.f32 0.0, %v1279
    %v1281 = vpop.f32.mrb[0].mxu0
    %1282 = vdwg.mxu0
    %v1284 = vsel %vm1102, %v1193, 0
    %1286 = vmatprep.subr.bf16.mxu0 0
    %1287 = vmatpush1.bf16.msra.mxu0 %v930
    %1288 = vmatprep.subr.bf16.mxu0 0
    %1289 = vmatpush1.bf16.msra.mxu0 0
    %1290 = vmatprep.subr.bf16.mxu0 0
    %1291 = vmatpush1.bf16.msra.mxu0 0
    %1292 = vmatprep.subr.bf16.mxu0 0
    %1293 = vmatpush1.bf16.msra.mxu0 0
    %1294 = vmatprep.subr.bf16.mxu0 0
    %1295 = vmatpush1.bf16.msra.mxu0 0
    %1296 = vmatprep.subr.bf16.mxu0 0
    %1297 = vmatpush1.bf16.msra.mxu0 0
    %1298 = vmatprep.subr.bf16.mxu0 0
    %1299 = vmatpush1.bf16.msra.mxu0 0
    %1300 = vmatprep.subr.bf16.mxu0 0
    %1301 = vmatpush1.bf16.msra.mxu0 0
    %1302 = vmatprep.subr.bf16.mxu0 0
    %1303 = vmatpush1.bf16.msra.mxu0 0
    %1304 = vmatprep.subr.bf16.mxu0 0
    %1305 = vmatpush1.bf16.msra.mxu0 0
    %1306 = vmatprep.subr.bf16.mxu0 0
    %1307 = vmatpush1.bf16.msra.mxu0 0
    %1308 = vmatprep.subr.bf16.mxu0 0
    %1309 = vmatpush1.bf16.msra.mxu0 0
    %1310 = vmatprep.subr.bf16.mxu0 0
    %1311 = vmatpush1.bf16.msra.mxu0 0
    %1312 = vmatprep.subr.bf16.mxu0 0
    %1313 = vmatpush1.bf16.msra.mxu0 0
    %1314 = vmatprep.subr.bf16.mxu0 0
    %1315 = vmatpush1.bf16.msra.mxu0 0
    %1316 = vmatprep.subr.bf16.mxu0 0
    %1317 = vmatpush1.bf16.msra.mxu0 0
    %1318 = vmatprep.mubr.bf16.mxu0 0
    %1319 = vmatmul.mubr.bf16.gmra.mrb[0].mxu0 %v1284
    %v1320 = vpop.f32.mrb[0].mxu0
    %v1321 = vadd.f32 0.0, %v1320
    %v1322 = vpop.f32.mrb[0].mxu0
    %v1323 = vpop.f32.mrb[0].mxu0
    %v1324 = vadd.f32 0.0, %v1323
    %v1325 = vpop.f32.mrb[0].mxu0
    %1326 = vdwg.mxu0
    %v1328 = vsel %vm1102, %v1194, 0
    %1330 = vmatprep.subr.bf16.mxu0 0
    %1331 = vmatpush1.bf16.msra.mxu0 %v936
    %1332 = vmatprep.subr.bf16.mxu0 0
    %1333 = vmatpush1.bf16.msra.mxu0 0
    %1334 = vmatprep.subr.bf16.mxu0 0
    %1335 = vmatpush1.bf16.msra.mxu0 0
    %1336 = vmatprep.subr.bf16.mxu0 0
    %1337 = vmatpush1.bf16.msra.mxu0 0
    %1338 = vmatprep.subr.bf16.mxu0 0
    %1339 = vmatpush1.bf16.msra.mxu0 0
    %1340 = vmatprep.subr.bf16.mxu0 0
    %1341 = vmatpush1.bf16.msra.mxu0 0
    %1342 = vmatprep.subr.bf16.mxu0 0
    %1343 = vmatpush1.bf16.msra.mxu0 0
    %1344 = vmatprep.subr.bf16.mxu0 0
    %1345 = vmatpush1.bf16.msra.mxu0 0
    %1346 = vmatprep.subr.bf16.mxu0 0
    %1347 = vmatpush1.bf16.msra.mxu0 0
    %1348 = vmatprep.subr.bf16.mxu0 0
    %1349 = vmatpush1.bf16.msra.mxu0 0
    %1350 = vmatprep.subr.bf16.mxu0 0
    %1351 = vmatpush1.bf16.msra.mxu0 0
    %1352 = vmatprep.subr.bf16.mxu0 0
    %1353 = vmatpush1.bf16.msra.mxu0 0
    %1354 = vmatprep.subr.bf16.mxu0 0
    %1355 = vmatpush1.bf16.msra.mxu0 0
    %1356 = vmatprep.subr.bf16.mxu0 0
    %1357 = vmatpush1.bf16.msra.mxu0 0
    %1358 = vmatprep.subr.bf16.mxu0 0
    %1359 = vmatpush1.bf16.msra.mxu0 0
    %1360 = vmatprep.subr.bf16.mxu0 0
    %1361 = vmatpush1.bf16.msra.mxu0 0
    %1362 = vmatprep.mubr.bf16.mxu0 0
    %1363 = vmatmul.mubr.bf16.gmra.mrb[0].mxu0 %v1328
    %v1364 = vpop.f32.mrb[0].mxu0
    %v1365 = vadd.f32 0.0, %v1364
    %v1366 = vpop.f32.mrb[0].mxu0
    %v1367 = vpop.f32.mrb[0].mxu0
    %v1368 = vadd.f32 0.0, %v1367
    %v1369 = vpop.f32.mrb[0].mxu0
    %1370 = vdwg.mxu0
    %1371 = vmatprep.subr.bf16.mxu0 0
    %1372 = vmatpush1.bf16.xpose.msra.mxu0 %v917
    %1373 = vmatprep.subr.bf16.mxu0 0
    %1374 = vmatpush1.bf16.xpose.msra.mxu0 0
    %1375 = vmatprep.subr.bf16.mxu0 0
    %1376 = vmatpush1.bf16.xpose.msra.mxu0 0
    %1377 = vmatprep.subr.bf16.mxu0 0
    %1378 = vmatpush1.bf16.xpose.msra.mxu0 0
    %1379 = vmatprep.subr.bf16.mxu0 0
    %1380 = vmatpush1.bf16.xpose.msra.mxu0 0
    %1381 = vmatprep.subr.bf16.mxu0 0
    %1382 = vmatpush1.bf16.xpose.msra.mxu0 0
    %1383 = vmatprep.subr.bf16.mxu0 0
    %1384 = vmatpush1.bf16.xpose.msra.mxu0 0
    %1385 = vmatprep.subr.bf16.mxu0 0
    %1386 = vmatpush1.bf16.xpose.msra.mxu0 0
    %1387 = vmatprep.subr.bf16.mxu0 0
    %1388 = vmatpush1.bf16.xpose.msra.mxu0 0
    %1389 = vmatprep.subr.bf16.mxu0 0
    %1390 = vmatpush1.bf16.xpose.msra.mxu0 0
    %1391 = vmatprep.subr.bf16.mxu0 0
    %1392 = vmatpush1.bf16.xpose.msra.mxu0 0
    %1393 = vmatprep.subr.bf16.mxu0 0
    %1394 = vmatpush1.bf16.xpose.msra.mxu0 0
    %1395 = vmatprep.subr.bf16.mxu0 0
    %1396 = vmatpush1.bf16.xpose.msra.mxu0 0
    %1397 = vmatprep.subr.bf16.mxu0 0
    %1398 = vmatpush1.bf16.xpose.msra.mxu0 0
    %1399 = vmatprep.subr.bf16.mxu0 0
    %1400 = vmatpush1.bf16.xpose.msra.mxu0 0
    %1401 = vmatprep.subr.bf16.mxu0 0
    %1402 = vmatpush1.bf16.xpose.msra.mxu0 0
    %1403 = vmatprep.mubr.bf16.mxu0 0
    %1404 = vmatmul.mubr.bf16.gmra.mrb[0].mxu0 %v915
    %v1405 = vpop.f32.mrb[0].mxu0
    %v1406 = vadd.f32 0.0, %v1405
    %v1407 = vpop.f32.mrb[0].mxu0
    %v1408 = vpop.f32.mrb[0].mxu0
    %v1409 = vadd.f32 0.0, %v1408
    %v1410 = vpop.f32.mrb[0].mxu0
    %1411 = vdwg.mxu0
    %1412 = vmatprep.subr.bf16.mxu0 0
    %1413 = vmatpush1.bf16.xpose.msra.mxu0 %v923
    %1414 = vmatprep.subr.bf16.mxu0 0
    %1415 = vmatpush1.bf16.xpose.msra.mxu0 0
    %1416 = vmatprep.subr.bf16.mxu0 0
    %1417 = vmatpush1.bf16.xpose.msra.mxu0 0
    %1418 = vmatprep.subr.bf16.mxu0 0
    %1419 = vmatpush1.bf16.xpose.msra.mxu0 0
    %1420 = vmatprep.subr.bf16.mxu0 0
    %1421 = vmatpush1.bf16.xpose.msra.mxu0 0
    %1422 = vmatprep.subr.bf16.mxu0 0
    %1423 = vmatpush1.bf16.xpose.msra.mxu0 0
    %1424 = vmatprep.subr.bf16.mxu0 0
    %1425 = vmatpush1.bf16.xpose.msra.mxu0 0
    %1426 = vmatprep.subr.bf16.mxu0 0
    %1427 = vmatpush1.bf16.xpose.msra.mxu0 0
    %1428 = vmatprep.subr.bf16.mxu0 0
    %1429 = vmatpush1.bf16.xpose.msra.mxu0 0
    %1430 = vmatprep.subr.bf16.mxu0 0
    %1431 = vmatpush1.bf16.xpose.msra.mxu0 0
    %1432 = vmatprep.subr.bf16.mxu0 0
    %1433 = vmatpush1.bf16.xpose.msra.mxu0 0
    %1434 = vmatprep.subr.bf16.mxu0 0
    %1435 = vmatpush1.bf16.xpose.msra.mxu0 0
    %1436 = vmatprep.subr.bf16.mxu0 0
    %1437 = vmatpush1.bf16.xpose.msra.mxu0 0
    %1438 = vmatprep.subr.bf16.mxu0 0
    %1439 = vmatpush1.bf16.xpose.msra.mxu0 0
    %1440 = vmatprep.subr.bf16.mxu0 0
    %1441 = vmatpush1.bf16.xpose.msra.mxu0 0
    %1442 = vmatprep.subr.bf16.mxu0 0
    %1443 = vmatpush1.bf16.xpose.msra.mxu0 0
    %1444 = vmatprep.mubr.bf16.mxu0 0
    %1445 = vmatmul.mubr.bf16.gmra.mrb[0].mxu0 %v921
    %v1446 = vpop.f32.mrb[0].mxu0
    %v1447 = vadd.f32 0.0, %v1446
    %v1448 = vpop.f32.mrb[0].mxu0
    %v1449 = vpop.f32.mrb[0].mxu0
    %v1450 = vadd.f32 0.0, %v1449
    %v1451 = vpop.f32.mrb[0].mxu0
    %1452 = vdwg.mxu0
    %1453 = vmatprep.subr.bf16.mxu0 0
    %1454 = vmatpush1.bf16.xpose.msra.mxu0 %v929
    %1455 = vmatprep.subr.bf16.mxu0 0
    %1456 = vmatpush1.bf16.xpose.msra.mxu0 0
    %1457 = vmatprep.subr.bf16.mxu0 0
    %1458 = vmatpush1.bf16.xpose.msra.mxu0 0
    %1459 = vmatprep.subr.bf16.mxu0 0
    %1460 = vmatpush1.bf16.xpose.msra.mxu0 0
    %1461 = vmatprep.subr.bf16.mxu0 0
    %1462 = vmatpush1.bf16.xpose.msra.mxu0 0
    %1463 = vmatprep.subr.bf16.mxu0 0
    %1464 = vmatpush1.bf16.xpose.msra.mxu0 0
    %1465 = vmatprep.subr.bf16.mxu0 0
    %1466 = vmatpush1.bf16.xpose.msra.mxu0 0
    %1467 = vmatprep.subr.bf16.mxu0 0
    %1468 = vmatpush1.bf16.xpose.msra.mxu0 0
    %1469 = vmatprep.subr.bf16.mxu0 0
    %1470 = vmatpush1.bf16.xpose.msra.mxu0 0
    %1471 = vmatprep.subr.bf16.mxu0 0
    %1472 = vmatpush1.bf16.xpose.msra.mxu0 0
    %1473 = vmatprep.subr.bf16.mxu0 0
    %1474 = vmatpush1.bf16.xpose.msra.mxu0 0
    %1475 = vmatprep.subr.bf16.mxu0 0
    %1476 = vmatpush1.bf16.xpose.msra.mxu0 0
    %1477 = vmatprep.subr.bf16.mxu0 0
    %1478 = vmatpush1.bf16.xpose.msra.mxu0 0
    %1479 = vmatprep.subr.bf16.mxu0 0
    %1480 = vmatpush1.bf16.xpose.msra.mxu0 0
    %1481 = vmatprep.subr.bf16.mxu0 0
    %1482 = vmatpush1.bf16.xpose.msra.mxu0 0
    %1483 = vmatprep.subr.bf16.mxu0 0
    %1484 = vmatpush1.bf16.xpose.msra.mxu0 0
    %1485 = vmatprep.mubr.bf16.mxu0 0
    %1486 = vmatmul.mubr.bf16.gmra.mrb[0].mxu0 %v927
    %v1487 = vpop.f32.mrb[0].mxu0
    %v1488 = vadd.f32 0.0, %v1487
    %v1489 = vpop.f32.mrb[0].mxu0
    %v1490 = vpop.f32.mrb[0].mxu0
    %v1491 = vadd.f32 0.0, %v1490
    %v1492 = vpop.f32.mrb[0].mxu0
    %1493 = vdwg.mxu0
    %1494 = vmatprep.subr.bf16.mxu0 0
    %1495 = vmatpush1.bf16.xpose.msra.mxu0 %v935
    %1496 = vmatprep.subr.bf16.mxu0 0
    %1497 = vmatpush1.bf16.xpose.msra.mxu0 0
    %1498 = vmatprep.subr.bf16.mxu0 0
    %1499 = vmatpush1.bf16.xpose.msra.mxu0 0
    %1500 = vmatprep.subr.bf16.mxu0 0
    %1501 = vmatpush1.bf16.xpose.msra.mxu0 0
    %1502 = vmatprep.subr.bf16.mxu0 0
    %1503 = vmatpush1.bf16.xpose.msra.mxu0 0
    %1504 = vmatprep.subr.bf16.mxu0 0
    %1505 = vmatpush1.bf16.xpose.msra.mxu0 0
    %1506 = vmatprep.subr.bf16.mxu0 0
    %1507 = vmatpush1.bf16.xpose.msra.mxu0 0
    %1508 = vmatprep.subr.bf16.mxu0 0
    %1509 = vmatpush1.bf16.xpose.msra.mxu0 0
    %1510 = vmatprep.subr.bf16.mxu0 0
    %1511 = vmatpush1.bf16.xpose.msra.mxu0 0
    %1512 = vmatprep.subr.bf16.mxu0 0
    %1513 = vmatpush1.bf16.xpose.msra.mxu0 0
    %1514 = vmatprep.subr.bf16.mxu0 0
    %1515 = vmatpush1.bf16.xpose.msra.mxu0 0
    %1516 = vmatprep.subr.bf16.mxu0 0
    %1517 = vmatpush1.bf16.xpose.msra.mxu0 0
    %1518 = vmatprep.subr.bf16.mxu0 0
    %1519 = vmatpush1.bf16.xpose.msra.mxu0 0
    %1520 = vmatprep.subr.bf16.mxu0 0
    %1521 = vmatpush1.bf16.xpose.msra.mxu0 0
    %1522 = vmatprep.subr.bf16.mxu0 0
    %1523 = vmatpush1.bf16.xpose.msra.mxu0 0
    %1524 = vmatprep.subr.bf16.mxu0 0
    %1525 = vmatpush1.bf16.xpose.msra.mxu0 0
    %1526 = vmatprep.mubr.bf16.mxu0 0
    %1527 = vmatmul.mubr.bf16.gmra.mrb[0].mxu0 %v933
    %v1528 = vpop.f32.mrb[0].mxu0
    %v1529 = vadd.f32 0.0, %v1528
    %v1530 = vpop.f32.mrb[0].mxu0
    %v1531 = vpop.f32.mrb[0].mxu0
    %v1532 = vadd.f32 0.0, %v1531
    %v1533 = vpop.f32.mrb[0].mxu0
    %1534 = vdwg.mxu0
    %v1535 = vsel %vm1102, %v1406, -inf
    %1536 = vmax.xlane.f32.xlu0 %v1535
    %v1537 = vpop.xlane.xlu0 %1536
    %v1538 = vsel %vm1102, %v1409, -inf
    %1539 = vmax.xlane.f32.xlu0 %v1538
    %v1540 = vpop.xlane.xlu0 %1539
    %v1541 = vsel %vm1102, %v1447, -inf
    %1542 = vmax.xlane.f32.xlu0 %v1541
    %v1543 = vpop.xlane.xlu0 %1542
    %v1544 = vsel %vm1102, %v1450, -inf
    %1545 = vmax.xlane.f32.xlu0 %v1544
    %v1546 = vpop.xlane.xlu0 %1545
    %v1547 = vsel %vm1102, %v1488, -inf
    %1548 = vmax.xlane.f32.xlu0 %v1547
    %v1549 = vpop.xlane.xlu0 %1548
    %v1550 = vsel %vm1102, %v1491, -inf
    %1551 = vmax.xlane.f32.xlu0 %v1550
    %v1552 = vpop.xlane.xlu0 %1551
    %v1553 = vsel %vm1102, %v1529, -inf
    %1554 = vmax.xlane.f32.xlu0 %v1553
    %v1555 = vpop.xlane.xlu0 %1554
    %v1556 = vsel %vm1102, %v1532, -inf
    %1557 = vmax.xlane.f32.xlu0 %v1556
    %v1558 = vpop.xlane.xlu0 %1557
    %v1559 = vsub.f32 %v1406, %v1537
    %v1560 = vsub.f32 %v1409, %v1540
    %v1561 = vsub.f32 %v1447, %v1543
    %v1562 = vsub.f32 %v1450, %v1546
    %v1563 = vsub.f32 %v1488, %v1549
    %v1564 = vsub.f32 %v1491, %v1552
    %v1565 = vsub.f32 %v1529, %v1555
    %v1566 = vsub.f32 %v1532, %v1558
    %v1567 = vmul.f32 %v1559, 1.442695
    %v1568 = vpow.pop %v1567
    %v1569 = vmul.f32 %v1560, 1.442695
    %v1570 = vpow.pop %v1569
    %v1571 = vmul.f32 %v1561, 1.442695
    %v1572 = vpow.pop %v1571
    %v1573 = vmul.f32 %v1562, 1.442695
    %v1574 = vpow.pop %v1573
    %v1575 = vmul.f32 %v1563, 1.442695
    %v1576 = vpow.pop %v1575
    %v1577 = vmul.f32 %v1564, 1.442695
    %v1578 = vpow.pop %v1577
    %v1579 = vmul.f32 %v1565, 1.442695
    %v1580 = vpow.pop %v1579
    %v1581 = vmul.f32 %v1566, 1.442695
    %v1582 = vpow.pop %v1581
    %v1583 = vsel %vm1102, %v1568, 0.0
    %1584 = vadd.xlane.f32.xlu0 %v1583
    %v1585 = vpop.xlane.xlu0 %1584
    %v1586 = vsel %vm1102, %v1570, 0.0
    %1587 = vadd.xlane.f32.xlu0 %v1586
    %v1588 = vpop.xlane.xlu0 %1587
    %v1589 = vsel %vm1102, %v1572, 0.0
    %1590 = vadd.xlane.f32.xlu0 %v1589
    %v1591 = vpop.xlane.xlu0 %1590
    %v1592 = vsel %vm1102, %v1574, 0.0
    %1593 = vadd.xlane.f32.xlu0 %v1592
    %v1594 = vpop.xlane.xlu0 %1593
    %v1595 = vsel %vm1102, %v1576, 0.0
    %1596 = vadd.xlane.f32.xlu0 %v1595
    %v1597 = vpop.xlane.xlu0 %1596
    %v1598 = vsel %vm1102, %v1578, 0.0
    %1599 = vadd.xlane.f32.xlu0 %v1598
    %v1600 = vpop.xlane.xlu0 %1599
    %v1601 = vsel %vm1102, %v1580, 0.0
    %1602 = vadd.xlane.f32.xlu0 %v1601
    %v1603 = vpop.xlane.xlu0 %1602
    %v1604 = vsel %vm1102, %v1582, 0.0
    %1605 = vadd.xlane.f32.xlu0 %v1604
    %v1606 = vpop.xlane.xlu0 %1605
    %v1607 = vrcp.pop %v1585
    %v1608 = vrcp.pop %v1588
    %v1609 = vrcp.pop %v1591
    %v1610 = vrcp.pop %v1594
    %v1611 = vrcp.pop %v1597
    %v1612 = vrcp.pop %v1600
    %v1613 = vrcp.pop %v1603
    %v1614 = vrcp.pop %v1606
    %v1615 = vmul.f32 %v1568, %v1607
    %v1616 = vmul.f32 %v1570, %v1608
    %v1617 = vmul.f32 %v1572, %v1609
    %v1618 = vmul.f32 %v1574, %v1610
    %v1619 = vmul.f32 %v1576, %v1611
    %v1620 = vmul.f32 %v1578, %v1612
    %v1621 = vmul.f32 %v1580, %v1613
    %v1622 = vmul.f32 %v1582, %v1614
    %v1623 = vpack.c.bf16 %v1616, %v1615
    %v1624 = vpack.c.bf16 %v1618, %v1617
    %v1625 = vpack.c.bf16 %v1620, %v1619
    %v1626 = vpack.c.bf16 %v1622, %v1621
    %v1628 = vsel %vm1102, %v1623, 0
    %1630 = vmatprep.subr.bf16.mxu0 0
    %1631 = vmatpush1.bf16.msra.mxu0 %v919
    %1632 = vmatprep.subr.bf16.mxu0 0
    %1633 = vmatpush1.bf16.msra.mxu0 0
    %1634 = vmatprep.subr.bf16.mxu0 0
    %1635 = vmatpush1.bf16.msra.mxu0 0
    %1636 = vmatprep.subr.bf16.mxu0 0
    %1637 = vmatpush1.bf16.msra.mxu0 0
    %1638 = vmatprep.subr.bf16.mxu0 0
    %1639 = vmatpush1.bf16.msra.mxu0 0
    %1640 = vmatprep.subr.bf16.mxu0 0
    %1641 = vmatpush1.bf16.msra.mxu0 0
    %1642 = vmatprep.subr.bf16.mxu0 0
    %1643 = vmatpush1.bf16.msra.mxu0 0
    %1644 = vmatprep.subr.bf16.mxu0 0
    %1645 = vmatpush1.bf16.msra.mxu0 0
    %1646 = vmatprep.subr.bf16.mxu0 0
    %1647 = vmatpush1.bf16.msra.mxu0 0
    %1648 = vmatprep.subr.bf16.mxu0 0
    %1649 = vmatpush1.bf16.msra.mxu0 0
    %1650 = vmatprep.subr.bf16.mxu0 0
    %1651 = vmatpush1.bf16.msra.mxu0 0
    %1652 = vmatprep.subr.bf16.mxu0 0
    %1653 = vmatpush1.bf16.msra.mxu0 0
    %1654 = vmatprep.subr.bf16.mxu0 0
    %1655 = vmatpush1.bf16.msra.mxu0 0
    %1656 = vmatprep.subr.bf16.mxu0 0
    %1657 = vmatpush1.bf16.msra.mxu0 0
    %1658 = vmatprep.subr.bf16.mxu0 0
    %1659 = vmatpush1.bf16.msra.mxu0 0
    %1660 = vmatprep.subr.bf16.mxu0 0
    %1661 = vmatpush1.bf16.msra.mxu0 0
    %1662 = vmatprep.mubr.bf16.mxu0 0
    %1663 = vmatmul.mubr.bf16.gmra.mrb[0].mxu0 %v1628
    %v1664 = vpop.f32.mrb[0].mxu0
    %v1665 = vadd.f32 0.0, %v1664
    %v1666 = vpop.f32.mrb[0].mxu0
    %v1667 = vpop.f32.mrb[0].mxu0
    %v1668 = vadd.f32 0.0, %v1667
    %v1669 = vpop.f32.mrb[0].mxu0
    %1670 = vdwg.mxu0
    %v1672 = vsel %vm1102, %v1624, 0
    %1674 = vmatprep.subr.bf16.mxu0 0
    %1675 = vmatpush1.bf16.msra.mxu0 %v925
    %1676 = vmatprep.subr.bf16.mxu0 0
    %1677 = vmatpush1.bf16.msra.mxu0 0
    %1678 = vmatprep.subr.bf16.mxu0 0
    %1679 = vmatpush1.bf16.msra.mxu0 0
    %1680 = vmatprep.subr.bf16.mxu0 0
    %1681 = vmatpush1.bf16.msra.mxu0 0
    %1682 = vmatprep.subr.bf16.mxu0 0
    %1683 = vmatpush1.bf16.msra.mxu0 0
    %1684 = vmatprep.subr.bf16.mxu0 0
    %1685 = vmatpush1.bf16.msra.mxu0 0
    %1686 = vmatprep.subr.bf16.mxu0 0
    %1687 = vmatpush1.bf16.msra.mxu0 0
    %1688 = vmatprep.subr.bf16.mxu0 0
    %1689 = vmatpush1.bf16.msra.mxu0 0
    %1690 = vmatprep.subr.bf16.mxu0 0
    %1691 = vmatpush1.bf16.msra.mxu0 0
    %1692 = vmatprep.subr.bf16.mxu0 0
    %1693 = vmatpush1.bf16.msra.mxu0 0
    %1694 = vmatprep.subr.bf16.mxu0 0
    %1695 = vmatpush1.bf16.msra.mxu0 0
    %1696 = vmatprep.subr.bf16.mxu0 0
    %1697 = vmatpush1.bf16.msra.mxu0 0
    %1698 = vmatprep.subr.bf16.mxu0 0
    %1699 = vmatpush1.bf16.msra.mxu0 0
    %1700 = vmatprep.subr.bf16.mxu0 0
    %1701 = vmatpush1.bf16.msra.mxu0 0
    %1702 = vmatprep.subr.bf16.mxu0 0
    %1703 = vmatpush1.bf16.msra.mxu0 0
    %1704 = vmatprep.subr.bf16.mxu0 0
    %1705 = vmatpush1.bf16.msra.mxu0 0
    %1706 = vmatprep.mubr.bf16.mxu0 0
    %1707 = vmatmul.mubr.bf16.gmra.mrb[0].mxu0 %v1672
    %v1708 = vpop.f32.mrb[0].mxu0
    %v1709 = vadd.f32 0.0, %v1708
    %v1710 = vpop.f32.mrb[0].mxu0
    %v1711 = vpop.f32.mrb[0].mxu0
    %v1712 = vadd.f32 0.0, %v1711
    %v1713 = vpop.f32.mrb[0].mxu0
    %1714 = vdwg.mxu0
    %v1716 = vsel %vm1102, %v1625, 0
    %1718 = vmatprep.subr.bf16.mxu0 0
    %1719 = vmatpush1.bf16.msra.mxu0 %v931
    %1720 = vmatprep.subr.bf16.mxu0 0
    %1721 = vmatpush1.bf16.msra.mxu0 0
    %1722 = vmatprep.subr.bf16.mxu0 0
    %1723 = vmatpush1.bf16.msra.mxu0 0
    %1724 = vmatprep.subr.bf16.mxu0 0
    %1725 = vmatpush1.bf16.msra.mxu0 0
    %1726 = vmatprep.subr.bf16.mxu0 0
    %1727 = vmatpush1.bf16.msra.mxu0 0
    %1728 = vmatprep.subr.bf16.mxu0 0
    %1729 = vmatpush1.bf16.msra.mxu0 0
    %1730 = vmatprep.subr.bf16.mxu0 0
    %1731 = vmatpush1.bf16.msra.mxu0 0
    %1732 = vmatprep.subr.bf16.mxu0 0
    %1733 = vmatpush1.bf16.msra.mxu0 0
    %1734 = vmatprep.subr.bf16.mxu0 0
    %1735 = vmatpush1.bf16.msra.mxu0 0
    %1736 = vmatprep.subr.bf16.mxu0 0
    %1737 = vmatpush1.bf16.msra.mxu0 0
    %1738 = vmatprep.subr.bf16.mxu0 0
    %1739 = vmatpush1.bf16.msra.mxu0 0
    %1740 = vmatprep.subr.bf16.mxu0 0
    %1741 = vmatpush1.bf16.msra.mxu0 0
    %1742 = vmatprep.subr.bf16.mxu0 0
    %1743 = vmatpush1.bf16.msra.mxu0 0
    %1744 = vmatprep.subr.bf16.mxu0 0
    %1745 = vmatpush1.bf16.msra.mxu0 0
    %1746 = vmatprep.subr.bf16.mxu0 0
    %1747 = vmatpush1.bf16.msra.mxu0 0
    %1748 = vmatprep.subr.bf16.mxu0 0
    %1749 = vmatpush1.bf16.msra.mxu0 0
    %1750 = vmatprep.mubr.bf16.mxu0 0
    %1751 = vmatmul.mubr.bf16.gmra.mrb[0].mxu0 %v1716
    %v1752 = vpop.f32.mrb[0].mxu0
    %v1753 = vadd.f32 0.0, %v1752
    %v1754 = vpop.f32.mrb[0].mxu0
    %v1755 = vpop.f32.mrb[0].mxu0
    %v1756 = vadd.f32 0.0, %v1755
    %v1757 = vpop.f32.mrb[0].mxu0
    %1758 = vdwg.mxu0
    %v1760 = vsel %vm1102, %v1626, 0
    %1762 = vmatprep.subr.bf16.mxu0 0
    %1763 = vmatpush1.bf16.msra.mxu0 %v937
    %1764 = vmatprep.subr.bf16.mxu0 0
    %1765 = vmatpush1.bf16.msra.mxu0 0
    %1766 = vmatprep.subr.bf16.mxu0 0
    %1767 = vmatpush1.bf16.msra.mxu0 0
    %1768 = vmatprep.subr.bf16.mxu0 0
    %1769 = vmatpush1.bf16.msra.mxu0 0
    %1770 = vmatprep.subr.bf16.mxu0 0
    %1771 = vmatpush1.bf16.msra.mxu0 0
    %1772 = vmatprep.subr.bf16.mxu0 0
    %1773 = vmatpush1.bf16.msra.mxu0 0
    %1774 = vmatprep.subr.bf16.mxu0 0
    %1775 = vmatpush1.bf16.msra.mxu0 0
    %1776 = vmatprep.subr.bf16.mxu0 0
    %1777 = vmatpush1.bf16.msra.mxu0 0
    %1778 = vmatprep.subr.bf16.mxu0 0
    %1779 = vmatpush1.bf16.msra.mxu0 0
    %1780 = vmatprep.subr.bf16.mxu0 0
    %1781 = vmatpush1.bf16.msra.mxu0 0
    %1782 = vmatprep.subr.bf16.mxu0 0
    %1783 = vmatpush1.bf16.msra.mxu0 0
    %1784 = vmatprep.subr.bf16.mxu0 0
    %1785 = vmatpush1.bf16.msra.mxu0 0
    %1786 = vmatprep.subr.bf16.mxu0 0
    %1787 = vmatpush1.bf16.msra.mxu0 0
    %1788 = vmatprep.subr.bf16.mxu0 0
    %1789 = vmatpush1.bf16.msra.mxu0 0
    %1790 = vmatprep.subr.bf16.mxu0 0
    %1791 = vmatpush1.bf16.msra.mxu0 0
    %1792 = vmatprep.subr.bf16.mxu0 0
    %1793 = vmatpush1.bf16.msra.mxu0 0
    %1794 = vmatprep.mubr.bf16.mxu0 0
    %1795 = vmatmul.mubr.bf16.gmra.mrb[0].mxu0 %v1760
    %v1796 = vpop.f32.mrb[0].mxu0
    %v1797 = vadd.f32 0.0, %v1796
    %v1798 = vpop.f32.mrb[0].mxu0
    %v1799 = vpop.f32.mrb[0].mxu0
    %v1800 = vadd.f32 0.0, %v1799
    %v1801 = vpop.f32.mrb[0].mxu0
    %1802 = vdwg.mxu0
    %v1803 = vpack.c.bf16 %v1236, %v1233
    %v1804 = vpack.c.bf16 %v1668, %v1665
    %v1805 = vpack.c.bf16 %v1280, %v1277
    %v1806 = vpack.c.bf16 %v1712, %v1709
    %v1807 = vpack.c.bf16 %v1324, %v1321
    %v1808 = vpack.c.bf16 %v1756, %v1753
    %v1809 = vpack.c.bf16 %v1368, %v1365
    %v1810 = vpack.c.bf16 %v1800, %v1797
    %v1811 = vld [vmem:[#allocation7] sm:$0xff]
    %v1812 = vld [vmem:[#allocation7 + $0x8] sm:$0xff]
    %v1813 = vld [vmem:[#allocation7 + $0x10] sm:$0xff]
    %v1814 = vld [vmem:[#allocation7 + $0x18] sm:$0xff]
    %v1815 = vld [vmem:[#allocation7 + $0x20] sm:$0xff]
    %v1816 = vld [vmem:[#allocation7 + $0x28] sm:$0xff]
    %v1817 = vld [vmem:[#allocation7 + $0x30] sm:$0xff]
    %v1818 = vld [vmem:[#allocation7 + $0x38] sm:$0xff]
    %v1819 = vld [vmem:[#allocation7 + $0x40] sm:$0xff]
    %v1820 = vld [vmem:[#allocation7 + $0x48] sm:$0xff]
    %v1821 = vld [vmem:[#allocation7 + $0x50] sm:$0xff]
    %v1822 = vld [vmem:[#allocation7 + $0x58] sm:$0xff]
    %v1823 = vld [vmem:[#allocation7 + $0x60] sm:$0xff]
    %v1824 = vld [vmem:[#allocation7 + $0x68] sm:$0xff]
    %v1825 = vld [vmem:[#allocation7 + $0x70] sm:$0xff]
    %v1826 = vld [vmem:[#allocation7 + $0x78] sm:$0xff]
    %v1827 = vld [vmem:[#allocation7 + $0x80] sm:$0xff]
    %v1828 = vld [vmem:[#allocation7 + $0x88] sm:$0xff]
    %v1829 = vld [vmem:[#allocation7 + $0x90] sm:$0xff]
    %v1830 = vld [vmem:[#allocation7 + $0x98] sm:$0xff]
    %v1831 = vld [vmem:[#allocation7 + $0xa0] sm:$0xff]
    %v1832 = vld [vmem:[#allocation7 + $0xa8] sm:$0xff]
    %v1833 = vld [vmem:[#allocation7 + $0xb0] sm:$0xff]
    %v1834 = vld [vmem:[#allocation7 + $0xb8] sm:$0xff]
    %v1835 = vld [vmem:[#allocation7 + $0xc0] sm:$0xff]
    %v1836 = vld [vmem:[#allocation7 + $0xc8] sm:$0xff]
    %v1837 = vld [vmem:[#allocation7 + $0xd0] sm:$0xff]
    %v1838 = vld [vmem:[#allocation7 + $0xd8] sm:$0xff]
    %v1839 = vld [vmem:[#allocation7 + $0xe0] sm:$0xff]
    %v1840 = vld [vmem:[#allocation7 + $0xe8] sm:$0xff]
    %v1841 = vld [vmem:[#allocation7 + $0xf0] sm:$0xff]
    %v1842 = vld [vmem:[#allocation7 + $0xf8] sm:$0xff]
    %v1843 = vld [vmem:[%s4] sm:$0x3]
    %v1845 = vlaneseq
    %v1846 = vshrl.u32 %v1845, 7
    %v1847 = vsub.s32 0, %v1846
    %v1848 = vrot.slane %v1843, %v1847
    %v1849 = vlaneseq
    %v1850 = vshrl.u32 %v1849, 7
    %v1851 = vsub.s32 1, %v1850
    %v1852 = vrot.slane %v1843, %v1851
    %v1887 = vunpack.c.l.b16 %v1811
    %v1888 = vunpack.c.h.b16 %v1811
    %v1889 = vunpack.c.l.b16 %v1812
    %v1890 = vunpack.c.h.b16 %v1812
    %v1891 = vunpack.c.l.b16 %v1813
    %v1892 = vunpack.c.h.b16 %v1813
    %v1893 = vunpack.c.l.b16 %v1814
    %v1894 = vunpack.c.h.b16 %v1814
    %v1895 = vunpack.c.l.b16 %v1815
    %v1896 = vunpack.c.h.b16 %v1815
    %v1897 = vunpack.c.l.b16 %v1816
    %v1898 = vunpack.c.h.b16 %v1816
    %v1899 = vunpack.c.l.b16 %v1817
    %v1900 = vunpack.c.h.b16 %v1817
    %v1901 = vunpack.c.l.b16 %v1818
    %v1902 = vunpack.c.h.b16 %v1818
    %v1903 = vunpack.c.l.b16 %v1819
    %v1904 = vunpack.c.h.b16 %v1819
    %v1905 = vunpack.c.l.b16 %v1820
    %v1906 = vunpack.c.h.b16 %v1820
    %v1907 = vunpack.c.l.b16 %v1821
    %v1908 = vunpack.c.h.b16 %v1821
    %v1909 = vunpack.c.l.b16 %v1822
    %v1910 = vunpack.c.h.b16 %v1822
    %v1911 = vunpack.c.l.b16 %v1823
    %v1912 = vunpack.c.h.b16 %v1823
    %v1913 = vunpack.c.l.b16 %v1824
    %v1914 = vunpack.c.h.b16 %v1824
    %v1915 = vunpack.c.l.b16 %v1825
    %v1916 = vunpack.c.h.b16 %v1825
    %v1917 = vunpack.c.l.b16 %v1826
    %v1918 = vunpack.c.h.b16 %v1826
    %v1919 = vunpack.c.l.b16 %v1827
    %v1920 = vunpack.c.h.b16 %v1827
    %v1921 = vunpack.c.l.b16 %v1828
    %v1922 = vunpack.c.h.b16 %v1828
    %v1923 = vunpack.c.l.b16 %v1829
    %v1924 = vunpack.c.h.b16 %v1829
    %v1925 = vunpack.c.l.b16 %v1830
    %v1926 = vunpack.c.h.b16 %v1830
    %v1927 = vunpack.c.l.b16 %v1831
    %v1928 = vunpack.c.h.b16 %v1831
    %v1929 = vunpack.c.l.b16 %v1832
    %v1930 = vunpack.c.h.b16 %v1832
    %v1931 = vunpack.c.l.b16 %v1833
    %v1932 = vunpack.c.h.b16 %v1833
    %v1933 = vunpack.c.l.b16 %v1834
    %v1934 = vunpack.c.h.b16 %v1834
    %v1935 = vunpack.c.l.b16 %v1835
    %v1936 = vunpack.c.h.b16 %v1835
    %v1937 = vunpack.c.l.b16 %v1836
    %v1938 = vunpack.c.h.b16 %v1836
    %v1939 = vunpack.c.l.b16 %v1837
    %v1940 = vunpack.c.h.b16 %v1837
    %v1941 = vunpack.c.l.b16 %v1838
    %v1942 = vunpack.c.h.b16 %v1838
    %v1943 = vunpack.c.l.b16 %v1839
    %v1944 = vunpack.c.h.b16 %v1839
    %v1945 = vunpack.c.l.b16 %v1840
    %v1946 = vunpack.c.h.b16 %v1840
    %v1947 = vunpack.c.l.b16 %v1841
    %v1948 = vunpack.c.h.b16 %v1841
    %v1949 = vunpack.c.l.b16 %v1842
    %v1950 = vunpack.c.h.b16 %v1842
    %v1951 = vpack.c.b16 %v1889, %v1887
    %v1952 = vpack.c.b16 %v1890, %v1888
    %v1953 = vpack.c.b16 %v1893, %v1891
    %v1954 = vpack.c.b16 %v1894, %v1892
    %v1955 = vpack.c.b16 %v1897, %v1895
    %v1956 = vpack.c.b16 %v1898, %v1896
    %v1957 = vpack.c.b16 %v1901, %v1899
    %v1958 = vpack.c.b16 %v1902, %v1900
    %v1959 = vpack.c.b16 %v1905, %v1903
    %v1960 = vpack.c.b16 %v1906, %v1904
    %v1961 = vpack.c.b16 %v1909, %v1907
    %v1962 = vpack.c.b16 %v1910, %v1908
    %v1963 = vpack.c.b16 %v1913, %v1911
    %v1964 = vpack.c.b16 %v1914, %v1912
    %v1965 = vpack.c.b16 %v1917, %v1915
    %v1966 = vpack.c.b16 %v1918, %v1916
    %v1967 = vpack.c.b16 %v1921, %v1919
    %v1968 = vpack.c.b16 %v1922, %v1920
    %v1969 = vpack.c.b16 %v1925, %v1923
    %v1970 = vpack.c.b16 %v1926, %v1924
    %v1971 = vpack.c.b16 %v1929, %v1927
    %v1972 = vpack.c.b16 %v1930, %v1928
    %v1973 = vpack.c.b16 %v1933, %v1931
    %v1974 = vpack.c.b16 %v1934, %v1932
    %v1975 = vpack.c.b16 %v1937, %v1935
    %v1976 = vpack.c.b16 %v1938, %v1936
    %v1977 = vpack.c.b16 %v1941, %v1939
    %v1978 = vpack.c.b16 %v1942, %v1940
    %v1979 = vpack.c.b16 %v1945, %v1943
    %v1980 = vpack.c.b16 %v1946, %v1944
    %v1981 = vpack.c.b16 %v1949, %v1947
    %v1982 = vpack.c.b16 %v1950, %v1948
    %2015 = vmatprep.subr.bf16.mxu0 %v1952
    %2016 = vmatpush1.bf16.msra.mxu0 %v1951
    %2017 = vmatprep.subr.bf16.mxu0 %v1954
    %2018 = vmatpush1.bf16.msra.mxu0 %v1953
    %2019 = vmatprep.subr.bf16.mxu0 %v1956
    %2020 = vmatpush1.bf16.msra.mxu0 %v1955
    %2021 = vmatprep.subr.bf16.mxu0 %v1958
    %2022 = vmatpush1.bf16.msra.mxu0 %v1957
    %2023 = vmatprep.subr.bf16.mxu0 %v1960
    %2024 = vmatpush1.bf16.msra.mxu0 %v1959
    %2025 = vmatprep.subr.bf16.mxu0 %v1962
    %2026 = vmatpush1.bf16.msra.mxu0 %v1961
    %2027 = vmatprep.subr.bf16.mxu0 %v1964
    %2028 = vmatpush1.bf16.msra.mxu0 %v1963
    %2029 = vmatprep.subr.bf16.mxu0 %v1966
    %2030 = vmatpush1.bf16.msra.mxu0 %v1965
    %2031 = vmatprep.subr.bf16.mxu0 %v1968
    %2032 = vmatpush1.bf16.msra.mxu0 %v1967
    %2033 = vmatprep.subr.bf16.mxu0 %v1970
    %2034 = vmatpush1.bf16.msra.mxu0 %v1969
    %2035 = vmatprep.subr.bf16.mxu0 %v1972
    %2036 = vmatpush1.bf16.msra.mxu0 %v1971
    %2037 = vmatprep.subr.bf16.mxu0 %v1974
    %2038 = vmatpush1.bf16.msra.mxu0 %v1973
    %2039 = vmatprep.subr.bf16.mxu0 %v1976
    %2040 = vmatpush1.bf16.msra.mxu0 %v1975
    %2041 = vmatprep.subr.bf16.mxu0 %v1978
    %2042 = vmatpush1.bf16.msra.mxu0 %v1977
    %2043 = vmatprep.subr.bf16.mxu0 %v1980
    %2044 = vmatpush1.bf16.msra.mxu0 %v1979
    %2045 = vmatprep.subr.bf16.mxu0 %v1982
    %2046 = vmatpush1.bf16.msra.mxu0 %v1981
    %2047 = vmatprep.mubr.bf16.mxu0 %v1804
    %2048 = vmatmul.mubr.bf16.gmra.mrb[0].mxu0 %v1803
    %v2049 = vpop.f32.mrb[0].mxu0
    %v2050 = vadd.f32 %v1848, %v2049
    %v2051 = vpop.f32.mrb[0].mxu0
    %v2052 = vadd.f32 %v1852, %v2051
    %v2053 = vpop.f32.mrb[0].mxu0
    %v2054 = vadd.f32 %v1848, %v2053
    %v2055 = vpop.f32.mrb[0].mxu0
    %v2056 = vadd.f32 %v1852, %v2055
    %2057 = vmatprep.mubr.bf16.mxu0 %v1806
    %2058 = vmatmul.mubr.bf16.gmra.mrb[0].mxu0 %v1805
    %v2059 = vpop.f32.mrb[0].mxu0
    %v2060 = vadd.f32 %v1848, %v2059
    %v2061 = vpop.f32.mrb[0].mxu0
    %v2062 = vadd.f32 %v1852, %v2061
    %v2063 = vpop.f32.mrb[0].mxu0
    %v2064 = vadd.f32 %v1848, %v2063
    %v2065 = vpop.f32.mrb[0].mxu0
    %v2066 = vadd.f32 %v1852, %v2065
    %2067 = vmatprep.mubr.bf16.mxu0 %v1808
    %2068 = vmatmul.mubr.bf16.gmra.mrb[0].mxu0 %v1807
    %v2069 = vpop.f32.mrb[0].mxu0
    %v2070 = vadd.f32 %v1848, %v2069
    %v2071 = vpop.f32.mrb[0].mxu0
    %v2072 = vadd.f32 %v1852, %v2071
    %v2073 = vpop.f32.mrb[0].mxu0
    %v2074 = vadd.f32 %v1848, %v2073
    %v2075 = vpop.f32.mrb[0].mxu0
    %v2076 = vadd.f32 %v1852, %v2075
    %2077 = vmatprep.mubr.bf16.mxu0 %v1810
    %2078 = vmatmul.mubr.bf16.gmra.mrb[0].mxu0 %v1809
    %v2079 = vpop.f32.mrb[0].mxu0
    %v2080 = vadd.f32 %v1848, %v2079
    %v2081 = vpop.f32.mrb[0].mxu0
    %v2082 = vadd.f32 %v1852, %v2081
    %v2083 = vpop.f32.mrb[0].mxu0
    %v2084 = vadd.f32 %v1848, %v2083
    %v2085 = vpop.f32.mrb[0].mxu0
    %v2086 = vadd.f32 %v1852, %v2085
    %2087 = vdwg.mxu0
    %2088 = vst [vmem:[#allocation8] sm:$0xff] %v2050
    %2089 = vst [vmem:[#allocation8 + $0x8] sm:$0xff] %v2052
    %2090 = vst [vmem:[#allocation8 + $0x10] sm:$0xff] %v2054
    %2091 = vst [vmem:[#allocation8 + $0x18] sm:$0xff] %v2056
    %2092 = vst [vmem:[#allocation8 + $0x20] sm:$0xff] %v2060
    %2093 = vst [vmem:[#allocation8 + $0x28] sm:$0xff] %v2062
    %2094 = vst [vmem:[#allocation8 + $0x30] sm:$0xff] %v2064
    %2095 = vst [vmem:[#allocation8 + $0x38] sm:$0xff] %v2066
    %2096 = vst [vmem:[#allocation8 + $0x40] sm:$0xff] %v2070
    %2097 = vst [vmem:[#allocation8 + $0x48] sm:$0xff] %v2072
    %2098 = vst [vmem:[#allocation8 + $0x50] sm:$0xff] %v2074
    %2099 = vst [vmem:[#allocation8 + $0x58] sm:$0xff] %v2076
    %2100 = vst [vmem:[#allocation8 + $0x60] sm:$0xff] %v2080
    %2101 = vst [vmem:[#allocation8 + $0x68] sm:$0xff] %v2082
    %2102 = vst [vmem:[#allocation8 + $0x70] sm:$0xff] %v2084
    %2103 = vst [vmem:[#allocation8 + $0x78] sm:$0xff] %v2086
    // Predicated region
    $region34: #{tpu_custom_call.1} parent=1 // pred_check
      _
    $region35: #{tpu_custom_call.1} parent=1 // pred_check_branch
      %2105 = sbr.rel (0) target = $region37
    $region36: #{tpu_custom_call.1} parent=1 // pred_region
      %s2107 = ssub.s32 2048, 2048
      %2108 = vsyncadd [#allocation4], %s2107
      %s2109 = sshll.u32 [#allocation8], 4
      %s2110 = int_to_ptr.vmem [resolvable:$true] %s2109
      %2115 = dma.vmem_to_hbm [thread:$0]  %s2110, 2048, %s5, [#allocation4], 256, 256, 16
    $region37: #{tpu_custom_call.1} parent=1 // pred_fallthru
      _
    // Predicated region
    $region38: #{tpu_custom_call.1} parent=1 // pred_check
      _
    $region39: #{tpu_custom_call.1} parent=1 // pred_check_branch
      %2117 = sbr.rel (0) target = $region41
    $region40: #{tpu_custom_call.1} parent=1 // pred_region
      %2118 = dma.done [#allocation4], 2048
    $region41: #{tpu_custom_call.1} parent=1 // pred_fallthru
      _
    %2119 = vsyncpa [#allocation3], 1
    %2120 = vsyncpa [#allocation6], 1
    %2121 = vsyncpa [#allocation4], 1

</llo_original>
